<compile_context>
chip_gen: v5e
topology: v5e:2x2
jax: 0.10.0
libtpu: 0.0.40
codegen_flags: <defaults>
</compile_context>

<pallas_src>
import math

import jax
import jax.numpy as jnp
from jax.experimental import pallas as pl
from jax.experimental.pallas import tpu as pltpu

DIM_IN = 3
DIM_IN_PAD = 8           # pad 3 -> 8 so the contraction operand tiles cleanly
DIM_HIDDEN = 128
SOFTPLUS_BETA = 100.0
INV_BETA = 1.0 / SOFTPLUS_BETA


def _softplus_beta(x):
    """nn.Softplus(beta=100), stable form, threshold branch elided.

    softplus(x) = max(x, 0) + log1p(exp(-|beta*x|)) / beta
    For beta*x > 20 this equals x to ~1e-11, so torch's threshold=20 linear
    cutover (a compare + where) is dropped; divide replaced by a constant
    multiply so only exp/log1p hit the EUP.
    """
    bx = SOFTPLUS_BETA * x
    return jnp.maximum(x, 0.0) + jnp.log1p(jnp.exp(-jnp.abs(bx))) * INV_BETA


def manifold_kernel(x_ref, w0_ref, b0_ref, w1_ref, b1_ref, w2_ref, b2_ref, o_ref):
    # x_ref : (8, TILE_N)       zero-padded canonical positions, transposed
    # w0/w1 : PyTorch (out, in) layout; b0/b1 as (128, 1) columns
    # w2_ref: (1, 128) row (last layer as an MXU matmul)
    # b2_ref: (1,) scalar in SMEM
    # o_ref : (1, 1, TILE_N)    lane-dense scalar level per point
    x = x_ref[...]
    h = jnp.dot(w0_ref[...], x, preferred_element_type=jnp.float32) + b0_ref[...]
    h = _softplus_beta(h)
    h = jnp.dot(w1_ref[...], h, preferred_element_type=jnp.float32) + b1_ref[...]
    h = _softplus_beta(h)
    # Last layer on the MXU: (1,128)@(128,TILE_N) -> lane-dense (1, TILE_N).
    s = jnp.dot(w2_ref[...], h, preferred_element_type=jnp.float32) + b2_ref[0]
    o_ref[...] = s.reshape(o_ref.shape)


def init_params(key, dim_hidden=DIM_HIDDEN, init_radius=1.0):
    """geometry_init for num_layers=3, skip_input_layers=[], weight_norm=True."""
    k0, k1 = jax.random.split(key)
    # freq_weight buffer for pe_freqs=0 is ones(3); fold it into l0's columns.
    fw = jnp.ones((DIM_IN,), jnp.float32)
    # l0 (first-layer init): weight[:, :3] ~ N(0, sqrt(2/num_output)), bias 0.
    w0 = jax.random.normal(k0, (dim_hidden, DIM_IN), jnp.float32) * math.sqrt(2.0 / dim_hidden)
    w0 = w0 * fw[None, :]                                     # identity fold of freq_weight
    w0 = jnp.pad(w0, ((0, 0), (0, DIM_IN_PAD - DIM_IN)))      # zero cols for padded input dims
    b0 = jnp.zeros((dim_hidden, 1), jnp.float32)
    # l1 (middle-layer init): weight ~ N(0, sqrt(2/num_output)), bias 0.
    w1 = jax.random.normal(k1, (dim_hidden, dim_hidden), jnp.float32) * math.sqrt(2.0 / dim_hidden)
    b1 = jnp.zeros((dim_hidden, 1), jnp.float32)
    # l2 (last-layer init): weight = sqrt(pi/num_input), bias = -radius.
    # Stored as a (1, 128) row so the last layer runs on the MXU.
    w2 = jnp.full((1, dim_hidden), math.sqrt(math.pi / dim_hidden), jnp.float32)
    b2 = jnp.full((1,), -init_radius, jnp.float32)
    return w0, b0, w1, b1, w2, b2


def manifold_forward(x, params, tile_n=2048, vmem_limit_mb=None):
    """x: (N, 3) float32 -> (N, 1) float32 scalar level. Arbitrary N (padded internally).

    tile_n: points per grid step (lane axis).  2048 fits every chip's scoped
    VMEM default; when sweeping tile_n >= 8192 set vmem_limit_mb (e.g. 64).
    """
    w0, b0, w1, b1, w2, b2 = params
    n = x.shape[0]
    num_tiles = max(pl.cdiv(n, tile_n), 1)
    n_pad = num_tiles * tile_n
    # Transpose + zero-pad to (8, n_pad): features on sublanes, points on lanes.
    xt = jnp.zeros((DIM_IN_PAD, n_pad), jnp.float32)
    xt = xt.at[:DIM_IN, :n].set(x.astype(jnp.float32).T)

    const = lambda i: (0, 0)
    compiler_params = pltpu.CompilerParams(
        dimension_semantics=("parallel",),
        vmem_limit_bytes=None if vmem_limit_mb is None else vmem_limit_mb * 1024 * 1024,
    )
    out = pl.pallas_call(
        manifold_kernel,
        out_shape=jax.ShapeDtypeStruct((num_tiles, 1, tile_n), jnp.float32),
        grid_spec=pltpu.PrefetchScalarGridSpec(
            num_scalar_prefetch=0,
            grid=(num_tiles,),
            in_specs=[
                pl.BlockSpec((DIM_IN_PAD, tile_n), lambda i: (0, i)),   # x^T tile
                pl.BlockSpec((DIM_HIDDEN, DIM_IN_PAD), const),          # w0 (out,in)
                pl.BlockSpec((DIM_HIDDEN, 1), const),                   # b0
                pl.BlockSpec((DIM_HIDDEN, DIM_HIDDEN), const),          # w1 (out,in)
                pl.BlockSpec((DIM_HIDDEN, 1), const),                   # b1
                pl.BlockSpec((1, DIM_HIDDEN), const),                   # w2 row
                pl.BlockSpec(memory_space=pltpu.MemorySpace.SMEM),      # b2 scalar
            ],
            out_specs=pl.BlockSpec((1, 1, tile_n), lambda i: (i, 0, 0)),
        ),
        compiler_params=compiler_params,
    )(xt, w0, b0, w1, b1, w2, b2)
    # (num_tiles, 1, tile_n) -> (N, 1), dropping the padded tail points.
    return out.reshape(n_pad)[:n].reshape(n, 1)


def manifold_reference(x, params):
    """Pure-JAX reference for correctness check."""
    w0, b0, w1, b1, w2, b2 = params
    h = _softplus_beta(x.astype(jnp.float32) @ w0[:, :DIM_IN].T + b0[:, 0])
    h = _softplus_beta(h @ w1.T + b1[:, 0])
    return h @ w2.T + b2[0]


if __name__ == "__main__":
    key = jax.random.PRNGKey(0)
    k_param, k_x = jax.random.split(key)

    params = init_params(k_param)
    n = 1000  # deliberately NOT a multiple of tile_n to exercise the padding path
    x = jax.random.normal(k_x, (n, DIM_IN), jnp.float32)
    ref = manifold_reference(x, params)

    # Multi-tile path (small tile -> 2 grid steps + padded tail).
    out_small = jax.block_until_ready(manifold_forward(x, params, tile_n=512))
    assert out_small.shape == (n, 1)
    assert jnp.allclose(out_small, ref, atol=1e-4, rtol=1e-4), "Pallas output mismatch (tile_n=512)"

    # Default production tile (single step for this small N).
    out_default = jax.block_until_ready(manifold_forward(x, params))
    assert out_default.shape == (n, 1)
    assert jnp.allclose(out_default, ref, atol=1e-4, rtol=1e-4), "Pallas output mismatch (default tile)"

    print("KERNEL_OK")
</pallas_src>

<mosaic_0001>
module attributes {stable_mosaic.version = 11 : i64} {
  func.func @manifold_kernel(%arg0: i32, %arg1: memref<8x512xf32, #tpu.memory_space<vmem>>, %arg2: memref<128x8xf32, #tpu.memory_space<vmem>>, %arg3: memref<128x1xf32, #tpu.memory_space<vmem>>, %arg4: memref<128x128xf32, #tpu.memory_space<vmem>>, %arg5: memref<128x1xf32, #tpu.memory_space<vmem>>, %arg6: memref<1x128xf32, #tpu.memory_space<vmem>>, %arg7: memref<1xf32, #tpu.memory_space<smem>>, %arg8: memref<1x1x512xf32, #tpu.memory_space<vmem>>) attributes {dimension_semantics = [#tpu.dimension_semantics<parallel>], iteration_bounds = array<i64: 2>, scalar_prefetch = 0 : i64, scratch_operands = 0 : i64, tpu.core_type = #tpu.core_type<tc>, window_params = [{transform_indices = @transform_0, window_bounds = array<i64: 8, 512>}, {pipeline_mode = #tpu.pipeline_mode<synchronous>, transform_indices = @transform_1, window_bounds = array<i64: 128, 8>}, {pipeline_mode = #tpu.pipeline_mode<synchronous>, transform_indices = @transform_2, window_bounds = array<i64: 128, 1>}, {pipeline_mode = #tpu.pipeline_mode<synchronous>, transform_indices = @transform_3, window_bounds = array<i64: 128, 128>}, {pipeline_mode = #tpu.pipeline_mode<synchronous>, transform_indices = @transform_4, window_bounds = array<i64: 128, 1>}, {pipeline_mode = #tpu.pipeline_mode<synchronous>, transform_indices = @transform_5, window_bounds = array<i64: 1, 128>}, {transform_indices = @transform_6, window_bounds = array<i64: 1>}, {transform_indices = @transform_7, window_bounds = array<i64: 1, 1, 512>}]} {
    %c0 = arith.constant 0 : index
    %c0_0 = arith.constant 0 : index
    %0 = vector.load %arg1[%c0, %c0_0] : memref<8x512xf32, #tpu.memory_space<vmem>>, vector<8x512xf32>
    %c0_1 = arith.constant 0 : index
    %c0_2 = arith.constant 0 : index
    %1 = vector.load %arg2[%c0_1, %c0_2] : memref<128x8xf32, #tpu.memory_space<vmem>>, vector<128x8xf32>
    %cst = arith.constant dense<0.000000e+00> : vector<128x512xf32>
    %2 = tpu.matmul %1, %0, %cst {dimension_numbers = #tpu.dot_dimension_numbers<[1], [0], [0], [1], [0, 0, 1, 1], [], []>} : vector<128x8xf32>, vector<8x512xf32>, vector<128x512xf32> -> vector<128x512xf32>
    %c0_3 = arith.constant 0 : index
    %c0_4 = arith.constant 0 : index
    %3 = vector.load %arg3[%c0_3, %c0_4] : memref<128x1xf32, #tpu.memory_space<vmem>>, vector<128x1xf32>
    %4 = vector.broadcast %3 : vector<128x1xf32> to vector<128x512xf32>
    %5 = arith.addf %2, %4 : vector<128x512xf32>
    %cst_5 = arith.constant 1.000000e+02 : f32
    %6 = vector.broadcast %cst_5 : f32 to vector<128x512xf32>
    %7 = arith.mulf %6, %5 : vector<128x512xf32>
    %cst_6 = arith.constant 0.000000e+00 : f32
    %8 = vector.broadcast %cst_6 : f32 to vector<128x512xf32>
    %9 = arith.maximumf %5, %8 : vector<128x512xf32>
    %10 = math.absf %7 : vector<128x512xf32>
    %cst_7 = arith.constant 0.000000e+00 : f32
    %11 = vector.broadcast %cst_7 : f32 to vector<128x512xf32>
    %12 = arith.subf %11, %10 : vector<128x512xf32>
    %13 = math.exp %12 : vector<128x512xf32>
    %14 = math.log1p %13 : vector<128x512xf32>
    %cst_8 = arith.constant 0.00999999977 : f32
    %15 = vector.broadcast %cst_8 : f32 to vector<128x512xf32>
    %16 = arith.mulf %14, %15 : vector<128x512xf32>
    %17 = arith.addf %9, %16 : vector<128x512xf32>
    %c0_9 = arith.constant 0 : index
    %c0_10 = arith.constant 0 : index
    %18 = vector.load %arg4[%c0_9, %c0_10] : memref<128x128xf32, #tpu.memory_space<vmem>>, vector<128x128xf32>
    %cst_11 = arith.constant dense<0.000000e+00> : vector<128x512xf32>
    %19 = tpu.matmul %18, %17, %cst_11 {dimension_numbers = #tpu.dot_dimension_numbers<[1], [0], [0], [1], [0, 0, 1, 1], [], []>} : vector<128x128xf32>, vector<128x512xf32>, vector<128x512xf32> -> vector<128x512xf32>
    %c0_12 = arith.constant 0 : index
    %c0_13 = arith.constant 0 : index
    %20 = vector.load %arg5[%c0_12, %c0_13] : memref<128x1xf32, #tpu.memory_space<vmem>>, vector<128x1xf32>
    %21 = vector.broadcast %20 : vector<128x1xf32> to vector<128x512xf32>
    %22 = arith.addf %19, %21 : vector<128x512xf32>
    %cst_14 = arith.constant 1.000000e+02 : f32
    %23 = vector.broadcast %cst_14 : f32 to vector<128x512xf32>
    %24 = arith.mulf %23, %22 : vector<128x512xf32>
    %cst_15 = arith.constant 0.000000e+00 : f32
    %25 = vector.broadcast %cst_15 : f32 to vector<128x512xf32>
    %26 = arith.maximumf %22, %25 : vector<128x512xf32>
    %27 = math.absf %24 : vector<128x512xf32>
    %cst_16 = arith.constant 0.000000e+00 : f32
    %28 = vector.broadcast %cst_16 : f32 to vector<128x512xf32>
    %29 = arith.subf %28, %27 : vector<128x512xf32>
    %30 = math.exp %29 : vector<128x512xf32>
    %31 = math.log1p %30 : vector<128x512xf32>
    %cst_17 = arith.constant 0.00999999977 : f32
    %32 = vector.broadcast %cst_17 : f32 to vector<128x512xf32>
    %33 = arith.mulf %31, %32 : vector<128x512xf32>
    %34 = arith.addf %26, %33 : vector<128x512xf32>
    %c0_18 = arith.constant 0 : index
    %c0_19 = arith.constant 0 : index
    %35 = vector.load %arg6[%c0_18, %c0_19] : memref<1x128xf32, #tpu.memory_space<vmem>>, vector<1x128xf32>
    %cst_20 = arith.constant dense<0.000000e+00> : vector<1x512xf32>
    %36 = tpu.matmul %35, %34, %cst_20 {dimension_numbers = #tpu.dot_dimension_numbers<[1], [0], [0], [1], [0, 0, 1, 1], [], []>} : vector<1x128xf32>, vector<128x512xf32>, vector<1x512xf32> -> vector<1x512xf32>
    %c0_21 = arith.constant 0 : index
    %37 = memref.load %arg7[%c0_21] : memref<1xf32, #tpu.memory_space<smem>>
    %38 = vector.broadcast %37 : f32 to vector<1x512xf32>
    %39 = arith.addf %36, %38 : vector<1x512xf32>
    %40 = vector.shape_cast %39 : vector<1x512xf32> to vector<1x1x512xf32>
    %c0_22 = arith.constant 0 : index
    %c0_23 = arith.constant 0 : index
    %c0_24 = arith.constant 0 : index
    %41 = vector.load %arg8[%c0_22, %c0_23, %c0_24] : memref<1x1x512xf32, #tpu.memory_space<vmem>>, vector<1x1x512xf32>
    tpu.vector_store %arg8[%c0_22, %c0_23, %c0_24], %40 {strides = array<i32>} : memref<1x1x512xf32, #tpu.memory_space<vmem>>, vector<1x1x512xf32>,
    return
  }
  func.func @transform_0(%arg0: i32) -> (i32, i32) {
    %c0_i32 = arith.constant 0 : i32
    %c0_i32_0 = arith.constant 0 : i32
    return %c0_i32, %arg0 : i32, i32
  }
  func.func @transform_1(%arg0: i32) -> (i32, i32) {
    %c0_i32 = arith.constant 0 : i32
    %c0_i32_0 = arith.constant 0 : i32
    %c0_i32_1 = arith.constant 0 : i32
    return %c0_i32, %c0_i32_0 : i32, i32
  }
  func.func @transform_2(%arg0: i32) -> (i32, i32) {
    %c0_i32 = arith.constant 0 : i32
    %c0_i32_0 = arith.constant 0 : i32
    %c0_i32_1 = arith.constant 0 : i32
    return %c0_i32, %c0_i32_0 : i32, i32
  }
  func.func @transform_3(%arg0: i32) -> (i32, i32) {
    %c0_i32 = arith.constant 0 : i32
    %c0_i32_0 = arith.constant 0 : i32
    %c0_i32_1 = arith.constant 0 : i32
    return %c0_i32, %c0_i32_0 : i32, i32
  }
  func.func @transform_4(%arg0: i32) -> (i32, i32) {
    %c0_i32 = arith.constant 0 : i32
    %c0_i32_0 = arith.constant 0 : i32
    %c0_i32_1 = arith.constant 0 : i32
    return %c0_i32, %c0_i32_0 : i32, i32
  }
  func.func @transform_5(%arg0: i32) -> (i32, i32) {
    %c0_i32 = arith.constant 0 : i32
    %c0_i32_0 = arith.constant 0 : i32
    %c0_i32_1 = arith.constant 0 : i32
    return %c0_i32, %c0_i32_0 : i32, i32
  }
  func.func @transform_6(%arg0: i32) -> i32 {
    %c0_i32 = arith.constant 0 : i32
    %c0_i32_0 = arith.constant 0 : i32
    return %c0_i32 : i32
  }
  func.func @transform_7(%arg0: i32) -> (i32, i32, i32) {
    %c0_i32 = arith.constant 0 : i32
    %c0_i32_0 = arith.constant 0 : i32
    %c0_i32_1 = arith.constant 0 : i32
    return %arg0, %c0_i32, %c0_i32_0 : i32, i32, i32
  }
}

</mosaic_0001>

<llo_original>
// kernel: tpu_custom_call.1
$region0: #{tpu_custom_call.1}
  #allocation0 [shape = 'u32[]', space=smem, size = 0x4, offset = 0x4, fixed_abs, tag = 'smem constant byte address 0x4 - core index']
  #allocation1 [shape = 'u32[72,128]{1,0:T(1,128)}', space=vmem, size = 0x9000, scoped, tag = 'internal scratch']
  #allocation2 [shape = 'f32[1]{0:T(128)S(6)}', space=smem, size = 0x200, scoped, tag = 'scoped memory for tpu_custom_call.1']
  %s0 = inlined_call_operand.vmem [shape: f32[8,1024], index: 0, kind: input, shape index: {}]
  %s1 = inlined_call_operand.vmem [shape: f32[128,8], index: 1, kind: input, shape index: {}]
  %s2 = inlined_call_operand.vmem [shape: f32[128,1], index: 2, kind: input, shape index: {}]
  %s3 = inlined_call_operand.vmem [shape: f32[128,128], index: 3, kind: input, shape index: {}]
  %s4 = inlined_call_operand.vmem [shape: f32[128,1], index: 4, kind: input, shape index: {}]
  %s5 = inlined_call_operand.vmem [shape: f32[1,128], index: 5, kind: input, shape index: {}]
  %s6 = inlined_call_operand.<no memory space> [shape: f32[1], index: 6, kind: input, shape index: {}]
  %s7 = inlined_call_operand.hbm [shape: f32[2,1,512], index: 7, kind: output, shape index: {}]
  %s8 = sld [smem:[#allocation0]]
  $region61: #{tpu_custom_call.1} parent=0
    _
  %s10 = ssub.s32 1, %s8
  %s11 = scalar_select 0, %s10, %s8
  %12 = sst [smem:[#allocation2]] %s6
  $region1: #{tpu_custom_call.1} parent=0
    #allocation3 [shape = 'u8[4096]{0}', space=vmem, size = 0x1000, scoped, tag = 'output window, operand 0']
    #allocation4 [shape = 's32[2]{0}', space=sflag, size = 0x8, scoped, tag = 'scoped memory for tpu_custom_call.1']
    %13 = vsyncpa [#allocation4], 0
    %s14 = scalar_lea.sflag [#allocation4], 1
    %15 = vsyncpa %s14, 0
    loop: start=0, step=1, limit=4
    $region2: #{tpu_custom_call.1} parent=1 // loop_pre_header
      _
    $region3: #{tpu_custom_call.1} parent=1 // loop_header
      %s17 = sphi 0, %s21
      %p18 = scmp.ge.s32.totalorder %s17, 4
      %s27 = sphi 0, %s29
      %s30 = sphi 0, %s27
      %s31 = sphi 0, %s30
      %s47 = sphi 0, %s31
      %s51 = sphi 0, %s51
      %s53 = sphi 0, %s51
      %s54 = sphi 0, %s53
      %s68 = sphi 0, %s54
      %s72 = sphi 0, %s72
      %s74 = sphi 0, %s72
      %s75 = sphi 0, %s74
      %s89 = sphi 0, %s75
      %s93 = sphi 0, %s93
      %s95 = sphi 0, %s93
      %s96 = sphi 0, %s95
      %s110 = sphi 0, %s96
      %s114 = sphi 0, %s114
      %s116 = sphi 0, %s114
      %s117 = sphi 0, %s116
      %s131 = sphi 0, %s117
      %s135 = sphi 0, %s135
      %s137 = sphi 0, %s135
      %s138 = sphi 0, %s137
      %s152 = sphi 0, %s138
      %s156 = sphi 0, %s156
      %s158 = sphi 0, %s156
      %s159 = sphi 0, %s158
      %s173 = sphi 0, %s159
      %s179 = sphi 0, %s181
      %s182 = sphi 0, %s179
      %s183 = sphi 0, %s182
      %s199 = sphi 0, %s183
    $region4: #{tpu_custom_call.1} parent=1 // loop_header_branch
      %20 = sbr.rel (%p18) target = $region8
    $region5: #{tpu_custom_call.1} parent=1 // loop_body
      %s22 = ssub.s32 %s17, 1
      %s23 = ssub.s32 %s17, 2
      %s24 = sadd.s32 %s17, 1
      %s25 = ssub.s32 %s17, %s24
      %p26 = scmp.eq.s32.totalorder %s25, 0
      %s28 = sadd.s32 %s27, 1
      %s29 = scalar_select %p26, %s27, %s28
      %p32 = pneg %p26
      %p33 = scmp.eq.s32.totalorder %s17, 1
      %p34 = por %p32, %p33
      %p35 = scmp.ne.s32.totalorder %s27, %s30
      %p36 = scmp.eq.s32.totalorder %s17, 0
      %p37 = por %p35, %p36
      %p38 = scmp.ne.s32.totalorder %s27, %s30
      %p39 = scmp.eq.s32.totalorder %s22, 1
      %p40 = por %p38, %p39
      %p41 = scmp.ne.s32.totalorder %s30, %s31
      %p42 = scmp.eq.s32.totalorder %s22, 0
      %p43 = por %p41, %p42
      %p44 = scmp.ne.s32.totalorder %s30, %s31
      %p45 = scmp.eq.s32.totalorder %s23, 1
      %p46 = por %p44, %p45
      %p48 = scmp.ne.s32.totalorder %s31, %s47
      %p49 = scmp.eq.s32.totalorder %s23, 0
      %p50 = por %p48, %p49
      %s52 = sadd.s32 %s51, 1
      %p55 = scmp.eq.s32.totalorder %s17, 1
      %p56 = scmp.ne.s32.totalorder %s51, %s53
      %p57 = scmp.eq.s32.totalorder %s17, 0
      %p58 = por %p56, %p57
      %p59 = scmp.ne.s32.totalorder %s51, %s53
      %p60 = scmp.eq.s32.totalorder %s22, 1
      %p61 = por %p59, %p60
      %p62 = scmp.ne.s32.totalorder %s53, %s54
      %p63 = scmp.eq.s32.totalorder %s22, 0
      %p64 = por %p62, %p63
      %p65 = scmp.ne.s32.totalorder %s53, %s54
      %p66 = scmp.eq.s32.totalorder %s23, 1
      %p67 = por %p65, %p66
      %p69 = scmp.ne.s32.totalorder %s54, %s68
      %p70 = scmp.eq.s32.totalorder %s23, 0
      %p71 = por %p69, %p70
      %s73 = sadd.s32 %s72, 1
      %p76 = scmp.eq.s32.totalorder %s17, 1
      %p77 = scmp.ne.s32.totalorder %s72, %s74
      %p78 = scmp.eq.s32.totalorder %s17, 0
      %p79 = por %p77, %p78
      %p80 = scmp.ne.s32.totalorder %s72, %s74
      %p81 = scmp.eq.s32.totalorder %s22, 1
      %p82 = por %p80, %p81
      %p83 = scmp.ne.s32.totalorder %s74, %s75
      %p84 = scmp.eq.s32.totalorder %s22, 0
      %p85 = por %p83, %p84
      %p86 = scmp.ne.s32.totalorder %s74, %s75
      %p87 = scmp.eq.s32.totalorder %s23, 1
      %p88 = por %p86, %p87
      %p90 = scmp.ne.s32.totalorder %s75, %s89
      %p91 = scmp.eq.s32.totalorder %s23, 0
      %p92 = por %p90, %p91
      %s94 = sadd.s32 %s93, 1
      %p97 = scmp.eq.s32.totalorder %s17, 1
      %p98 = scmp.ne.s32.totalorder %s93, %s95
      %p99 = scmp.eq.s32.totalorder %s17, 0
      %p100 = por %p98, %p99
      %p101 = scmp.ne.s32.totalorder %s93, %s95
      %p102 = scmp.eq.s32.totalorder %s22, 1
      %p103 = por %p101, %p102
      %p104 = scmp.ne.s32.totalorder %s95, %s96
      %p105 = scmp.eq.s32.totalorder %s22, 0
      %p106 = por %p104, %p105
      %p107 = scmp.ne.s32.totalorder %s95, %s96
      %p108 = scmp.eq.s32.totalorder %s23, 1
      %p109 = por %p107, %p108
      %p111 = scmp.ne.s32.totalorder %s96, %s110
      %p112 = scmp.eq.s32.totalorder %s23, 0
      %p113 = por %p111, %p112
      %s115 = sadd.s32 %s114, 1
      %p118 = scmp.eq.s32.totalorder %s17, 1
      %p119 = scmp.ne.s32.totalorder %s114, %s116
      %p120 = scmp.eq.s32.totalorder %s17, 0
      %p121 = por %p119, %p120
      %p122 = scmp.ne.s32.totalorder %s114, %s116
      %p123 = scmp.eq.s32.totalorder %s22, 1
      %p124 = por %p122, %p123
      %p125 = scmp.ne.s32.totalorder %s116, %s117
      %p126 = scmp.eq.s32.totalorder %s22, 0
      %p127 = por %p125, %p126
      %p128 = scmp.ne.s32.totalorder %s116, %s117
      %p129 = scmp.eq.s32.totalorder %s23, 1
      %p130 = por %p128, %p129
      %p132 = scmp.ne.s32.totalorder %s117, %s131
      %p133 = scmp.eq.s32.totalorder %s23, 0
      %p134 = por %p132, %p133
      %s136 = sadd.s32 %s135, 1
      %p139 = scmp.eq.s32.totalorder %s17, 1
      %p140 = scmp.ne.s32.totalorder %s135, %s137
      %p141 = scmp.eq.s32.totalorder %s17, 0
      %p142 = por %p140, %p141
      %p143 = scmp.ne.s32.totalorder %s135, %s137
      %p144 = scmp.eq.s32.totalorder %s22, 1
      %p145 = por %p143, %p144
      %p146 = scmp.ne.s32.totalorder %s137, %s138
      %p147 = scmp.eq.s32.totalorder %s22, 0
      %p148 = por %p146, %p147
      %p149 = scmp.ne.s32.totalorder %s137, %s138
      %p150 = scmp.eq.s32.totalorder %s23, 1
      %p151 = por %p149, %p150
      %p153 = scmp.ne.s32.totalorder %s138, %s152
      %p154 = scmp.eq.s32.totalorder %s23, 0
      %p155 = por %p153, %p154
      %s157 = sadd.s32 %s156, 1
      %p160 = scmp.eq.s32.totalorder %s17, 1
      %p161 = scmp.ne.s32.totalorder %s156, %s158
      %p162 = scmp.eq.s32.totalorder %s17, 0
      %p163 = por %p161, %p162
      %p164 = scmp.ne.s32.totalorder %s156, %s158
      %p165 = scmp.eq.s32.totalorder %s22, 1
      %p166 = por %p164, %p165
      %p167 = scmp.ne.s32.totalorder %s158, %s159
      %p168 = scmp.eq.s32.totalorder %s22, 0
      %p169 = por %p167, %p168
      %p170 = scmp.ne.s32.totalorder %s158, %s159
      %p171 = scmp.eq.s32.totalorder %s23, 1
      %p172 = por %p170, %p171
      %p174 = scmp.ne.s32.totalorder %s159, %s173
      %p175 = scmp.eq.s32.totalorder %s23, 0
      %p176 = por %p174, %p175
      %s177 = ssub.s32 %s17, %s24
      %p178 = scmp.eq.s32.totalorder %s177, 0
      %s180 = sadd.s32 %s179, 1
      %s181 = scalar_select %p178, %s179, %s180
      %p184 = pneg %p178
      %p185 = scmp.eq.s32.totalorder %s17, 1
      %p186 = por %p184, %p185
      %p187 = scmp.ne.s32.totalorder %s179, %s182
      %p188 = scmp.eq.s32.totalorder %s17, 0
      %p189 = por %p187, %p188
      %p190 = scmp.ne.s32.totalorder %s179, %s182
      %p191 = scmp.eq.s32.totalorder %s22, 1
      %p192 = por %p190, %p191
      %p193 = scmp.ne.s32.totalorder %s182, %s183
      %p194 = scmp.eq.s32.totalorder %s22, 0
      %p195 = por %p193, %p194
      %p196 = scmp.ne.s32.totalorder %s182, %s183
      %p197 = scmp.eq.s32.totalorder %s23, 1
      %p198 = por %p196, %p197
      %p200 = scmp.ne.s32.totalorder %s183, %s199
      %p201 = scmp.eq.s32.totalorder %s23, 0
      %p202 = por %p200, %p201
      %p203 = scmp.le.s32.totalorder 1, %s17
      %p204 = scmp.lt.s32.totalorder %s17, 3
      %p205 = pnand %p203, %p204
      %p206 = pneg %p205
      // Predicated region
      $region9: #{tpu_custom_call.1} parent=5 // pred_check
        _
      $region10: #{tpu_custom_call.1} parent=5 // pred_check_branch
        %208 = sbr.rel (%p205) target = $region12
      $region11: #{tpu_custom_call.1} parent=5 // pred_region
        %s209 = ssub.s32 %s17, 1
        // Predicated region
        $region13: #{tpu_custom_call.1} parent=11 // pred_check
          %p210 = pneg %p64
        $region14: #{tpu_custom_call.1} parent=11 // pred_check_branch
          %212 = sbr.rel (%p210) target = $region16
        $region15: #{tpu_custom_call.1} parent=11 // pred_region
          _
        $region16: #{tpu_custom_call.1} parent=11 // pred_fallthru
          _
        // Predicated region
        $region17: #{tpu_custom_call.1} parent=11 // pred_check
          %p213 = pneg %p85
        $region18: #{tpu_custom_call.1} parent=11 // pred_check_branch
          %215 = sbr.rel (%p213) target = $region20
        $region19: #{tpu_custom_call.1} parent=11 // pred_region
          _
        $region20: #{tpu_custom_call.1} parent=11 // pred_fallthru
          _
        // Predicated region
        $region21: #{tpu_custom_call.1} parent=11 // pred_check
          %p216 = pneg %p106
        $region22: #{tpu_custom_call.1} parent=11 // pred_check_branch
          %218 = sbr.rel (%p216) target = $region24
        $region23: #{tpu_custom_call.1} parent=11 // pred_region
          _
        $region24: #{tpu_custom_call.1} parent=11 // pred_fallthru
          _
        // Predicated region
        $region25: #{tpu_custom_call.1} parent=11 // pred_check
          %p219 = pneg %p127
        $region26: #{tpu_custom_call.1} parent=11 // pred_check_branch
          %221 = sbr.rel (%p219) target = $region28
        $region27: #{tpu_custom_call.1} parent=11 // pred_region
          _
        $region28: #{tpu_custom_call.1} parent=11 // pred_fallthru
          _
        // Predicated region
        $region29: #{tpu_custom_call.1} parent=11 // pred_check
          %p222 = pneg %p148
        $region30: #{tpu_custom_call.1} parent=11 // pred_check_branch
          %224 = sbr.rel (%p222) target = $region32
        $region31: #{tpu_custom_call.1} parent=11 // pred_region
          _
        $region32: #{tpu_custom_call.1} parent=11 // pred_fallthru
          _
        // Predicated region
        $region33: #{tpu_custom_call.1} parent=11 // pred_check
          %p225 = pneg %p169
        $region34: #{tpu_custom_call.1} parent=11 // pred_check_branch
          %227 = sbr.rel (%p225) target = $region36
        $region35: #{tpu_custom_call.1} parent=11 // pred_region
          _
        $region36: #{tpu_custom_call.1} parent=11 // pred_fallthru
          _
      $region12: #{tpu_custom_call.1} parent=5 // pred_fallthru
        _
      %p228 = scmp.lt.s32.totalorder %s17, 2
      // Predicated region
      $region37: #{tpu_custom_call.1} parent=5 // pred_check
        %p229 = pneg %p228
      $region38: #{tpu_custom_call.1} parent=5 // pred_check_branch
        %231 = sbr.rel (%p229) target = $region40
      $region39: #{tpu_custom_call.1} parent=5 // pred_region
        // Predicated region
        $region41: #{tpu_custom_call.1} parent=39 // pred_check
          %p232 = pneg %p37
        $region42: #{tpu_custom_call.1} parent=39 // pred_check_branch
          %234 = sbr.rel (%p232) target = $region44
        $region43: #{tpu_custom_call.1} parent=39 // pred_region
          %s235 = smul.u32 4, %s17
          %p236 = scmp.lt.s32.totalorder %s235, 7
          %s237 = scalar_select %p236, %s235, 7
          %s238 = smul.addr %s237, 8
          %s239 = scalar_lea.vmem %s0, %s238
          %s240 = smul.u32 4, %s17
        $region44: #{tpu_custom_call.1} parent=39 // pred_fallthru
          _
      $region40: #{tpu_custom_call.1} parent=5 // pred_fallthru
        _
      %p241 = scmp.le.s32.totalorder 1, %s17
      %p242 = scmp.lt.s32.totalorder %s17, 3
      %p243 = pnand %p241, %p242
      %p244 = pneg %p243
      // Predicated region
      $region45: #{tpu_custom_call.1} parent=5 // pred_check
        _
      $region46: #{tpu_custom_call.1} parent=5 // pred_check_branch
        %246 = sbr.rel (%p243) target = $region48
      $region47: #{tpu_custom_call.1} parent=5 // pred_region
        %s247 = ssub.s32 %s17, 1
        %s248 = smul.u32 4, %s22
        %p249 = scmp.lt.s32.totalorder %s248, 7
        %s250 = scalar_select %p249, %s248, 7
        %s251 = smul.addr %s250, 8
        %s252 = scalar_lea.vmem %s0, %s251
        %p253 = pneg %p43
        %p254 = pneg %p40
        %p255 = pneg %p64
        %p256 = pneg %p61
        %p257 = pneg %p85
        %p258 = pneg %p82
        %p259 = pneg %p106
        %p260 = pneg %p103
        %p261 = pneg %p127
        %p262 = pneg %p124
        %p263 = pneg %p148
        %p264 = pneg %p145
        %p265 = pneg %p169
        %p266 = pneg %p166
        %p267 = pneg %p195
        %p268 = pneg %p192
        %s269 = sand.u32 %s182, 1
        %s270 = scalar_lea.sflag [#allocation4], %s269
        %s271 = sand.u32 %s182, 1
        %s272 = smul.addr %s271, 4
        %s273 = scalar_lea.vmem [#allocation3], %s272
        %s274 = smul.u32 4, %s22
        %p275 = scmp.lt.s32.totalorder %s274, 7
        %s276 = scalar_select %p275, %s274, 7
        %s277 = smul.addr %s276, 8
        %s278 = scalar_lea.vmem %s0, %s277
        %s279 = smul.u32 4, %s22
        %v280 = vld [vmem:[%s278] sm:$0xff]
        %v281 = vld [vmem:[%s278 + $0x8] sm:$0xff]
        %v282 = vld [vmem:[%s278 + $0x10] sm:$0xff]
        %v283 = vld [vmem:[%s278 + $0x18] sm:$0xff]
        %v284 = vld [vmem:[%s1] sm:$0xff]
        %v285 = vld [vmem:[%s1 + $0x8] sm:$0xff]
        %v286 = vld [vmem:[%s1 + $0x10] sm:$0xff]
        %v287 = vld [vmem:[%s1 + $0x18] sm:$0xff]
        %v288 = vld [vmem:[%s1 + $0x20] sm:$0xff]
        %v289 = vld [vmem:[%s1 + $0x28] sm:$0xff]
        %v290 = vld [vmem:[%s1 + $0x30] sm:$0xff]
        %v291 = vld [vmem:[%s1 + $0x38] sm:$0xff]
        %v292 = vld [vmem:[%s1 + $0x40] sm:$0xff]
        %v293 = vld [vmem:[%s1 + $0x48] sm:$0xff]
        %v294 = vld [vmem:[%s1 + $0x50] sm:$0xff]
        %v295 = vld [vmem:[%s1 + $0x58] sm:$0xff]
        %v296 = vld [vmem:[%s1 + $0x60] sm:$0xff]
        %v297 = vld [vmem:[%s1 + $0x68] sm:$0xff]
        %v298 = vld [vmem:[%s1 + $0x70] sm:$0xff]
        %v299 = vld [vmem:[%s1 + $0x78] sm:$0xff]
        %v300 = vld [vmem:[%s2] sm:$0xff]
        %v301 = vld [vmem:[%s2 + $0x8] sm:$0xff]
        %v302 = vld [vmem:[%s2 + $0x10] sm:$0xff]
        %v303 = vld [vmem:[%s2 + $0x18] sm:$0xff]
        %v304 = vld [vmem:[%s2 + $0x20] sm:$0xff]
        %v305 = vld [vmem:[%s2 + $0x28] sm:$0xff]
        %v306 = vld [vmem:[%s2 + $0x30] sm:$0xff]
        %v307 = vld [vmem:[%s2 + $0x38] sm:$0xff]
        %v308 = vld [vmem:[%s2 + $0x40] sm:$0xff]
        %v309 = vld [vmem:[%s2 + $0x48] sm:$0xff]
        %v310 = vld [vmem:[%s2 + $0x50] sm:$0xff]
        %v311 = vld [vmem:[%s2 + $0x58] sm:$0xff]
        %v312 = vld [vmem:[%s2 + $0x60] sm:$0xff]
        %v313 = vld [vmem:[%s2 + $0x68] sm:$0xff]
        %v314 = vld [vmem:[%s2 + $0x70] sm:$0xff]
        %v315 = vld [vmem:[%s2 + $0x78] sm:$0xff]
        %317 = vset.pattern.permute.xlu0 0
        %318 = vperm.xlu0 %317, %v300
        %v319 = vpop.permute.xlu0 %318
        %322 = vset.pattern.permute.xlu0 0
        %323 = vperm.xlu0 %322, %v301
        %v324 = vpop.permute.xlu0 %323
        %327 = vset.pattern.permute.xlu0 0
        %328 = vperm.xlu0 %327, %v302
        %v329 = vpop.permute.xlu0 %328
        %332 = vset.pattern.permute.xlu0 0
        %333 = vperm.xlu0 %332, %v303
        %v334 = vpop.permute.xlu0 %333
        %337 = vset.pattern.permute.xlu0 0
        %338 = vperm.xlu0 %337, %v304
        %v339 = vpop.permute.xlu0 %338
        %342 = vset.pattern.permute.xlu0 0
        %343 = vperm.xlu0 %342, %v305
        %v344 = vpop.permute.xlu0 %343
        %347 = vset.pattern.permute.xlu0 0
        %348 = vperm.xlu0 %347, %v306
        %v349 = vpop.permute.xlu0 %348
        %352 = vset.pattern.permute.xlu0 0
        %353 = vperm.xlu0 %352, %v307
        %v354 = vpop.permute.xlu0 %353
        %357 = vset.pattern.permute.xlu0 0
        %358 = vperm.xlu0 %357, %v308
        %v359 = vpop.permute.xlu0 %358
        %362 = vset.pattern.permute.xlu0 0
        %363 = vperm.xlu0 %362, %v309
        %v364 = vpop.permute.xlu0 %363
        %367 = vset.pattern.permute.xlu0 0
        %368 = vperm.xlu0 %367, %v310
        %v369 = vpop.permute.xlu0 %368
        %372 = vset.pattern.permute.xlu0 0
        %373 = vperm.xlu0 %372, %v311
        %v374 = vpop.permute.xlu0 %373
        %377 = vset.pattern.permute.xlu0 0
        %378 = vperm.xlu0 %377, %v312
        %v379 = vpop.permute.xlu0 %378
        %382 = vset.pattern.permute.xlu0 0
        %383 = vperm.xlu0 %382, %v313
        %v384 = vpop.permute.xlu0 %383
        %387 = vset.pattern.permute.xlu0 0
        %388 = vperm.xlu0 %387, %v314
        %v389 = vpop.permute.xlu0 %388
        %392 = vset.pattern.permute.xlu0 0
        %393 = vperm.xlu0 %392, %v315
        %v394 = vpop.permute.xlu0 %393
        %vm396 = vcmask 64512
        %v398 = vsel %vm396, %v284, 0
        %v401 = vsel %vm396, %v285, 0
        %v404 = vsel %vm396, %v286, 0
        %v407 = vsel %vm396, %v287, 0
        %v410 = vsel %vm396, %v288, 0
        %v413 = vsel %vm396, %v289, 0
        %v416 = vsel %vm396, %v290, 0
        %v419 = vsel %vm396, %v291, 0
        %v422 = vsel %vm396, %v292, 0
        %v425 = vsel %vm396, %v293, 0
        %v428 = vsel %vm396, %v294, 0
        %v431 = vsel %vm396, %v295, 0
        %v434 = vsel %vm396, %v296, 0
        %v437 = vsel %vm396, %v297, 0
        %v440 = vsel %vm396, %v298, 0
        %v443 = vsel %vm396, %v299, 0
        %445 = vmatpush.msra.mxu0 0.0
        %446 = vmatpush.msra.mxu0 0.0
        %447 = vmatpush.msra.mxu0 0.0
        %448 = vmatpush.msra.mxu0 0.0
        %449 = vmatpush.msra.mxu0 0.0
        %450 = vmatpush.msra.mxu0 0.0
        %451 = vmatpush.msra.mxu0 0.0
        %452 = vmatpush.msra.mxu0 0.0
        %453 = vmatpush.msra.mxu0 0.0
        %454 = vmatpush.msra.mxu0 0.0
        %455 = vmatpush.msra.mxu0 0.0
        %456 = vmatpush.msra.mxu0 0.0
        %457 = vmatpush.msra.mxu0 0.0
        %458 = vmatpush.msra.mxu0 0.0
        %459 = vmatpush.msra.mxu0 0.0
        %460 = vmatpush.msra.mxu0 %v280
        %461 = vmatmul.f32.gmra.mxu0 %v398
        %v462 = vpop.f32.mrf.mxu0
        %v463 = vadd.f32 %v319, %v462
        %464 = vmatmul.f32.gmra.mxu0 %v401
        %v465 = vpop.f32.mrf.mxu0
        %v466 = vadd.f32 %v324, %v465
        %467 = vmatmul.f32.gmra.mxu0 %v404
        %v468 = vpop.f32.mrf.mxu0
        %v469 = vadd.f32 %v329, %v468
        %470 = vmatmul.f32.gmra.mxu0 %v407
        %v471 = vpop.f32.mrf.mxu0
        %v472 = vadd.f32 %v334, %v471
        %473 = vmatmul.f32.gmra.mxu0 %v410
        %v474 = vpop.f32.mrf.mxu0
        %v475 = vadd.f32 %v339, %v474
        %476 = vmatmul.f32.gmra.mxu0 %v413
        %v477 = vpop.f32.mrf.mxu0
        %v478 = vadd.f32 %v344, %v477
        %479 = vmatmul.f32.gmra.mxu0 %v416
        %v480 = vpop.f32.mrf.mxu0
        %v481 = vadd.f32 %v349, %v480
        %482 = vmatmul.f32.gmra.mxu0 %v419
        %v483 = vpop.f32.mrf.mxu0
        %v484 = vadd.f32 %v354, %v483
        %485 = vmatmul.f32.gmra.mxu0 %v422
        %v486 = vpop.f32.mrf.mxu0
        %v487 = vadd.f32 %v359, %v486
        %488 = vmatmul.f32.gmra.mxu0 %v425
        %v489 = vpop.f32.mrf.mxu0
        %v490 = vadd.f32 %v364, %v489
        %491 = vmatmul.f32.gmra.mxu0 %v428
        %v492 = vpop.f32.mrf.mxu0
        %v493 = vadd.f32 %v369, %v492
        %494 = vmatmul.f32.gmra.mxu0 %v431
        %v495 = vpop.f32.mrf.mxu0
        %v496 = vadd.f32 %v374, %v495
        %497 = vmatmul.f32.gmra.mxu0 %v434
        %v498 = vpop.f32.mrf.mxu0
        %v499 = vadd.f32 %v379, %v498
        %500 = vmatmul.f32.gmra.mxu0 %v437
        %v501 = vpop.f32.mrf.mxu0
        %v502 = vadd.f32 %v384, %v501
        %503 = vmatmul.f32.gmra.mxu0 %v440
        %v504 = vpop.f32.mrf.mxu0
        %v505 = vadd.f32 %v389, %v504
        %506 = vmatmul.f32.gmra.mxu0 %v443
        %v507 = vpop.f32.mrf.mxu0
        %v508 = vadd.f32 %v394, %v507
        %509 = vdwg.mxu0
        %510 = vmatpush.msra.mxu0 0.0
        %511 = vmatpush.msra.mxu0 0.0
        %512 = vmatpush.msra.mxu0 0.0
        %513 = vmatpush.msra.mxu0 0.0
        %514 = vmatpush.msra.mxu0 0.0
        %515 = vmatpush.msra.mxu0 0.0
        %516 = vmatpush.msra.mxu0 0.0
        %517 = vmatpush.msra.mxu0 0.0
        %518 = vmatpush.msra.mxu0 0.0
        %519 = vmatpush.msra.mxu0 0.0
        %520 = vmatpush.msra.mxu0 0.0
        %521 = vmatpush.msra.mxu0 0.0
        %522 = vmatpush.msra.mxu0 0.0
        %523 = vmatpush.msra.mxu0 0.0
        %524 = vmatpush.msra.mxu0 0.0
        %525 = vmatpush.msra.mxu0 %v281
        %526 = vmatmul.f32.gmra.mxu0 %v398
        %v527 = vpop.f32.mrf.mxu0
        %v528 = vadd.f32 %v319, %v527
        %529 = vmatmul.f32.gmra.mxu0 %v401
        %v530 = vpop.f32.mrf.mxu0
        %v531 = vadd.f32 %v324, %v530
        %532 = vmatmul.f32.gmra.mxu0 %v404
        %v533 = vpop.f32.mrf.mxu0
        %v534 = vadd.f32 %v329, %v533
        %535 = vmatmul.f32.gmra.mxu0 %v407
        %v536 = vpop.f32.mrf.mxu0
        %v537 = vadd.f32 %v334, %v536
        %538 = vmatmul.f32.gmra.mxu0 %v410
        %v539 = vpop.f32.mrf.mxu0
        %v540 = vadd.f32 %v339, %v539
        %541 = vmatmul.f32.gmra.mxu0 %v413
        %v542 = vpop.f32.mrf.mxu0
        %v543 = vadd.f32 %v344, %v542
        %544 = vmatmul.f32.gmra.mxu0 %v416
        %v545 = vpop.f32.mrf.mxu0
        %v546 = vadd.f32 %v349, %v545
        %547 = vmatmul.f32.gmra.mxu0 %v419
        %v548 = vpop.f32.mrf.mxu0
        %v549 = vadd.f32 %v354, %v548
        %550 = vmatmul.f32.gmra.mxu0 %v422
        %v551 = vpop.f32.mrf.mxu0
        %v552 = vadd.f32 %v359, %v551
        %553 = vmatmul.f32.gmra.mxu0 %v425
        %v554 = vpop.f32.mrf.mxu0
        %v555 = vadd.f32 %v364, %v554
        %556 = vmatmul.f32.gmra.mxu0 %v428
        %v557 = vpop.f32.mrf.mxu0
        %v558 = vadd.f32 %v369, %v557
        %559 = vmatmul.f32.gmra.mxu0 %v431
        %v560 = vpop.f32.mrf.mxu0
        %v561 = vadd.f32 %v374, %v560
        %562 = vmatmul.f32.gmra.mxu0 %v434
        %v563 = vpop.f32.mrf.mxu0
        %v564 = vadd.f32 %v379, %v563
        %565 = vmatmul.f32.gmra.mxu0 %v437
        %v566 = vpop.f32.mrf.mxu0
        %v567 = vadd.f32 %v384, %v566
        %568 = vmatmul.f32.gmra.mxu0 %v440
        %v569 = vpop.f32.mrf.mxu0
        %v570 = vadd.f32 %v389, %v569
        %571 = vmatmul.f32.gmra.mxu0 %v443
        %v572 = vpop.f32.mrf.mxu0
        %v573 = vadd.f32 %v394, %v572
        %574 = vdwg.mxu0
        %575 = vmatpush.msra.mxu0 0.0
        %576 = vmatpush.msra.mxu0 0.0
        %577 = vmatpush.msra.mxu0 0.0
        %578 = vmatpush.msra.mxu0 0.0
        %579 = vmatpush.msra.mxu0 0.0
        %580 = vmatpush.msra.mxu0 0.0
        %581 = vmatpush.msra.mxu0 0.0
        %582 = vmatpush.msra.mxu0 0.0
        %583 = vmatpush.msra.mxu0 0.0
        %584 = vmatpush.msra.mxu0 0.0
        %585 = vmatpush.msra.mxu0 0.0
        %586 = vmatpush.msra.mxu0 0.0
        %587 = vmatpush.msra.mxu0 0.0
        %588 = vmatpush.msra.mxu0 0.0
        %589 = vmatpush.msra.mxu0 0.0
        %590 = vmatpush.msra.mxu0 %v282
        %591 = vmatmul.f32.gmra.mxu0 %v398
        %v592 = vpop.f32.mrf.mxu0
        %v593 = vadd.f32 %v319, %v592
        %594 = vmatmul.f32.gmra.mxu0 %v401
        %v595 = vpop.f32.mrf.mxu0
        %v596 = vadd.f32 %v324, %v595
        %597 = vmatmul.f32.gmra.mxu0 %v404
        %v598 = vpop.f32.mrf.mxu0
        %v599 = vadd.f32 %v329, %v598
        %600 = vmatmul.f32.gmra.mxu0 %v407
        %v601 = vpop.f32.mrf.mxu0
        %v602 = vadd.f32 %v334, %v601
        %603 = vmatmul.f32.gmra.mxu0 %v410
        %v604 = vpop.f32.mrf.mxu0
        %v605 = vadd.f32 %v339, %v604
        %606 = vmatmul.f32.gmra.mxu0 %v413
        %v607 = vpop.f32.mrf.mxu0
        %v608 = vadd.f32 %v344, %v607
        %609 = vmatmul.f32.gmra.mxu0 %v416
        %v610 = vpop.f32.mrf.mxu0
        %v611 = vadd.f32 %v349, %v610
        %612 = vmatmul.f32.gmra.mxu0 %v419
        %v613 = vpop.f32.mrf.mxu0
        %v614 = vadd.f32 %v354, %v613
        %615 = vmatmul.f32.gmra.mxu0 %v422
        %v616 = vpop.f32.mrf.mxu0
        %v617 = vadd.f32 %v359, %v616
        %618 = vmatmul.f32.gmra.mxu0 %v425
        %v619 = vpop.f32.mrf.mxu0
        %v620 = vadd.f32 %v364, %v619
        %621 = vmatmul.f32.gmra.mxu0 %v428
        %v622 = vpop.f32.mrf.mxu0
        %v623 = vadd.f32 %v369, %v622
        %624 = vmatmul.f32.gmra.mxu0 %v431
        %v625 = vpop.f32.mrf.mxu0
        %v626 = vadd.f32 %v374, %v625
        %627 = vmatmul.f32.gmra.mxu0 %v434
        %v628 = vpop.f32.mrf.mxu0
        %v629 = vadd.f32 %v379, %v628
        %630 = vmatmul.f32.gmra.mxu0 %v437
        %v631 = vpop.f32.mrf.mxu0
        %v632 = vadd.f32 %v384, %v631
        %633 = vmatmul.f32.gmra.mxu0 %v440
        %v634 = vpop.f32.mrf.mxu0
        %v635 = vadd.f32 %v389, %v634
        %636 = vmatmul.f32.gmra.mxu0 %v443
        %v637 = vpop.f32.mrf.mxu0
        %v638 = vadd.f32 %v394, %v637
        %639 = vdwg.mxu0
        %640 = vmatpush.msra.mxu0 0.0
        %641 = vmatpush.msra.mxu0 0.0
        %642 = vmatpush.msra.mxu0 0.0
        %643 = vmatpush.msra.mxu0 0.0
        %644 = vmatpush.msra.mxu0 0.0
        %645 = vmatpush.msra.mxu0 0.0
        %646 = vmatpush.msra.mxu0 0.0
        %647 = vmatpush.msra.mxu0 0.0
        %648 = vmatpush.msra.mxu0 0.0
        %649 = vmatpush.msra.mxu0 0.0
        %650 = vmatpush.msra.mxu0 0.0
        %651 = vmatpush.msra.mxu0 0.0
        %652 = vmatpush.msra.mxu0 0.0
        %653 = vmatpush.msra.mxu0 0.0
        %654 = vmatpush.msra.mxu0 0.0
        %655 = vmatpush.msra.mxu0 %v283
        %656 = vmatmul.f32.gmra.mxu0 %v398
        %v657 = vpop.f32.mrf.mxu0
        %v658 = vadd.f32 %v319, %v657
        %659 = vmatmul.f32.gmra.mxu0 %v401
        %v660 = vpop.f32.mrf.mxu0
        %v661 = vadd.f32 %v324, %v660
        %662 = vmatmul.f32.gmra.mxu0 %v404
        %v663 = vpop.f32.mrf.mxu0
        %v664 = vadd.f32 %v329, %v663
        %665 = vmatmul.f32.gmra.mxu0 %v407
        %v666 = vpop.f32.mrf.mxu0
        %v667 = vadd.f32 %v334, %v666
        %668 = vmatmul.f32.gmra.mxu0 %v410
        %v669 = vpop.f32.mrf.mxu0
        %v670 = vadd.f32 %v339, %v669
        %671 = vmatmul.f32.gmra.mxu0 %v413
        %v672 = vpop.f32.mrf.mxu0
        %v673 = vadd.f32 %v344, %v672
        %674 = vmatmul.f32.gmra.mxu0 %v416
        %v675 = vpop.f32.mrf.mxu0
        %v676 = vadd.f32 %v349, %v675
        %677 = vmatmul.f32.gmra.mxu0 %v419
        %v678 = vpop.f32.mrf.mxu0
        %v679 = vadd.f32 %v354, %v678
        %680 = vmatmul.f32.gmra.mxu0 %v422
        %v681 = vpop.f32.mrf.mxu0
        %v682 = vadd.f32 %v359, %v681
        %683 = vmatmul.f32.gmra.mxu0 %v425
        %v684 = vpop.f32.mrf.mxu0
        %v685 = vadd.f32 %v364, %v684
        %686 = vmatmul.f32.gmra.mxu0 %v428
        %v687 = vpop.f32.mrf.mxu0
        %v688 = vadd.f32 %v369, %v687
        %689 = vmatmul.f32.gmra.mxu0 %v431
        %v690 = vpop.f32.mrf.mxu0
        %v691 = vadd.f32 %v374, %v690
        %692 = vmatmul.f32.gmra.mxu0 %v434
        %v693 = vpop.f32.mrf.mxu0
        %v694 = vadd.f32 %v379, %v693
        %695 = vmatmul.f32.gmra.mxu0 %v437
        %v696 = vpop.f32.mrf.mxu0
        %v697 = vadd.f32 %v384, %v696
        %698 = vmatmul.f32.gmra.mxu0 %v440
        %v699 = vpop.f32.mrf.mxu0
        %v700 = vadd.f32 %v389, %v699
        %701 = vmatmul.f32.gmra.mxu0 %v443
        %v702 = vpop.f32.mrf.mxu0
        %v703 = vadd.f32 %v394, %v702
        %704 = vdwg.mxu0
        %v705 = vmul.f32 %v463, 100.0
        %v706 = vmul.f32 %v528, 100.0
        %v707 = vmul.f32 %v593, 100.0
        %v708 = vmul.f32 %v658, 100.0
        %v709 = vmul.f32 %v466, 100.0
        %v710 = vmul.f32 %v531, 100.0
        %v711 = vmul.f32 %v596, 100.0
        %v712 = vmul.f32 %v661, 100.0
        %v713 = vmul.f32 %v469, 100.0
        %v714 = vmul.f32 %v534, 100.0
        %v715 = vmul.f32 %v599, 100.0
        %v716 = vmul.f32 %v664, 100.0
        %v717 = vmul.f32 %v472, 100.0
        %v718 = vmul.f32 %v537, 100.0
        %v719 = vmul.f32 %v602, 100.0
        %v720 = vmul.f32 %v667, 100.0
        %v721 = vmul.f32 %v475, 100.0
        %v722 = vmul.f32 %v540, 100.0
        %v723 = vmul.f32 %v605, 100.0
        %v724 = vmul.f32 %v670, 100.0
        %v725 = vmul.f32 %v478, 100.0
        %v726 = vmul.f32 %v543, 100.0
        %v727 = vmul.f32 %v608, 100.0
        %v728 = vmul.f32 %v673, 100.0
        %v729 = vmul.f32 %v481, 100.0
        %v730 = vmul.f32 %v546, 100.0
        %v731 = vmul.f32 %v611, 100.0
        %v732 = vmul.f32 %v676, 100.0
        %v733 = vmul.f32 %v484, 100.0
        %v734 = vmul.f32 %v549, 100.0
        %v735 = vmul.f32 %v614, 100.0
        %v736 = vmul.f32 %v679, 100.0
        %v737 = vmul.f32 %v487, 100.0
        %v738 = vmul.f32 %v552, 100.0
        %v739 = vmul.f32 %v617, 100.0
        %v740 = vmul.f32 %v682, 100.0
        %v741 = vmul.f32 %v490, 100.0
        %v742 = vmul.f32 %v555, 100.0
        %v743 = vmul.f32 %v620, 100.0
        %v744 = vmul.f32 %v685, 100.0
        %v745 = vmul.f32 %v493, 100.0
        %v746 = vmul.f32 %v558, 100.0
        %v747 = vmul.f32 %v623, 100.0
        %v748 = vmul.f32 %v688, 100.0
        %v749 = vmul.f32 %v496, 100.0
        %v750 = vmul.f32 %v561, 100.0
        %v751 = vmul.f32 %v626, 100.0
        %v752 = vmul.f32 %v691, 100.0
        %v753 = vmul.f32 %v499, 100.0
        %v754 = vmul.f32 %v564, 100.0
        %v755 = vmul.f32 %v629, 100.0
        %v756 = vmul.f32 %v694, 100.0
        %v757 = vmul.f32 %v502, 100.0
        %v758 = vmul.f32 %v567, 100.0
        %v759 = vmul.f32 %v632, 100.0
        %v760 = vmul.f32 %v697, 100.0
        %v761 = vmul.f32 %v505, 100.0
        %v762 = vmul.f32 %v570, 100.0
        %v763 = vmul.f32 %v635, 100.0
        %v764 = vmul.f32 %v700, 100.0
        %v765 = vmul.f32 %v508, 100.0
        %v766 = vmul.f32 %v573, 100.0
        %v767 = vmul.f32 %v638, 100.0
        %v768 = vmul.f32 %v703, 100.0
        %v769 = vmax.f32 %v463, 0.0
        %v770 = vmax.f32 %v528, 0.0
        %v771 = vmax.f32 %v593, 0.0
        %v772 = vmax.f32 %v658, 0.0
        %v773 = vmax.f32 %v466, 0.0
        %v774 = vmax.f32 %v531, 0.0
        %v775 = vmax.f32 %v596, 0.0
        %v776 = vmax.f32 %v661, 0.0
        %v777 = vmax.f32 %v469, 0.0
        %v778 = vmax.f32 %v534, 0.0
        %v779 = vmax.f32 %v599, 0.0
        %v780 = vmax.f32 %v664, 0.0
        %v781 = vmax.f32 %v472, 0.0
        %v782 = vmax.f32 %v537, 0.0
        %v783 = vmax.f32 %v602, 0.0
        %v784 = vmax.f32 %v667, 0.0
        %v785 = vmax.f32 %v475, 0.0
        %v786 = vmax.f32 %v540, 0.0
        %v787 = vmax.f32 %v605, 0.0
        %v788 = vmax.f32 %v670, 0.0
        %v789 = vmax.f32 %v478, 0.0
        %v790 = vmax.f32 %v543, 0.0
        %v791 = vmax.f32 %v608, 0.0
        %v792 = vmax.f32 %v673, 0.0
        %v793 = vmax.f32 %v481, 0.0
        %v794 = vmax.f32 %v546, 0.0
        %v795 = vmax.f32 %v611, 0.0
        %v796 = vmax.f32 %v676, 0.0
        %v797 = vmax.f32 %v484, 0.0
        %v798 = vmax.f32 %v549, 0.0
        %v799 = vmax.f32 %v614, 0.0
        %v800 = vmax.f32 %v679, 0.0
        %v801 = vmax.f32 %v487, 0.0
        %v802 = vmax.f32 %v552, 0.0
        %v803 = vmax.f32 %v617, 0.0
        %v804 = vmax.f32 %v682, 0.0
        %v805 = vmax.f32 %v490, 0.0
        %v806 = vmax.f32 %v555, 0.0
        %v807 = vmax.f32 %v620, 0.0
        %v808 = vmax.f32 %v685, 0.0
        %v809 = vmax.f32 %v493, 0.0
        %v810 = vmax.f32 %v558, 0.0
        %v811 = vmax.f32 %v623, 0.0
        %v812 = vmax.f32 %v688, 0.0
        %v813 = vmax.f32 %v496, 0.0
        %v814 = vmax.f32 %v561, 0.0
        %v815 = vmax.f32 %v626, 0.0
        %v816 = vmax.f32 %v691, 0.0
        %v817 = vmax.f32 %v499, 0.0
        %v818 = vmax.f32 %v564, 0.0
        %v819 = vmax.f32 %v629, 0.0
        %v820 = vmax.f32 %v694, 0.0
        %v821 = vmax.f32 %v502, 0.0
        %v822 = vmax.f32 %v567, 0.0
        %v823 = vmax.f32 %v632, 0.0
        %v824 = vmax.f32 %v697, 0.0
        %v825 = vmax.f32 %v505, 0.0
        %v826 = vmax.f32 %v570, 0.0
        %v827 = vmax.f32 %v635, 0.0
        %v828 = vmax.f32 %v700, 0.0
        %v829 = vmax.f32 %v508, 0.0
        %v830 = vmax.f32 %v573, 0.0
        %v831 = vmax.f32 %v638, 0.0
        %v832 = vmax.f32 %v703, 0.0
        %v833 = vand.u32 2147483647, %v705
        %v834 = vand.u32 2147483647, %v706
        %v835 = vand.u32 2147483647, %v707
        %v836 = vand.u32 2147483647, %v708
        %v837 = vand.u32 2147483647, %v709
        %v838 = vand.u32 2147483647, %v710
        %v839 = vand.u32 2147483647, %v711
        %v840 = vand.u32 2147483647, %v712
        %v841 = vand.u32 2147483647, %v713
        %v842 = vand.u32 2147483647, %v714
        %v843 = vand.u32 2147483647, %v715
        %v844 = vand.u32 2147483647, %v716
        %v845 = vand.u32 2147483647, %v717
        %v846 = vand.u32 2147483647, %v718
        %v847 = vand.u32 2147483647, %v719
        %v848 = vand.u32 2147483647, %v720
        %v849 = vand.u32 2147483647, %v721
        %v850 = vand.u32 2147483647, %v722
        %v851 = vand.u32 2147483647, %v723
        %v852 = vand.u32 2147483647, %v724
        %v853 = vand.u32 2147483647, %v725
        %v854 = vand.u32 2147483647, %v726
        %v855 = vand.u32 2147483647, %v727
        %v856 = vand.u32 2147483647, %v728
        %v857 = vand.u32 2147483647, %v729
        %v858 = vand.u32 2147483647, %v730
        %v859 = vand.u32 2147483647, %v731
        %v860 = vand.u32 2147483647, %v732
        %v861 = vand.u32 2147483647, %v733
        %v862 = vand.u32 2147483647, %v734
        %v863 = vand.u32 2147483647, %v735
        %v864 = vand.u32 2147483647, %v736
        %v865 = vand.u32 2147483647, %v737
        %v866 = vand.u32 2147483647, %v738
        %v867 = vand.u32 2147483647, %v739
        %v868 = vand.u32 2147483647, %v740
        %v869 = vand.u32 2147483647, %v741
        %v870 = vand.u32 2147483647, %v742
        %v871 = vand.u32 2147483647, %v743
        %v872 = vand.u32 2147483647, %v744
        %v873 = vand.u32 2147483647, %v745
        %v874 = vand.u32 2147483647, %v746
        %v875 = vand.u32 2147483647, %v747
        %v876 = vand.u32 2147483647, %v748
        %v877 = vand.u32 2147483647, %v749
        %v878 = vand.u32 2147483647, %v750
        %v879 = vand.u32 2147483647, %v751
        %v880 = vand.u32 2147483647, %v752
        %v881 = vand.u32 2147483647, %v753
        %v882 = vand.u32 2147483647, %v754
        %v883 = vand.u32 2147483647, %v755
        %v884 = vand.u32 2147483647, %v756
        %v885 = vand.u32 2147483647, %v757
        %v886 = vand.u32 2147483647, %v758
        %v887 = vand.u32 2147483647, %v759
        %v888 = vand.u32 2147483647, %v760
        %v889 = vand.u32 2147483647, %v761
        %v890 = vand.u32 2147483647, %v762
        %v891 = vand.u32 2147483647, %v763
        %v892 = vand.u32 2147483647, %v764
        %v893 = vand.u32 2147483647, %v765
        %v894 = vand.u32 2147483647, %v766
        %v895 = vand.u32 2147483647, %v767
        %v896 = vand.u32 2147483647, %v768
        %v897 = vsub.f32 0.0, %v833
        %v898 = vsub.f32 0.0, %v834
        %v899 = vsub.f32 0.0, %v835
        %v900 = vsub.f32 0.0, %v836
        %v901 = vsub.f32 0.0, %v837
        %v902 = vsub.f32 0.0, %v838
        %v903 = vsub.f32 0.0, %v839
        %v904 = vsub.f32 0.0, %v840
        %v905 = vsub.f32 0.0, %v841
        %v906 = vsub.f32 0.0, %v842
        %v907 = vsub.f32 0.0, %v843
        %v908 = vsub.f32 0.0, %v844
        %v909 = vsub.f32 0.0, %v845
        %v910 = vsub.f32 0.0, %v846
        %v911 = vsub.f32 0.0, %v847
        %v912 = vsub.f32 0.0, %v848
        %v913 = vsub.f32 0.0, %v849
        %v914 = vsub.f32 0.0, %v850
        %v915 = vsub.f32 0.0, %v851
        %v916 = vsub.f32 0.0, %v852
        %v917 = vsub.f32 0.0, %v853
        %v918 = vsub.f32 0.0, %v854
        %v919 = vsub.f32 0.0, %v855
        %v920 = vsub.f32 0.0, %v856
        %v921 = vsub.f32 0.0, %v857
        %v922 = vsub.f32 0.0, %v858
        %v923 = vsub.f32 0.0, %v859
        %v924 = vsub.f32 0.0, %v860
        %v925 = vsub.f32 0.0, %v861
        %v926 = vsub.f32 0.0, %v862
        %v927 = vsub.f32 0.0, %v863
        %v928 = vsub.f32 0.0, %v864
        %v929 = vsub.f32 0.0, %v865
        %v930 = vsub.f32 0.0, %v866
        %v931 = vsub.f32 0.0, %v867
        %v932 = vsub.f32 0.0, %v868
        %v933 = vsub.f32 0.0, %v869
        %v934 = vsub.f32 0.0, %v870
        %v935 = vsub.f32 0.0, %v871
        %v936 = vsub.f32 0.0, %v872
        %v937 = vsub.f32 0.0, %v873
        %v938 = vsub.f32 0.0, %v874
        %v939 = vsub.f32 0.0, %v875
        %v940 = vsub.f32 0.0, %v876
        %v941 = vsub.f32 0.0, %v877
        %v942 = vsub.f32 0.0, %v878
        %v943 = vsub.f32 0.0, %v879
        %v944 = vsub.f32 0.0, %v880
        %v945 = vsub.f32 0.0, %v881
        %v946 = vsub.f32 0.0, %v882
        %v947 = vsub.f32 0.0, %v883
        %v948 = vsub.f32 0.0, %v884
        %v949 = vsub.f32 0.0, %v885
        %v950 = vsub.f32 0.0, %v886
        %v951 = vsub.f32 0.0, %v887
        %v952 = vsub.f32 0.0, %v888
        %v953 = vsub.f32 0.0, %v889
        %v954 = vsub.f32 0.0, %v890
        %v955 = vsub.f32 0.0, %v891
        %v956 = vsub.f32 0.0, %v892
        %v957 = vsub.f32 0.0, %v893
        %v958 = vsub.f32 0.0, %v894
        %v959 = vsub.f32 0.0, %v895
        %v960 = vsub.f32 0.0, %v896
        %v961 = vmul.f32 %v897, 1.442695
        %v962 = vpow.pop %v961
        %v963 = vmul.f32 %v898, 1.442695
        %v964 = vpow.pop %v963
        %v965 = vmul.f32 %v899, 1.442695
        %v966 = vpow.pop %v965
        %v967 = vmul.f32 %v900, 1.442695
        %v968 = vpow.pop %v967
        %v969 = vmul.f32 %v901, 1.442695
        %v970 = vpow.pop %v969
        %v971 = vmul.f32 %v902, 1.442695
        %v972 = vpow.pop %v971
        %v973 = vmul.f32 %v903, 1.442695
        %v974 = vpow.pop %v973
        %v975 = vmul.f32 %v904, 1.442695
        %v976 = vpow.pop %v975
        %v977 = vmul.f32 %v905, 1.442695
        %v978 = vpow.pop %v977
        %v979 = vmul.f32 %v906, 1.442695
        %v980 = vpow.pop %v979
        %v981 = vmul.f32 %v907, 1.442695
        %v982 = vpow.pop %v981
        %v983 = vmul.f32 %v908, 1.442695
        %v984 = vpow.pop %v983
        %v985 = vmul.f32 %v909, 1.442695
        %v986 = vpow.pop %v985
        %v987 = vmul.f32 %v910, 1.442695
        %v988 = vpow.pop %v987
        %v989 = vmul.f32 %v911, 1.442695
        %v990 = vpow.pop %v989
        %v991 = vmul.f32 %v912, 1.442695
        %v992 = vpow.pop %v991
        %v993 = vmul.f32 %v913, 1.442695
        %v994 = vpow.pop %v993
        %v995 = vmul.f32 %v914, 1.442695
        %v996 = vpow.pop %v995
        %v997 = vmul.f32 %v915, 1.442695
        %v998 = vpow.pop %v997
        %v999 = vmul.f32 %v916, 1.442695
        %v1000 = vpow.pop %v999
        %v1001 = vmul.f32 %v917, 1.442695
        %v1002 = vpow.pop %v1001
        %v1003 = vmul.f32 %v918, 1.442695
        %v1004 = vpow.pop %v1003
        %v1005 = vmul.f32 %v919, 1.442695
        %v1006 = vpow.pop %v1005
        %v1007 = vmul.f32 %v920, 1.442695
        %v1008 = vpow.pop %v1007
        %v1009 = vmul.f32 %v921, 1.442695
        %v1010 = vpow.pop %v1009
        %v1011 = vmul.f32 %v922, 1.442695
        %v1012 = vpow.pop %v1011
        %v1013 = vmul.f32 %v923, 1.442695
        %v1014 = vpow.pop %v1013
        %v1015 = vmul.f32 %v924, 1.442695
        %v1016 = vpow.pop %v1015
        %v1017 = vmul.f32 %v925, 1.442695
        %v1018 = vpow.pop %v1017
        %v1019 = vmul.f32 %v926, 1.442695
        %v1020 = vpow.pop %v1019
        %v1021 = vmul.f32 %v927, 1.442695
        %v1022 = vpow.pop %v1021
        %v1023 = vmul.f32 %v928, 1.442695
        %v1024 = vpow.pop %v1023
        %v1025 = vmul.f32 %v929, 1.442695
        %v1026 = vpow.pop %v1025
        %v1027 = vmul.f32 %v930, 1.442695
        %v1028 = vpow.pop %v1027
        %v1029 = vmul.f32 %v931, 1.442695
        %v1030 = vpow.pop %v1029
        %v1031 = vmul.f32 %v932, 1.442695
        %v1032 = vpow.pop %v1031
        %v1033 = vmul.f32 %v933, 1.442695
        %v1034 = vpow.pop %v1033
        %v1035 = vmul.f32 %v934, 1.442695
        %v1036 = vpow.pop %v1035
        %v1037 = vmul.f32 %v935, 1.442695
        %v1038 = vpow.pop %v1037
        %v1039 = vmul.f32 %v936, 1.442695
        %v1040 = vpow.pop %v1039
        %v1041 = vmul.f32 %v937, 1.442695
        %v1042 = vpow.pop %v1041
        %v1043 = vmul.f32 %v938, 1.442695
        %v1044 = vpow.pop %v1043
        %v1045 = vmul.f32 %v939, 1.442695
        %v1046 = vpow.pop %v1045
        %v1047 = vmul.f32 %v940, 1.442695
        %v1048 = vpow.pop %v1047
        %v1049 = vmul.f32 %v941, 1.442695
        %v1050 = vpow.pop %v1049
        %v1051 = vmul.f32 %v942, 1.442695
        %v1052 = vpow.pop %v1051
        %v1053 = vmul.f32 %v943, 1.442695
        %v1054 = vpow.pop %v1053
        %v1055 = vmul.f32 %v944, 1.442695
        %v1056 = vpow.pop %v1055
        %v1057 = vmul.f32 %v945, 1.442695
        %v1058 = vpow.pop %v1057
        %v1059 = vmul.f32 %v946, 1.442695
        %v1060 = vpow.pop %v1059
        %v1061 = vmul.f32 %v947, 1.442695
        %v1062 = vpow.pop %v1061
        %v1063 = vmul.f32 %v948, 1.442695
        %v1064 = vpow.pop %v1063
        %v1065 = vmul.f32 %v949, 1.442695
        %v1066 = vpow.pop %v1065
        %v1067 = vmul.f32 %v950, 1.442695
        %v1068 = vpow.pop %v1067
        %v1069 = vmul.f32 %v951, 1.442695
        %v1070 = vpow.pop %v1069
        %v1071 = vmul.f32 %v952, 1.442695
        %v1072 = vpow.pop %v1071
        %v1073 = vmul.f32 %v953, 1.442695
        %v1074 = vpow.pop %v1073
        %v1075 = vmul.f32 %v954, 1.442695
        %v1076 = vpow.pop %v1075
        %v1077 = vmul.f32 %v955, 1.442695
        %v1078 = vpow.pop %v1077
        %v1079 = vmul.f32 %v956, 1.442695
        %v1080 = vpow.pop %v1079
        %v1081 = vmul.f32 %v957, 1.442695
        %v1082 = vpow.pop %v1081
        %v1083 = vmul.f32 %v958, 1.442695
        %v1084 = vpow.pop %v1083
        %v1085 = vmul.f32 %v959, 1.442695
        %v1086 = vpow.pop %v1085
        %v1087 = vmul.f32 %v960, 1.442695
        %v1088 = vpow.pop %v1087
        %v1089 = vadd.f32 %v962, 1.0
        %v1090 = vlog2.pop %v1089
        %v1091 = vmul.f32 %v1090, 0.6931472
        %v1092 = vmul.f32 -0.5, %v962
        %v1093 = vadd.f32 %v1092, 1.0
        %v1094 = vmul.f32 %v1093, %v962
        %v1095 = vand.u32 2147483647, %v962
        %vm1096 = vcmp.lt.f32.partialorder %v1095, 0.0004427343
        %v1097 = vsel %vm1096, %v1094, %v1091
        %v1098 = vadd.f32 %v964, 1.0
        %v1099 = vlog2.pop %v1098
        %v1100 = vmul.f32 %v1099, 0.6931472
        %v1101 = vmul.f32 -0.5, %v964
        %v1102 = vadd.f32 %v1101, 1.0
        %v1103 = vmul.f32 %v1102, %v964
        %v1104 = vand.u32 2147483647, %v964
        %vm1105 = vcmp.lt.f32.partialorder %v1104, 0.0004427343
        %v1106 = vsel %vm1105, %v1103, %v1100
        %v1107 = vadd.f32 %v966, 1.0
        %v1108 = vlog2.pop %v1107
        %v1109 = vmul.f32 %v1108, 0.6931472
        %v1110 = vmul.f32 -0.5, %v966
        %v1111 = vadd.f32 %v1110, 1.0
        %v1112 = vmul.f32 %v1111, %v966
        %v1113 = vand.u32 2147483647, %v966
        %vm1114 = vcmp.lt.f32.partialorder %v1113, 0.0004427343
        %v1115 = vsel %vm1114, %v1112, %v1109
        %v1116 = vadd.f32 %v968, 1.0
        %v1117 = vlog2.pop %v1116
        %v1118 = vmul.f32 %v1117, 0.6931472
        %v1119 = vmul.f32 -0.5, %v968
        %v1120 = vadd.f32 %v1119, 1.0
        %v1121 = vmul.f32 %v1120, %v968
        %v1122 = vand.u32 2147483647, %v968
        %vm1123 = vcmp.lt.f32.partialorder %v1122, 0.0004427343
        %v1124 = vsel %vm1123, %v1121, %v1118
        %v1125 = vadd.f32 %v970, 1.0
        %v1126 = vlog2.pop %v1125
        %v1127 = vmul.f32 %v1126, 0.6931472
        %v1128 = vmul.f32 -0.5, %v970
        %v1129 = vadd.f32 %v1128, 1.0
        %v1130 = vmul.f32 %v1129, %v970
        %v1131 = vand.u32 2147483647, %v970
        %vm1132 = vcmp.lt.f32.partialorder %v1131, 0.0004427343
        %v1133 = vsel %vm1132, %v1130, %v1127
        %v1134 = vadd.f32 %v972, 1.0
        %v1135 = vlog2.pop %v1134
        %v1136 = vmul.f32 %v1135, 0.6931472
        %v1137 = vmul.f32 -0.5, %v972
        %v1138 = vadd.f32 %v1137, 1.0
        %v1139 = vmul.f32 %v1138, %v972
        %v1140 = vand.u32 2147483647, %v972
        %vm1141 = vcmp.lt.f32.partialorder %v1140, 0.0004427343
        %v1142 = vsel %vm1141, %v1139, %v1136
        %v1143 = vadd.f32 %v974, 1.0
        %v1144 = vlog2.pop %v1143
        %v1145 = vmul.f32 %v1144, 0.6931472
        %v1146 = vmul.f32 -0.5, %v974
        %v1147 = vadd.f32 %v1146, 1.0
        %v1148 = vmul.f32 %v1147, %v974
        %v1149 = vand.u32 2147483647, %v974
        %vm1150 = vcmp.lt.f32.partialorder %v1149, 0.0004427343
        %v1151 = vsel %vm1150, %v1148, %v1145
        %v1152 = vadd.f32 %v976, 1.0
        %v1153 = vlog2.pop %v1152
        %v1154 = vmul.f32 %v1153, 0.6931472
        %v1155 = vmul.f32 -0.5, %v976
        %v1156 = vadd.f32 %v1155, 1.0
        %v1157 = vmul.f32 %v1156, %v976
        %v1158 = vand.u32 2147483647, %v976
        %vm1159 = vcmp.lt.f32.partialorder %v1158, 0.0004427343
        %v1160 = vsel %vm1159, %v1157, %v1154
        %v1161 = vadd.f32 %v978, 1.0
        %v1162 = vlog2.pop %v1161
        %v1163 = vmul.f32 %v1162, 0.6931472
        %v1164 = vmul.f32 -0.5, %v978
        %v1165 = vadd.f32 %v1164, 1.0
        %v1166 = vmul.f32 %v1165, %v978
        %v1167 = vand.u32 2147483647, %v978
        %vm1168 = vcmp.lt.f32.partialorder %v1167, 0.0004427343
        %v1169 = vsel %vm1168, %v1166, %v1163
        %v1170 = vadd.f32 %v980, 1.0
        %v1171 = vlog2.pop %v1170
        %v1172 = vmul.f32 %v1171, 0.6931472
        %v1173 = vmul.f32 -0.5, %v980
        %v1174 = vadd.f32 %v1173, 1.0
        %v1175 = vmul.f32 %v1174, %v980
        %v1176 = vand.u32 2147483647, %v980
        %vm1177 = vcmp.lt.f32.partialorder %v1176, 0.0004427343
        %v1178 = vsel %vm1177, %v1175, %v1172
        %v1179 = vadd.f32 %v982, 1.0
        %v1180 = vlog2.pop %v1179
        %v1181 = vmul.f32 %v1180, 0.6931472
        %v1182 = vmul.f32 -0.5, %v982
        %v1183 = vadd.f32 %v1182, 1.0
        %v1184 = vmul.f32 %v1183, %v982
        %v1185 = vand.u32 2147483647, %v982
        %vm1186 = vcmp.lt.f32.partialorder %v1185, 0.0004427343
        %v1187 = vsel %vm1186, %v1184, %v1181
        %v1188 = vadd.f32 %v984, 1.0
        %v1189 = vlog2.pop %v1188
        %v1190 = vmul.f32 %v1189, 0.6931472
        %v1191 = vmul.f32 -0.5, %v984
        %v1192 = vadd.f32 %v1191, 1.0
        %v1193 = vmul.f32 %v1192, %v984
        %v1194 = vand.u32 2147483647, %v984
        %vm1195 = vcmp.lt.f32.partialorder %v1194, 0.0004427343
        %v1196 = vsel %vm1195, %v1193, %v1190
        %v1197 = vadd.f32 %v986, 1.0
        %v1198 = vlog2.pop %v1197
        %v1199 = vmul.f32 %v1198, 0.6931472
        %v1200 = vmul.f32 -0.5, %v986
        %v1201 = vadd.f32 %v1200, 1.0
        %v1202 = vmul.f32 %v1201, %v986
        %v1203 = vand.u32 2147483647, %v986
        %vm1204 = vcmp.lt.f32.partialorder %v1203, 0.0004427343
        %v1205 = vsel %vm1204, %v1202, %v1199
        %v1206 = vadd.f32 %v988, 1.0
        %v1207 = vlog2.pop %v1206
        %v1208 = vmul.f32 %v1207, 0.6931472
        %v1209 = vmul.f32 -0.5, %v988
        %v1210 = vadd.f32 %v1209, 1.0
        %v1211 = vmul.f32 %v1210, %v988
        %v1212 = vand.u32 2147483647, %v988
        %vm1213 = vcmp.lt.f32.partialorder %v1212, 0.0004427343
        %v1214 = vsel %vm1213, %v1211, %v1208
        %v1215 = vadd.f32 %v990, 1.0
        %v1216 = vlog2.pop %v1215
        %v1217 = vmul.f32 %v1216, 0.6931472
        %v1218 = vmul.f32 -0.5, %v990
        %v1219 = vadd.f32 %v1218, 1.0
        %v1220 = vmul.f32 %v1219, %v990
        %v1221 = vand.u32 2147483647, %v990
        %vm1222 = vcmp.lt.f32.partialorder %v1221, 0.0004427343
        %v1223 = vsel %vm1222, %v1220, %v1217
        %v1224 = vadd.f32 %v992, 1.0
        %v1225 = vlog2.pop %v1224
        %v1226 = vmul.f32 %v1225, 0.6931472
        %v1227 = vmul.f32 -0.5, %v992
        %v1228 = vadd.f32 %v1227, 1.0
        %v1229 = vmul.f32 %v1228, %v992
        %v1230 = vand.u32 2147483647, %v992
        %vm1231 = vcmp.lt.f32.partialorder %v1230, 0.0004427343
        %v1232 = vsel %vm1231, %v1229, %v1226
        %v1233 = vadd.f32 %v994, 1.0
        %v1234 = vlog2.pop %v1233
        %v1235 = vmul.f32 %v1234, 0.6931472
        %v1236 = vmul.f32 -0.5, %v994
        %v1237 = vadd.f32 %v1236, 1.0
        %v1238 = vmul.f32 %v1237, %v994
        %v1239 = vand.u32 2147483647, %v994
        %vm1240 = vcmp.lt.f32.partialorder %v1239, 0.0004427343
        %v1241 = vsel %vm1240, %v1238, %v1235
        %v1242 = vadd.f32 %v996, 1.0
        %v1243 = vlog2.pop %v1242
        %v1244 = vmul.f32 %v1243, 0.6931472
        %v1245 = vmul.f32 -0.5, %v996
        %v1246 = vadd.f32 %v1245, 1.0
        %v1247 = vmul.f32 %v1246, %v996
        %v1248 = vand.u32 2147483647, %v996
        %vm1249 = vcmp.lt.f32.partialorder %v1248, 0.0004427343
        %v1250 = vsel %vm1249, %v1247, %v1244
        %v1251 = vadd.f32 %v998, 1.0
        %v1252 = vlog2.pop %v1251
        %v1253 = vmul.f32 %v1252, 0.6931472
        %v1254 = vmul.f32 -0.5, %v998
        %v1255 = vadd.f32 %v1254, 1.0
        %v1256 = vmul.f32 %v1255, %v998
        %v1257 = vand.u32 2147483647, %v998
        %vm1258 = vcmp.lt.f32.partialorder %v1257, 0.0004427343
        %v1259 = vsel %vm1258, %v1256, %v1253
        %v1260 = vadd.f32 %v1000, 1.0
        %v1261 = vlog2.pop %v1260
        %v1262 = vmul.f32 %v1261, 0.6931472
        %v1263 = vmul.f32 -0.5, %v1000
        %v1264 = vadd.f32 %v1263, 1.0
        %v1265 = vmul.f32 %v1264, %v1000
        %v1266 = vand.u32 2147483647, %v1000
        %vm1267 = vcmp.lt.f32.partialorder %v1266, 0.0004427343
        %v1268 = vsel %vm1267, %v1265, %v1262
        %v1269 = vadd.f32 %v1002, 1.0
        %v1270 = vlog2.pop %v1269
        %v1271 = vmul.f32 %v1270, 0.6931472
        %v1272 = vmul.f32 -0.5, %v1002
        %v1273 = vadd.f32 %v1272, 1.0
        %v1274 = vmul.f32 %v1273, %v1002
        %v1275 = vand.u32 2147483647, %v1002
        %vm1276 = vcmp.lt.f32.partialorder %v1275, 0.0004427343
        %v1277 = vsel %vm1276, %v1274, %v1271
        %v1278 = vadd.f32 %v1004, 1.0
        %v1279 = vlog2.pop %v1278
        %v1280 = vmul.f32 %v1279, 0.6931472
        %v1281 = vmul.f32 -0.5, %v1004
        %v1282 = vadd.f32 %v1281, 1.0
        %v1283 = vmul.f32 %v1282, %v1004
        %v1284 = vand.u32 2147483647, %v1004
        %vm1285 = vcmp.lt.f32.partialorder %v1284, 0.0004427343
        %v1286 = vsel %vm1285, %v1283, %v1280
        %v1287 = vadd.f32 %v1006, 1.0
        %v1288 = vlog2.pop %v1287
        %v1289 = vmul.f32 %v1288, 0.6931472
        %v1290 = vmul.f32 -0.5, %v1006
        %v1291 = vadd.f32 %v1290, 1.0
        %v1292 = vmul.f32 %v1291, %v1006
        %v1293 = vand.u32 2147483647, %v1006
        %vm1294 = vcmp.lt.f32.partialorder %v1293, 0.0004427343
        %v1295 = vsel %vm1294, %v1292, %v1289
        %v1296 = vadd.f32 %v1008, 1.0
        %v1297 = vlog2.pop %v1296
        %v1298 = vmul.f32 %v1297, 0.6931472
        %v1299 = vmul.f32 -0.5, %v1008
        %v1300 = vadd.f32 %v1299, 1.0
        %v1301 = vmul.f32 %v1300, %v1008
        %v1302 = vand.u32 2147483647, %v1008
        %vm1303 = vcmp.lt.f32.partialorder %v1302, 0.0004427343
        %v1304 = vsel %vm1303, %v1301, %v1298
        %v1305 = vadd.f32 %v1010, 1.0
        %v1306 = vlog2.pop %v1305
        %v1307 = vmul.f32 %v1306, 0.6931472
        %v1308 = vmul.f32 -0.5, %v1010
        %v1309 = vadd.f32 %v1308, 1.0
        %v1310 = vmul.f32 %v1309, %v1010
        %v1311 = vand.u32 2147483647, %v1010
        %vm1312 = vcmp.lt.f32.partialorder %v1311, 0.0004427343
        %v1313 = vsel %vm1312, %v1310, %v1307
        %v1314 = vadd.f32 %v1012, 1.0
        %v1315 = vlog2.pop %v1314
        %v1316 = vmul.f32 %v1315, 0.6931472
        %v1317 = vmul.f32 -0.5, %v1012
        %v1318 = vadd.f32 %v1317, 1.0
        %v1319 = vmul.f32 %v1318, %v1012
        %v1320 = vand.u32 2147483647, %v1012
        %vm1321 = vcmp.lt.f32.partialorder %v1320, 0.0004427343
        %v1322 = vsel %vm1321, %v1319, %v1316
        %v1323 = vadd.f32 %v1014, 1.0
        %v1324 = vlog2.pop %v1323
        %v1325 = vmul.f32 %v1324, 0.6931472
        %v1326 = vmul.f32 -0.5, %v1014
        %v1327 = vadd.f32 %v1326, 1.0
        %v1328 = vmul.f32 %v1327, %v1014
        %v1329 = vand.u32 2147483647, %v1014
        %vm1330 = vcmp.lt.f32.partialorder %v1329, 0.0004427343
        %v1331 = vsel %vm1330, %v1328, %v1325
        %v1332 = vadd.f32 %v1016, 1.0
        %v1333 = vlog2.pop %v1332
        %v1334 = vmul.f32 %v1333, 0.6931472
        %v1335 = vmul.f32 -0.5, %v1016
        %v1336 = vadd.f32 %v1335, 1.0
        %v1337 = vmul.f32 %v1336, %v1016
        %v1338 = vand.u32 2147483647, %v1016
        %vm1339 = vcmp.lt.f32.partialorder %v1338, 0.0004427343
        %v1340 = vsel %vm1339, %v1337, %v1334
        %v1341 = vadd.f32 %v1018, 1.0
        %v1342 = vlog2.pop %v1341
        %v1343 = vmul.f32 %v1342, 0.6931472
        %v1344 = vmul.f32 -0.5, %v1018
        %v1345 = vadd.f32 %v1344, 1.0
        %v1346 = vmul.f32 %v1345, %v1018
        %v1347 = vand.u32 2147483647, %v1018
        %vm1348 = vcmp.lt.f32.partialorder %v1347, 0.0004427343
        %v1349 = vsel %vm1348, %v1346, %v1343
        %v1350 = vadd.f32 %v1020, 1.0
        %v1351 = vlog2.pop %v1350
        %v1352 = vmul.f32 %v1351, 0.6931472
        %v1353 = vmul.f32 -0.5, %v1020
        %v1354 = vadd.f32 %v1353, 1.0
        %v1355 = vmul.f32 %v1354, %v1020
        %v1356 = vand.u32 2147483647, %v1020
        %vm1357 = vcmp.lt.f32.partialorder %v1356, 0.0004427343
        %v1358 = vsel %vm1357, %v1355, %v1352
        %v1359 = vadd.f32 %v1022, 1.0
        %v1360 = vlog2.pop %v1359
        %v1361 = vmul.f32 %v1360, 0.6931472
        %v1362 = vmul.f32 -0.5, %v1022
        %v1363 = vadd.f32 %v1362, 1.0
        %v1364 = vmul.f32 %v1363, %v1022
        %v1365 = vand.u32 2147483647, %v1022
        %vm1366 = vcmp.lt.f32.partialorder %v1365, 0.0004427343
        %v1367 = vsel %vm1366, %v1364, %v1361
        %v1368 = vadd.f32 %v1024, 1.0
        %v1369 = vlog2.pop %v1368
        %v1370 = vmul.f32 %v1369, 0.6931472
        %v1371 = vmul.f32 -0.5, %v1024
        %v1372 = vadd.f32 %v1371, 1.0
        %v1373 = vmul.f32 %v1372, %v1024
        %v1374 = vand.u32 2147483647, %v1024
        %vm1375 = vcmp.lt.f32.partialorder %v1374, 0.0004427343
        %v1376 = vsel %vm1375, %v1373, %v1370
        %v1377 = vadd.f32 %v1026, 1.0
        %v1378 = vlog2.pop %v1377
        %v1379 = vmul.f32 %v1378, 0.6931472
        %v1380 = vmul.f32 -0.5, %v1026
        %v1381 = vadd.f32 %v1380, 1.0
        %v1382 = vmul.f32 %v1381, %v1026
        %v1383 = vand.u32 2147483647, %v1026
        %vm1384 = vcmp.lt.f32.partialorder %v1383, 0.0004427343
        %v1385 = vsel %vm1384, %v1382, %v1379
        %v1386 = vadd.f32 %v1028, 1.0
        %v1387 = vlog2.pop %v1386
        %v1388 = vmul.f32 %v1387, 0.6931472
        %v1389 = vmul.f32 -0.5, %v1028
        %v1390 = vadd.f32 %v1389, 1.0
        %v1391 = vmul.f32 %v1390, %v1028
        %v1392 = vand.u32 2147483647, %v1028
        %vm1393 = vcmp.lt.f32.partialorder %v1392, 0.0004427343
        %v1394 = vsel %vm1393, %v1391, %v1388
        %v1395 = vadd.f32 %v1030, 1.0
        %v1396 = vlog2.pop %v1395
        %v1397 = vmul.f32 %v1396, 0.6931472
        %v1398 = vmul.f32 -0.5, %v1030
        %v1399 = vadd.f32 %v1398, 1.0
        %v1400 = vmul.f32 %v1399, %v1030
        %v1401 = vand.u32 2147483647, %v1030
        %vm1402 = vcmp.lt.f32.partialorder %v1401, 0.0004427343
        %v1403 = vsel %vm1402, %v1400, %v1397
        %v1404 = vadd.f32 %v1032, 1.0
        %v1405 = vlog2.pop %v1404
        %v1406 = vmul.f32 %v1405, 0.6931472
        %v1407 = vmul.f32 -0.5, %v1032
        %v1408 = vadd.f32 %v1407, 1.0
        %v1409 = vmul.f32 %v1408, %v1032
        %v1410 = vand.u32 2147483647, %v1032
        %vm1411 = vcmp.lt.f32.partialorder %v1410, 0.0004427343
        %v1412 = vsel %vm1411, %v1409, %v1406
        %v1413 = vadd.f32 %v1034, 1.0
        %v1414 = vlog2.pop %v1413
        %v1415 = vmul.f32 %v1414, 0.6931472
        %v1416 = vmul.f32 -0.5, %v1034
        %v1417 = vadd.f32 %v1416, 1.0
        %v1418 = vmul.f32 %v1417, %v1034
        %v1419 = vand.u32 2147483647, %v1034
        %vm1420 = vcmp.lt.f32.partialorder %v1419, 0.0004427343
        %v1421 = vsel %vm1420, %v1418, %v1415
        %v1422 = vadd.f32 %v1036, 1.0
        %v1423 = vlog2.pop %v1422
        %v1424 = vmul.f32 %v1423, 0.6931472
        %v1425 = vmul.f32 -0.5, %v1036
        %v1426 = vadd.f32 %v1425, 1.0
        %v1427 = vmul.f32 %v1426, %v1036
        %v1428 = vand.u32 2147483647, %v1036
        %vm1429 = vcmp.lt.f32.partialorder %v1428, 0.0004427343
        %v1430 = vsel %vm1429, %v1427, %v1424
        %v1431 = vadd.f32 %v1038, 1.0
        %v1432 = vlog2.pop %v1431
        %v1433 = vmul.f32 %v1432, 0.6931472
        %v1434 = vmul.f32 -0.5, %v1038
        %v1435 = vadd.f32 %v1434, 1.0
        %v1436 = vmul.f32 %v1435, %v1038
        %v1437 = vand.u32 2147483647, %v1038
        %vm1438 = vcmp.lt.f32.partialorder %v1437, 0.0004427343
        %v1439 = vsel %vm1438, %v1436, %v1433
        %v1440 = vadd.f32 %v1040, 1.0
        %v1441 = vlog2.pop %v1440
        %v1442 = vmul.f32 %v1441, 0.6931472
        %v1443 = vmul.f32 -0.5, %v1040
        %v1444 = vadd.f32 %v1443, 1.0
        %v1445 = vmul.f32 %v1444, %v1040
        %v1446 = vand.u32 2147483647, %v1040
        %vm1447 = vcmp.lt.f32.partialorder %v1446, 0.0004427343
        %v1448 = vsel %vm1447, %v1445, %v1442
        %v1449 = vadd.f32 %v1042, 1.0
        %v1450 = vlog2.pop %v1449
        %v1451 = vmul.f32 %v1450, 0.6931472
        %v1452 = vmul.f32 -0.5, %v1042
        %v1453 = vadd.f32 %v1452, 1.0
        %v1454 = vmul.f32 %v1453, %v1042
        %v1455 = vand.u32 2147483647, %v1042
        %vm1456 = vcmp.lt.f32.partialorder %v1455, 0.0004427343
        %v1457 = vsel %vm1456, %v1454, %v1451
        %v1458 = vadd.f32 %v1044, 1.0
        %v1459 = vlog2.pop %v1458
        %v1460 = vmul.f32 %v1459, 0.6931472
        %v1461 = vmul.f32 -0.5, %v1044
        %v1462 = vadd.f32 %v1461, 1.0
        %v1463 = vmul.f32 %v1462, %v1044
        %v1464 = vand.u32 2147483647, %v1044
        %vm1465 = vcmp.lt.f32.partialorder %v1464, 0.0004427343
        %v1466 = vsel %vm1465, %v1463, %v1460
        %v1467 = vadd.f32 %v1046, 1.0
        %v1468 = vlog2.pop %v1467
        %v1469 = vmul.f32 %v1468, 0.6931472
        %v1470 = vmul.f32 -0.5, %v1046
        %v1471 = vadd.f32 %v1470, 1.0
        %v1472 = vmul.f32 %v1471, %v1046
        %v1473 = vand.u32 2147483647, %v1046
        %vm1474 = vcmp.lt.f32.partialorder %v1473, 0.0004427343
        %v1475 = vsel %vm1474, %v1472, %v1469
        %v1476 = vadd.f32 %v1048, 1.0
        %v1477 = vlog2.pop %v1476
        %v1478 = vmul.f32 %v1477, 0.6931472
        %v1479 = vmul.f32 -0.5, %v1048
        %v1480 = vadd.f32 %v1479, 1.0
        %v1481 = vmul.f32 %v1480, %v1048
        %v1482 = vand.u32 2147483647, %v1048
        %vm1483 = vcmp.lt.f32.partialorder %v1482, 0.0004427343
        %v1484 = vsel %vm1483, %v1481, %v1478
        %v1485 = vadd.f32 %v1050, 1.0
        %v1486 = vlog2.pop %v1485
        %v1487 = vmul.f32 %v1486, 0.6931472
        %v1488 = vmul.f32 -0.5, %v1050
        %v1489 = vadd.f32 %v1488, 1.0
        %v1490 = vmul.f32 %v1489, %v1050
        %v1491 = vand.u32 2147483647, %v1050
        %vm1492 = vcmp.lt.f32.partialorder %v1491, 0.0004427343
        %v1493 = vsel %vm1492, %v1490, %v1487
        %v1494 = vadd.f32 %v1052, 1.0
        %v1495 = vlog2.pop %v1494
        %v1496 = vmul.f32 %v1495, 0.6931472
        %v1497 = vmul.f32 -0.5, %v1052
        %v1498 = vadd.f32 %v1497, 1.0
        %v1499 = vmul.f32 %v1498, %v1052
        %v1500 = vand.u32 2147483647, %v1052
        %vm1501 = vcmp.lt.f32.partialorder %v1500, 0.0004427343
        %v1502 = vsel %vm1501, %v1499, %v1496
        %v1503 = vadd.f32 %v1054, 1.0
        %v1504 = vlog2.pop %v1503
        %v1505 = vmul.f32 %v1504, 0.6931472
        %v1506 = vmul.f32 -0.5, %v1054
        %v1507 = vadd.f32 %v1506, 1.0
        %v1508 = vmul.f32 %v1507, %v1054
        %v1509 = vand.u32 2147483647, %v1054
        %vm1510 = vcmp.lt.f32.partialorder %v1509, 0.0004427343
        %v1511 = vsel %vm1510, %v1508, %v1505
        %v1512 = vadd.f32 %v1056, 1.0
        %v1513 = vlog2.pop %v1512
        %v1514 = vmul.f32 %v1513, 0.6931472
        %v1515 = vmul.f32 -0.5, %v1056
        %v1516 = vadd.f32 %v1515, 1.0
        %v1517 = vmul.f32 %v1516, %v1056
        %v1518 = vand.u32 2147483647, %v1056
        %vm1519 = vcmp.lt.f32.partialorder %v1518, 0.0004427343
        %v1520 = vsel %vm1519, %v1517, %v1514
        %v1521 = vadd.f32 %v1058, 1.0
        %v1522 = vlog2.pop %v1521
        %v1523 = vmul.f32 %v1522, 0.6931472
        %v1524 = vmul.f32 -0.5, %v1058
        %v1525 = vadd.f32 %v1524, 1.0
        %v1526 = vmul.f32 %v1525, %v1058
        %v1527 = vand.u32 2147483647, %v1058
        %vm1528 = vcmp.lt.f32.partialorder %v1527, 0.0004427343
        %v1529 = vsel %vm1528, %v1526, %v1523
        %v1530 = vadd.f32 %v1060, 1.0
        %v1531 = vlog2.pop %v1530
        %v1532 = vmul.f32 %v1531, 0.6931472
        %v1533 = vmul.f32 -0.5, %v1060
        %v1534 = vadd.f32 %v1533, 1.0
        %v1535 = vmul.f32 %v1534, %v1060
        %v1536 = vand.u32 2147483647, %v1060
        %vm1537 = vcmp.lt.f32.partialorder %v1536, 0.0004427343
        %v1538 = vsel %vm1537, %v1535, %v1532
        %v1539 = vadd.f32 %v1062, 1.0
        %v1540 = vlog2.pop %v1539
        %v1541 = vmul.f32 %v1540, 0.6931472
        %v1542 = vmul.f32 -0.5, %v1062
        %v1543 = vadd.f32 %v1542, 1.0
        %v1544 = vmul.f32 %v1543, %v1062
        %v1545 = vand.u32 2147483647, %v1062
        %vm1546 = vcmp.lt.f32.partialorder %v1545, 0.0004427343
        %v1547 = vsel %vm1546, %v1544, %v1541
        %v1548 = vadd.f32 %v1064, 1.0
        %v1549 = vlog2.pop %v1548
        %v1550 = vmul.f32 %v1549, 0.6931472
        %v1551 = vmul.f32 -0.5, %v1064
        %v1552 = vadd.f32 %v1551, 1.0
        %v1553 = vmul.f32 %v1552, %v1064
        %v1554 = vand.u32 2147483647, %v1064
        %vm1555 = vcmp.lt.f32.partialorder %v1554, 0.0004427343
        %v1556 = vsel %vm1555, %v1553, %v1550
        %v1557 = vadd.f32 %v1066, 1.0
        %v1558 = vlog2.pop %v1557
        %v1559 = vmul.f32 %v1558, 0.6931472
        %v1560 = vmul.f32 -0.5, %v1066
        %v1561 = vadd.f32 %v1560, 1.0
        %v1562 = vmul.f32 %v1561, %v1066
        %v1563 = vand.u32 2147483647, %v1066
        %vm1564 = vcmp.lt.f32.partialorder %v1563, 0.0004427343
        %v1565 = vsel %vm1564, %v1562, %v1559
        %v1566 = vadd.f32 %v1068, 1.0
        %v1567 = vlog2.pop %v1566
        %v1568 = vmul.f32 %v1567, 0.6931472
        %v1569 = vmul.f32 -0.5, %v1068
        %v1570 = vadd.f32 %v1569, 1.0
        %v1571 = vmul.f32 %v1570, %v1068
        %v1572 = vand.u32 2147483647, %v1068
        %vm1573 = vcmp.lt.f32.partialorder %v1572, 0.0004427343
        %v1574 = vsel %vm1573, %v1571, %v1568
        %v1575 = vadd.f32 %v1070, 1.0
        %v1576 = vlog2.pop %v1575
        %v1577 = vmul.f32 %v1576, 0.6931472
        %v1578 = vmul.f32 -0.5, %v1070
        %v1579 = vadd.f32 %v1578, 1.0
        %v1580 = vmul.f32 %v1579, %v1070
        %v1581 = vand.u32 2147483647, %v1070
        %vm1582 = vcmp.lt.f32.partialorder %v1581, 0.0004427343
        %v1583 = vsel %vm1582, %v1580, %v1577
        %v1584 = vadd.f32 %v1072, 1.0
        %v1585 = vlog2.pop %v1584
        %v1586 = vmul.f32 %v1585, 0.6931472
        %v1587 = vmul.f32 -0.5, %v1072
        %v1588 = vadd.f32 %v1587, 1.0
        %v1589 = vmul.f32 %v1588, %v1072
        %v1590 = vand.u32 2147483647, %v1072
        %vm1591 = vcmp.lt.f32.partialorder %v1590, 0.0004427343
        %v1592 = vsel %vm1591, %v1589, %v1586
        %v1593 = vadd.f32 %v1074, 1.0
        %v1594 = vlog2.pop %v1593
        %v1595 = vmul.f32 %v1594, 0.6931472
        %v1596 = vmul.f32 -0.5, %v1074
        %v1597 = vadd.f32 %v1596, 1.0
        %v1598 = vmul.f32 %v1597, %v1074
        %v1599 = vand.u32 2147483647, %v1074
        %vm1600 = vcmp.lt.f32.partialorder %v1599, 0.0004427343
        %v1601 = vsel %vm1600, %v1598, %v1595
        %v1602 = vadd.f32 %v1076, 1.0
        %v1603 = vlog2.pop %v1602
        %v1604 = vmul.f32 %v1603, 0.6931472
        %v1605 = vmul.f32 -0.5, %v1076
        %v1606 = vadd.f32 %v1605, 1.0
        %v1607 = vmul.f32 %v1606, %v1076
        %v1608 = vand.u32 2147483647, %v1076
        %vm1609 = vcmp.lt.f32.partialorder %v1608, 0.0004427343
        %v1610 = vsel %vm1609, %v1607, %v1604
        %v1611 = vadd.f32 %v1078, 1.0
        %v1612 = vlog2.pop %v1611
        %v1613 = vmul.f32 %v1612, 0.6931472
        %v1614 = vmul.f32 -0.5, %v1078
        %v1615 = vadd.f32 %v1614, 1.0
        %v1616 = vmul.f32 %v1615, %v1078
        %v1617 = vand.u32 2147483647, %v1078
        %vm1618 = vcmp.lt.f32.partialorder %v1617, 0.0004427343
        %v1619 = vsel %vm1618, %v1616, %v1613
        %v1620 = vadd.f32 %v1080, 1.0
        %v1621 = vlog2.pop %v1620
        %v1622 = vmul.f32 %v1621, 0.6931472
        %v1623 = vmul.f32 -0.5, %v1080
        %v1624 = vadd.f32 %v1623, 1.0
        %v1625 = vmul.f32 %v1624, %v1080
        %v1626 = vand.u32 2147483647, %v1080
        %vm1627 = vcmp.lt.f32.partialorder %v1626, 0.0004427343
        %v1628 = vsel %vm1627, %v1625, %v1622
        %v1629 = vadd.f32 %v1082, 1.0
        %v1630 = vlog2.pop %v1629
        %v1631 = vmul.f32 %v1630, 0.6931472
        %v1632 = vmul.f32 -0.5, %v1082
        %v1633 = vadd.f32 %v1632, 1.0
        %v1634 = vmul.f32 %v1633, %v1082
        %v1635 = vand.u32 2147483647, %v1082
        %vm1636 = vcmp.lt.f32.partialorder %v1635, 0.0004427343
        %v1637 = vsel %vm1636, %v1634, %v1631
        %v1638 = vadd.f32 %v1084, 1.0
        %v1639 = vlog2.pop %v1638
        %v1640 = vmul.f32 %v1639, 0.6931472
        %v1641 = vmul.f32 -0.5, %v1084
        %v1642 = vadd.f32 %v1641, 1.0
        %v1643 = vmul.f32 %v1642, %v1084
        %v1644 = vand.u32 2147483647, %v1084
        %vm1645 = vcmp.lt.f32.partialorder %v1644, 0.0004427343
        %v1646 = vsel %vm1645, %v1643, %v1640
        %v1647 = vadd.f32 %v1086, 1.0
        %v1648 = vlog2.pop %v1647
        %v1649 = vmul.f32 %v1648, 0.6931472
        %v1650 = vmul.f32 -0.5, %v1086
        %v1651 = vadd.f32 %v1650, 1.0
        %v1652 = vmul.f32 %v1651, %v1086
        %v1653 = vand.u32 2147483647, %v1086
        %vm1654 = vcmp.lt.f32.partialorder %v1653, 0.0004427343
        %v1655 = vsel %vm1654, %v1652, %v1649
        %v1656 = vadd.f32 %v1088, 1.0
        %v1657 = vlog2.pop %v1656
        %v1658 = vmul.f32 %v1657, 0.6931472
        %v1659 = vmul.f32 -0.5, %v1088
        %v1660 = vadd.f32 %v1659, 1.0
        %v1661 = vmul.f32 %v1660, %v1088
        %v1662 = vand.u32 2147483647, %v1088
        %vm1663 = vcmp.lt.f32.partialorder %v1662, 0.0004427343
        %v1664 = vsel %vm1663, %v1661, %v1658
        %v1665 = vmul.f32 %v1097, 0.01
        %v1666 = vmul.f32 %v1106, 0.01
        %v1667 = vmul.f32 %v1115, 0.01
        %v1668 = vmul.f32 %v1124, 0.01
        %v1669 = vmul.f32 %v1133, 0.01
        %v1670 = vmul.f32 %v1142, 0.01
        %v1671 = vmul.f32 %v1151, 0.01
        %v1672 = vmul.f32 %v1160, 0.01
        %v1673 = vmul.f32 %v1169, 0.01
        %v1674 = vmul.f32 %v1178, 0.01
        %v1675 = vmul.f32 %v1187, 0.01
        %v1676 = vmul.f32 %v1196, 0.01
        %v1677 = vmul.f32 %v1205, 0.01
        %v1678 = vmul.f32 %v1214, 0.01
        %v1679 = vmul.f32 %v1223, 0.01
        %v1680 = vmul.f32 %v1232, 0.01
        %v1681 = vmul.f32 %v1241, 0.01
        %v1682 = vmul.f32 %v1250, 0.01
        %v1683 = vmul.f32 %v1259, 0.01
        %v1684 = vmul.f32 %v1268, 0.01
        %v1685 = vmul.f32 %v1277, 0.01
        %v1686 = vmul.f32 %v1286, 0.01
        %v1687 = vmul.f32 %v1295, 0.01
        %v1688 = vmul.f32 %v1304, 0.01
        %v1689 = vmul.f32 %v1313, 0.01
        %v1690 = vmul.f32 %v1322, 0.01
        %v1691 = vmul.f32 %v1331, 0.01
        %v1692 = vmul.f32 %v1340, 0.01
        %v1693 = vmul.f32 %v1349, 0.01
        %v1694 = vmul.f32 %v1358, 0.01
        %v1695 = vmul.f32 %v1367, 0.01
        %v1696 = vmul.f32 %v1376, 0.01
        %v1697 = vmul.f32 %v1385, 0.01
        %v1698 = vmul.f32 %v1394, 0.01
        %v1699 = vmul.f32 %v1403, 0.01
        %v1700 = vmul.f32 %v1412, 0.01
        %v1701 = vmul.f32 %v1421, 0.01
        %v1702 = vmul.f32 %v1430, 0.01
        %v1703 = vmul.f32 %v1439, 0.01
        %v1704 = vmul.f32 %v1448, 0.01
        %v1705 = vmul.f32 %v1457, 0.01
        %v1706 = vmul.f32 %v1466, 0.01
        %v1707 = vmul.f32 %v1475, 0.01
        %v1708 = vmul.f32 %v1484, 0.01
        %v1709 = vmul.f32 %v1493, 0.01
        %v1710 = vmul.f32 %v1502, 0.01
        %v1711 = vmul.f32 %v1511, 0.01
        %v1712 = vmul.f32 %v1520, 0.01
        %v1713 = vmul.f32 %v1529, 0.01
        %v1714 = vmul.f32 %v1538, 0.01
        %v1715 = vmul.f32 %v1547, 0.01
        %v1716 = vmul.f32 %v1556, 0.01
        %v1717 = vmul.f32 %v1565, 0.01
        %v1718 = vmul.f32 %v1574, 0.01
        %v1719 = vmul.f32 %v1583, 0.01
        %v1720 = vmul.f32 %v1592, 0.01
        %v1721 = vmul.f32 %v1601, 0.01
        %v1722 = vmul.f32 %v1610, 0.01
        %v1723 = vmul.f32 %v1619, 0.01
        %v1724 = vmul.f32 %v1628, 0.01
        %v1725 = vmul.f32 %v1637, 0.01
        %v1726 = vmul.f32 %v1646, 0.01
        %v1727 = vmul.f32 %v1655, 0.01
        %v1728 = vmul.f32 %v1664, 0.01
        %v1729 = vadd.f32 %v769, %v1665
        %v1730 = vadd.f32 %v770, %v1666
        %v1731 = vadd.f32 %v771, %v1667
        %v1732 = vadd.f32 %v772, %v1668
        %v1733 = vadd.f32 %v773, %v1669
        %v1734 = vadd.f32 %v774, %v1670
        %v1735 = vadd.f32 %v775, %v1671
        %v1736 = vadd.f32 %v776, %v1672
        %v1737 = vadd.f32 %v777, %v1673
        %v1738 = vadd.f32 %v778, %v1674
        %v1739 = vadd.f32 %v779, %v1675
        %v1740 = vadd.f32 %v780, %v1676
        %v1741 = vadd.f32 %v781, %v1677
        %v1742 = vadd.f32 %v782, %v1678
        %v1743 = vadd.f32 %v783, %v1679
        %v1744 = vadd.f32 %v784, %v1680
        %v1745 = vadd.f32 %v785, %v1681
        %v1746 = vadd.f32 %v786, %v1682
        %v1747 = vadd.f32 %v787, %v1683
        %v1748 = vadd.f32 %v788, %v1684
        %v1749 = vadd.f32 %v789, %v1685
        %v1750 = vadd.f32 %v790, %v1686
        %v1751 = vadd.f32 %v791, %v1687
        %v1752 = vadd.f32 %v792, %v1688
        %v1753 = vadd.f32 %v793, %v1689
        %v1754 = vadd.f32 %v794, %v1690
        %v1755 = vadd.f32 %v795, %v1691
        %v1756 = vadd.f32 %v796, %v1692
        %v1757 = vadd.f32 %v797, %v1693
        %v1758 = vadd.f32 %v798, %v1694
        %v1759 = vadd.f32 %v799, %v1695
        %v1760 = vadd.f32 %v800, %v1696
        %v1761 = vadd.f32 %v801, %v1697
        %v1762 = vadd.f32 %v802, %v1698
        %v1763 = vadd.f32 %v803, %v1699
        %v1764 = vadd.f32 %v804, %v1700
        %v1765 = vadd.f32 %v805, %v1701
        %v1766 = vadd.f32 %v806, %v1702
        %v1767 = vadd.f32 %v807, %v1703
        %v1768 = vadd.f32 %v808, %v1704
        %v1769 = vadd.f32 %v809, %v1705
        %v1770 = vadd.f32 %v810, %v1706
        %v1771 = vadd.f32 %v811, %v1707
        %v1772 = vadd.f32 %v812, %v1708
        %v1773 = vadd.f32 %v813, %v1709
        %v1774 = vadd.f32 %v814, %v1710
        %v1775 = vadd.f32 %v815, %v1711
        %v1776 = vadd.f32 %v816, %v1712
        %v1777 = vadd.f32 %v817, %v1713
        %v1778 = vadd.f32 %v818, %v1714
        %v1779 = vadd.f32 %v819, %v1715
        %v1780 = vadd.f32 %v820, %v1716
        %v1781 = vadd.f32 %v821, %v1717
        %v1782 = vadd.f32 %v822, %v1718
        %v1783 = vadd.f32 %v823, %v1719
        %v1784 = vadd.f32 %v824, %v1720
        %v1785 = vadd.f32 %v825, %v1721
        %v1786 = vadd.f32 %v826, %v1722
        %v1787 = vadd.f32 %v827, %v1723
        %v1788 = vadd.f32 %v828, %v1724
        %v1789 = vadd.f32 %v829, %v1725
        %v1790 = vadd.f32 %v830, %v1726
        %v1791 = vadd.f32 %v831, %v1727
        %v1792 = vadd.f32 %v832, %v1728
        %v1793 = vld [vmem:[%s3] sm:$0xff]
        %v1794 = vld [vmem:[%s3 + $0x8] sm:$0xff]
        %v1795 = vld [vmem:[%s3 + $0x10] sm:$0xff]
        %v1796 = vld [vmem:[%s3 + $0x18] sm:$0xff]
        %v1797 = vld [vmem:[%s3 + $0x20] sm:$0xff]
        %v1798 = vld [vmem:[%s3 + $0x28] sm:$0xff]
        %v1799 = vld [vmem:[%s3 + $0x30] sm:$0xff]
        %v1800 = vld [vmem:[%s3 + $0x38] sm:$0xff]
        %v1801 = vld [vmem:[%s3 + $0x40] sm:$0xff]
        %v1802 = vld [vmem:[%s3 + $0x48] sm:$0xff]
        %v1803 = vld [vmem:[%s3 + $0x50] sm:$0xff]
        %v1804 = vld [vmem:[%s3 + $0x58] sm:$0xff]
        %v1805 = vld [vmem:[%s3 + $0x60] sm:$0xff]
        %v1806 = vld [vmem:[%s3 + $0x68] sm:$0xff]
        %v1807 = vld [vmem:[%s3 + $0x70] sm:$0xff]
        %v1808 = vld [vmem:[%s3 + $0x78] sm:$0xff]
        %v1809 = vld [vmem:[%s4] sm:$0xff]
        %v1810 = vld [vmem:[%s4 + $0x8] sm:$0xff]
        %v1811 = vld [vmem:[%s4 + $0x10] sm:$0xff]
        %v1812 = vld [vmem:[%s4 + $0x18] sm:$0xff]
        %v1813 = vld [vmem:[%s4 + $0x20] sm:$0xff]
        %v1814 = vld [vmem:[%s4 + $0x28] sm:$0xff]
        %v1815 = vld [vmem:[%s4 + $0x30] sm:$0xff]
        %v1816 = vld [vmem:[%s4 + $0x38] sm:$0xff]
        %v1817 = vld [vmem:[%s4 + $0x40] sm:$0xff]
        %v1818 = vld [vmem:[%s4 + $0x48] sm:$0xff]
        %v1819 = vld [vmem:[%s4 + $0x50] sm:$0xff]
        %v1820 = vld [vmem:[%s4 + $0x58] sm:$0xff]
        %v1821 = vld [vmem:[%s4 + $0x60] sm:$0xff]
        %v1822 = vld [vmem:[%s4 + $0x68] sm:$0xff]
        %v1823 = vld [vmem:[%s4 + $0x70] sm:$0xff]
        %v1824 = vld [vmem:[%s4 + $0x78] sm:$0xff]
        %1826 = vset.pattern.permute.xlu0 0
        %1827 = vperm.xlu0 %1826, %v1809
        %v1828 = vpop.permute.xlu0 %1827
        %1831 = vset.pattern.permute.xlu0 0
        %1832 = vperm.xlu0 %1831, %v1810
        %v1833 = vpop.permute.xlu0 %1832
        %1836 = vset.pattern.permute.xlu0 0
        %1837 = vperm.xlu0 %1836, %v1811
        %v1838 = vpop.permute.xlu0 %1837
        %1841 = vset.pattern.permute.xlu0 0
        %1842 = vperm.xlu0 %1841, %v1812
        %v1843 = vpop.permute.xlu0 %1842
        %1846 = vset.pattern.permute.xlu0 0
        %1847 = vperm.xlu0 %1846, %v1813
        %v1848 = vpop.permute.xlu0 %1847
        %1851 = vset.pattern.permute.xlu0 0
        %1852 = vperm.xlu0 %1851, %v1814
        %v1853 = vpop.permute.xlu0 %1852
        %1856 = vset.pattern.permute.xlu0 0
        %1857 = vperm.xlu0 %1856, %v1815
        %v1858 = vpop.permute.xlu0 %1857
        %1861 = vset.pattern.permute.xlu0 0
        %1862 = vperm.xlu0 %1861, %v1816
        %v1863 = vpop.permute.xlu0 %1862
        %1866 = vset.pattern.permute.xlu0 0
        %1867 = vperm.xlu0 %1866, %v1817
        %v1868 = vpop.permute.xlu0 %1867
        %1871 = vset.pattern.permute.xlu0 0
        %1872 = vperm.xlu0 %1871, %v1818
        %v1873 = vpop.permute.xlu0 %1872
        %1876 = vset.pattern.permute.xlu0 0
        %1877 = vperm.xlu0 %1876, %v1819
        %v1878 = vpop.permute.xlu0 %1877
        %1881 = vset.pattern.permute.xlu0 0
        %1882 = vperm.xlu0 %1881, %v1820
        %v1883 = vpop.permute.xlu0 %1882
        %1886 = vset.pattern.permute.xlu0 0
        %1887 = vperm.xlu0 %1886, %v1821
        %v1888 = vpop.permute.xlu0 %1887
        %1891 = vset.pattern.permute.xlu0 0
        %1892 = vperm.xlu0 %1891, %v1822
        %v1893 = vpop.permute.xlu0 %1892
        %1896 = vset.pattern.permute.xlu0 0
        %1897 = vperm.xlu0 %1896, %v1823
        %v1898 = vpop.permute.xlu0 %1897
        %1901 = vset.pattern.permute.xlu0 0
        %1902 = vperm.xlu0 %1901, %v1824
        %v1903 = vpop.permute.xlu0 %1902
        %1905 = vmatpush.msra.mxu0 %v1789
        %1906 = vmatpush.msra.mxu0 %v1785
        %1907 = vmatpush.msra.mxu0 %v1781
        %1908 = vmatpush.msra.mxu0 %v1777
        %1909 = vmatpush.msra.mxu0 %v1773
        %1910 = vmatpush.msra.mxu0 %v1769
        %1911 = vmatpush.msra.mxu0 %v1765
        %1912 = vmatpush.msra.mxu0 %v1761
        %1913 = vmatpush.msra.mxu0 %v1757
        %1914 = vmatpush.msra.mxu0 %v1753
        %1915 = vmatpush.msra.mxu0 %v1749
        %1916 = vmatpush.msra.mxu0 %v1745
        %1917 = vmatpush.msra.mxu0 %v1741
        %1918 = vmatpush.msra.mxu0 %v1737
        %1919 = vmatpush.msra.mxu0 %v1733
        %1920 = vmatpush.msra.mxu0 %v1729
        %1921 = vmatmul.f32.gmra.mxu0 %v1793
        %v1922 = vpop.f32.mrf.mxu0
        %v1923 = vadd.f32 %v1828, %v1922
        %1924 = vmatmul.f32.gmra.mxu0 %v1794
        %v1925 = vpop.f32.mrf.mxu0
        %v1926 = vadd.f32 %v1833, %v1925
        %1927 = vmatmul.f32.gmra.mxu0 %v1795
        %v1928 = vpop.f32.mrf.mxu0
        %v1929 = vadd.f32 %v1838, %v1928
        %1930 = vmatmul.f32.gmra.mxu0 %v1796
        %v1931 = vpop.f32.mrf.mxu0
        %v1932 = vadd.f32 %v1843, %v1931
        %1933 = vmatmul.f32.gmra.mxu0 %v1797
        %v1934 = vpop.f32.mrf.mxu0
        %v1935 = vadd.f32 %v1848, %v1934
        %1936 = vmatmul.f32.gmra.mxu0 %v1798
        %v1937 = vpop.f32.mrf.mxu0
        %v1938 = vadd.f32 %v1853, %v1937
        %1939 = vmatmul.f32.gmra.mxu0 %v1799
        %v1940 = vpop.f32.mrf.mxu0
        %v1941 = vadd.f32 %v1858, %v1940
        %1942 = vmatmul.f32.gmra.mxu0 %v1800
        %v1943 = vpop.f32.mrf.mxu0
        %v1944 = vadd.f32 %v1863, %v1943
        %1945 = vmatmul.f32.gmra.mxu0 %v1801
        %v1946 = vpop.f32.mrf.mxu0
        %v1947 = vadd.f32 %v1868, %v1946
        %1948 = vmatmul.f32.gmra.mxu0 %v1802
        %v1949 = vpop.f32.mrf.mxu0
        %v1950 = vadd.f32 %v1873, %v1949
        %1951 = vmatmul.f32.gmra.mxu0 %v1803
        %v1952 = vpop.f32.mrf.mxu0
        %v1953 = vadd.f32 %v1878, %v1952
        %1954 = vmatmul.f32.gmra.mxu0 %v1804
        %v1955 = vpop.f32.mrf.mxu0
        %v1956 = vadd.f32 %v1883, %v1955
        %1957 = vmatmul.f32.gmra.mxu0 %v1805
        %v1958 = vpop.f32.mrf.mxu0
        %v1959 = vadd.f32 %v1888, %v1958
        %1960 = vmatmul.f32.gmra.mxu0 %v1806
        %v1961 = vpop.f32.mrf.mxu0
        %v1962 = vadd.f32 %v1893, %v1961
        %1963 = vmatmul.f32.gmra.mxu0 %v1807
        %v1964 = vpop.f32.mrf.mxu0
        %v1965 = vadd.f32 %v1898, %v1964
        %1966 = vmatmul.f32.gmra.mxu0 %v1808
        %v1967 = vpop.f32.mrf.mxu0
        %v1968 = vadd.f32 %v1903, %v1967
        %1969 = vdwg.mxu0
        %1970 = vmatpush.msra.mxu0 %v1790
        %1971 = vmatpush.msra.mxu0 %v1786
        %1972 = vmatpush.msra.mxu0 %v1782
        %1973 = vmatpush.msra.mxu0 %v1778
        %1974 = vmatpush.msra.mxu0 %v1774
        %1975 = vmatpush.msra.mxu0 %v1770
        %1976 = vmatpush.msra.mxu0 %v1766
        %1977 = vmatpush.msra.mxu0 %v1762
        %1978 = vmatpush.msra.mxu0 %v1758
        %1979 = vmatpush.msra.mxu0 %v1754
        %1980 = vmatpush.msra.mxu0 %v1750
        %1981 = vmatpush.msra.mxu0 %v1746
        %1982 = vmatpush.msra.mxu0 %v1742
        %1983 = vmatpush.msra.mxu0 %v1738
        %1984 = vmatpush.msra.mxu0 %v1734
        %1985 = vmatpush.msra.mxu0 %v1730
        %1986 = vmatmul.f32.gmra.mxu0 %v1793
        %v1987 = vpop.f32.mrf.mxu0
        %v1988 = vadd.f32 %v1828, %v1987
        %1989 = vmatmul.f32.gmra.mxu0 %v1794
        %v1990 = vpop.f32.mrf.mxu0
        %v1991 = vadd.f32 %v1833, %v1990
        %1992 = vmatmul.f32.gmra.mxu0 %v1795
        %v1993 = vpop.f32.mrf.mxu0
        %v1994 = vadd.f32 %v1838, %v1993
        %1995 = vmatmul.f32.gmra.mxu0 %v1796
        %v1996 = vpop.f32.mrf.mxu0
        %v1997 = vadd.f32 %v1843, %v1996
        %1998 = vmatmul.f32.gmra.mxu0 %v1797
        %v1999 = vpop.f32.mrf.mxu0
        %v2000 = vadd.f32 %v1848, %v1999
        %2001 = vmatmul.f32.gmra.mxu0 %v1798
        %v2002 = vpop.f32.mrf.mxu0
        %v2003 = vadd.f32 %v1853, %v2002
        %2004 = vmatmul.f32.gmra.mxu0 %v1799
        %v2005 = vpop.f32.mrf.mxu0
        %v2006 = vadd.f32 %v1858, %v2005
        %2007 = vmatmul.f32.gmra.mxu0 %v1800
        %v2008 = vpop.f32.mrf.mxu0
        %v2009 = vadd.f32 %v1863, %v2008
        %2010 = vmatmul.f32.gmra.mxu0 %v1801
        %v2011 = vpop.f32.mrf.mxu0
        %v2012 = vadd.f32 %v1868, %v2011
        %2013 = vmatmul.f32.gmra.mxu0 %v1802
        %v2014 = vpop.f32.mrf.mxu0
        %v2015 = vadd.f32 %v1873, %v2014
        %2016 = vmatmul.f32.gmra.mxu0 %v1803
        %v2017 = vpop.f32.mrf.mxu0
        %v2018 = vadd.f32 %v1878, %v2017
        %2019 = vmatmul.f32.gmra.mxu0 %v1804
        %v2020 = vpop.f32.mrf.mxu0
        %v2021 = vadd.f32 %v1883, %v2020
        %2022 = vmatmul.f32.gmra.mxu0 %v1805
        %v2023 = vpop.f32.mrf.mxu0
        %v2024 = vadd.f32 %v1888, %v2023
        %2025 = vmatmul.f32.gmra.mxu0 %v1806
        %v2026 = vpop.f32.mrf.mxu0
        %v2027 = vadd.f32 %v1893, %v2026
        %2028 = vmatmul.f32.gmra.mxu0 %v1807
        %v2029 = vpop.f32.mrf.mxu0
        %v2030 = vadd.f32 %v1898, %v2029
        %2031 = vmatmul.f32.gmra.mxu0 %v1808
        %v2032 = vpop.f32.mrf.mxu0
        %v2033 = vadd.f32 %v1903, %v2032
        %2034 = vdwg.mxu0
        %2035 = vmatpush.msra.mxu0 %v1791
        %2036 = vmatpush.msra.mxu0 %v1787
        %2037 = vmatpush.msra.mxu0 %v1783
        %2038 = vmatpush.msra.mxu0 %v1779
        %2039 = vmatpush.msra.mxu0 %v1775
        %2040 = vmatpush.msra.mxu0 %v1771
        %2041 = vmatpush.msra.mxu0 %v1767
        %2042 = vmatpush.msra.mxu0 %v1763
        %2043 = vmatpush.msra.mxu0 %v1759
        %2044 = vmatpush.msra.mxu0 %v1755
        %2045 = vmatpush.msra.mxu0 %v1751
        %2046 = vmatpush.msra.mxu0 %v1747
        %2047 = vmatpush.msra.mxu0 %v1743
        %2048 = vmatpush.msra.mxu0 %v1739
        %2049 = vmatpush.msra.mxu0 %v1735
        %2050 = vmatpush.msra.mxu0 %v1731
        %2051 = vmatmul.f32.gmra.mxu0 %v1793
        %v2052 = vpop.f32.mrf.mxu0
        %v2053 = vadd.f32 %v1828, %v2052
        %2054 = vmatmul.f32.gmra.mxu0 %v1794
        %v2055 = vpop.f32.mrf.mxu0
        %v2056 = vadd.f32 %v1833, %v2055
        %2057 = vmatmul.f32.gmra.mxu0 %v1795
        %v2058 = vpop.f32.mrf.mxu0
        %v2059 = vadd.f32 %v1838, %v2058
        %2060 = vmatmul.f32.gmra.mxu0 %v1796
        %v2061 = vpop.f32.mrf.mxu0
        %v2062 = vadd.f32 %v1843, %v2061
        %2063 = vmatmul.f32.gmra.mxu0 %v1797
        %v2064 = vpop.f32.mrf.mxu0
        %v2065 = vadd.f32 %v1848, %v2064
        %2066 = vmatmul.f32.gmra.mxu0 %v1798
        %v2067 = vpop.f32.mrf.mxu0
        %v2068 = vadd.f32 %v1853, %v2067
        %2069 = vmatmul.f32.gmra.mxu0 %v1799
        %v2070 = vpop.f32.mrf.mxu0
        %v2071 = vadd.f32 %v1858, %v2070
        %2072 = vmatmul.f32.gmra.mxu0 %v1800
        %v2073 = vpop.f32.mrf.mxu0
        %v2074 = vadd.f32 %v1863, %v2073
        %2075 = vmatmul.f32.gmra.mxu0 %v1801
        %v2076 = vpop.f32.mrf.mxu0
        %v2077 = vadd.f32 %v1868, %v2076
        %2078 = vmatmul.f32.gmra.mxu0 %v1802
        %v2079 = vpop.f32.mrf.mxu0
        %v2080 = vadd.f32 %v1873, %v2079
        %2081 = vmatmul.f32.gmra.mxu0 %v1803
        %v2082 = vpop.f32.mrf.mxu0
        %v2083 = vadd.f32 %v1878, %v2082
        %2084 = vmatmul.f32.gmra.mxu0 %v1804
        %v2085 = vpop.f32.mrf.mxu0
        %v2086 = vadd.f32 %v1883, %v2085
        %2087 = vmatmul.f32.gmra.mxu0 %v1805
        %v2088 = vpop.f32.mrf.mxu0
        %v2089 = vadd.f32 %v1888, %v2088
        %2090 = vmatmul.f32.gmra.mxu0 %v1806
        %v2091 = vpop.f32.mrf.mxu0
        %v2092 = vadd.f32 %v1893, %v2091
        %2093 = vmatmul.f32.gmra.mxu0 %v1807
        %v2094 = vpop.f32.mrf.mxu0
        %v2095 = vadd.f32 %v1898, %v2094
        %2096 = vmatmul.f32.gmra.mxu0 %v1808
        %v2097 = vpop.f32.mrf.mxu0
        %v2098 = vadd.f32 %v1903, %v2097
        %2099 = vdwg.mxu0
        %2100 = vmatpush.msra.mxu0 %v1792
        %2101 = vmatpush.msra.mxu0 %v1788
        %2102 = vmatpush.msra.mxu0 %v1784
        %2103 = vmatpush.msra.mxu0 %v1780
        %2104 = vmatpush.msra.mxu0 %v1776
        %2105 = vmatpush.msra.mxu0 %v1772
        %2106 = vmatpush.msra.mxu0 %v1768
        %2107 = vmatpush.msra.mxu0 %v1764
        %2108 = vmatpush.msra.mxu0 %v1760
        %2109 = vmatpush.msra.mxu0 %v1756
        %2110 = vmatpush.msra.mxu0 %v1752
        %2111 = vmatpush.msra.mxu0 %v1748
        %2112 = vmatpush.msra.mxu0 %v1744
        %2113 = vmatpush.msra.mxu0 %v1740
        %2114 = vmatpush.msra.mxu0 %v1736
        %2115 = vmatpush.msra.mxu0 %v1732
        %2116 = vmatmul.f32.gmra.mxu0 %v1793
        %v2117 = vpop.f32.mrf.mxu0
        %v2118 = vadd.f32 %v1828, %v2117
        %2119 = vmatmul.f32.gmra.mxu0 %v1794
        %v2120 = vpop.f32.mrf.mxu0
        %v2121 = vadd.f32 %v1833, %v2120
        %2122 = vmatmul.f32.gmra.mxu0 %v1795
        %v2123 = vpop.f32.mrf.mxu0
        %v2124 = vadd.f32 %v1838, %v2123
        %2125 = vmatmul.f32.gmra.mxu0 %v1796
        %v2126 = vpop.f32.mrf.mxu0
        %v2127 = vadd.f32 %v1843, %v2126
        %2128 = vmatmul.f32.gmra.mxu0 %v1797
        %v2129 = vpop.f32.mrf.mxu0
        %v2130 = vadd.f32 %v1848, %v2129
        %2131 = vmatmul.f32.gmra.mxu0 %v1798
        %v2132 = vpop.f32.mrf.mxu0
        %v2133 = vadd.f32 %v1853, %v2132
        %2134 = vmatmul.f32.gmra.mxu0 %v1799
        %v2135 = vpop.f32.mrf.mxu0
        %v2136 = vadd.f32 %v1858, %v2135
        %2137 = vmatmul.f32.gmra.mxu0 %v1800
        %v2138 = vpop.f32.mrf.mxu0
        %v2139 = vadd.f32 %v1863, %v2138
        %2140 = vmatmul.f32.gmra.mxu0 %v1801
        %v2141 = vpop.f32.mrf.mxu0
        %v2142 = vadd.f32 %v1868, %v2141
        %2143 = vmatmul.f32.gmra.mxu0 %v1802
        %v2144 = vpop.f32.mrf.mxu0
        %v2145 = vadd.f32 %v1873, %v2144
        %2146 = vmatmul.f32.gmra.mxu0 %v1803
        %v2147 = vpop.f32.mrf.mxu0
        %v2148 = vadd.f32 %v1878, %v2147
        %2149 = vmatmul.f32.gmra.mxu0 %v1804
        %v2150 = vpop.f32.mrf.mxu0
        %v2151 = vadd.f32 %v1883, %v2150
        %2152 = vmatmul.f32.gmra.mxu0 %v1805
        %v2153 = vpop.f32.mrf.mxu0
        %v2154 = vadd.f32 %v1888, %v2153
        %2155 = vmatmul.f32.gmra.mxu0 %v1806
        %v2156 = vpop.f32.mrf.mxu0
        %v2157 = vadd.f32 %v1893, %v2156
        %2158 = vmatmul.f32.gmra.mxu0 %v1807
        %v2159 = vpop.f32.mrf.mxu0
        %v2160 = vadd.f32 %v1898, %v2159
        %2161 = vmatmul.f32.gmra.mxu0 %v1808
        %v2162 = vpop.f32.mrf.mxu0
        %v2163 = vadd.f32 %v1903, %v2162
        %2164 = vdwg.mxu0
        %v2165 = vmul.f32 %v1923, 100.0
        %v2166 = vmul.f32 %v1988, 100.0
        %v2167 = vmul.f32 %v2053, 100.0
        %v2168 = vmul.f32 %v2118, 100.0
        %v2169 = vmul.f32 %v1926, 100.0
        %v2170 = vmul.f32 %v1991, 100.0
        %v2171 = vmul.f32 %v2056, 100.0
        %v2172 = vmul.f32 %v2121, 100.0
        %v2173 = vmul.f32 %v1929, 100.0
        %v2174 = vmul.f32 %v1994, 100.0
        %v2175 = vmul.f32 %v2059, 100.0
        %v2176 = vmul.f32 %v2124, 100.0
        %v2177 = vmul.f32 %v1932, 100.0
        %v2178 = vmul.f32 %v1997, 100.0
        %v2179 = vmul.f32 %v2062, 100.0
        %v2180 = vmul.f32 %v2127, 100.0
        %v2181 = vmul.f32 %v1935, 100.0
        %v2182 = vmul.f32 %v2000, 100.0
        %v2183 = vmul.f32 %v2065, 100.0
        %v2184 = vmul.f32 %v2130, 100.0
        %v2185 = vmul.f32 %v1938, 100.0
        %v2186 = vmul.f32 %v2003, 100.0
        %v2187 = vmul.f32 %v2068, 100.0
        %v2188 = vmul.f32 %v2133, 100.0
        %v2189 = vmul.f32 %v1941, 100.0
        %v2190 = vmul.f32 %v2006, 100.0
        %v2191 = vmul.f32 %v2071, 100.0
        %v2192 = vmul.f32 %v2136, 100.0
        %v2193 = vmul.f32 %v1944, 100.0
        %v2194 = vmul.f32 %v2009, 100.0
        %v2195 = vmul.f32 %v2074, 100.0
        %v2196 = vmul.f32 %v2139, 100.0
        %v2197 = vmul.f32 %v1947, 100.0
        %v2198 = vmul.f32 %v2012, 100.0
        %v2199 = vmul.f32 %v2077, 100.0
        %v2200 = vmul.f32 %v2142, 100.0
        %v2201 = vmul.f32 %v1950, 100.0
        %v2202 = vmul.f32 %v2015, 100.0
        %v2203 = vmul.f32 %v2080, 100.0
        %v2204 = vmul.f32 %v2145, 100.0
        %v2205 = vmul.f32 %v1953, 100.0
        %v2206 = vmul.f32 %v2018, 100.0
        %v2207 = vmul.f32 %v2083, 100.0
        %v2208 = vmul.f32 %v2148, 100.0
        %v2209 = vmul.f32 %v1956, 100.0
        %v2210 = vmul.f32 %v2021, 100.0
        %v2211 = vmul.f32 %v2086, 100.0
        %v2212 = vmul.f32 %v2151, 100.0
        %v2213 = vmul.f32 %v1959, 100.0
        %v2214 = vmul.f32 %v2024, 100.0
        %v2215 = vmul.f32 %v2089, 100.0
        %v2216 = vmul.f32 %v2154, 100.0
        %v2217 = vmul.f32 %v1962, 100.0
        %v2218 = vmul.f32 %v2027, 100.0
        %v2219 = vmul.f32 %v2092, 100.0
        %v2220 = vmul.f32 %v2157, 100.0
        %v2221 = vmul.f32 %v1965, 100.0
        %v2222 = vmul.f32 %v2030, 100.0
        %v2223 = vmul.f32 %v2095, 100.0
        %v2224 = vmul.f32 %v2160, 100.0
        %v2225 = vmul.f32 %v1968, 100.0
        %v2226 = vmul.f32 %v2033, 100.0
        %v2227 = vmul.f32 %v2098, 100.0
        %v2228 = vmul.f32 %v2163, 100.0
        %v2229 = vmax.f32 %v1923, 0.0
        %v2230 = vmax.f32 %v1988, 0.0
        %v2231 = vmax.f32 %v2053, 0.0
        %v2232 = vmax.f32 %v2118, 0.0
        %v2233 = vmax.f32 %v1926, 0.0
        %v2234 = vmax.f32 %v1991, 0.0
        %v2235 = vmax.f32 %v2056, 0.0
        %v2236 = vmax.f32 %v2121, 0.0
        %v2237 = vmax.f32 %v1929, 0.0
        %v2238 = vmax.f32 %v1994, 0.0
        %v2239 = vmax.f32 %v2059, 0.0
        %v2240 = vmax.f32 %v2124, 0.0
        %v2241 = vmax.f32 %v1932, 0.0
        %v2242 = vmax.f32 %v1997, 0.0
        %v2243 = vmax.f32 %v2062, 0.0
        %v2244 = vmax.f32 %v2127, 0.0
        %v2245 = vmax.f32 %v1935, 0.0
        %v2246 = vmax.f32 %v2000, 0.0
        %v2247 = vmax.f32 %v2065, 0.0
        %v2248 = vmax.f32 %v2130, 0.0
        %v2249 = vmax.f32 %v1938, 0.0
        %v2250 = vmax.f32 %v2003, 0.0
        %v2251 = vmax.f32 %v2068, 0.0
        %v2252 = vmax.f32 %v2133, 0.0
        %v2253 = vmax.f32 %v1941, 0.0
        %v2254 = vmax.f32 %v2006, 0.0
        %v2255 = vmax.f32 %v2071, 0.0
        %v2256 = vmax.f32 %v2136, 0.0
        %v2257 = vmax.f32 %v1944, 0.0
        %v2258 = vmax.f32 %v2009, 0.0
        %v2259 = vmax.f32 %v2074, 0.0
        %v2260 = vmax.f32 %v2139, 0.0
        %v2261 = vmax.f32 %v1947, 0.0
        %v2262 = vmax.f32 %v2012, 0.0
        %v2263 = vmax.f32 %v2077, 0.0
        %v2264 = vmax.f32 %v2142, 0.0
        %v2265 = vmax.f32 %v1950, 0.0
        %v2266 = vmax.f32 %v2015, 0.0
        %v2267 = vmax.f32 %v2080, 0.0
        %v2268 = vmax.f32 %v2145, 0.0
        %v2269 = vmax.f32 %v1953, 0.0
        %v2270 = vmax.f32 %v2018, 0.0
        %v2271 = vmax.f32 %v2083, 0.0
        %v2272 = vmax.f32 %v2148, 0.0
        %v2273 = vmax.f32 %v1956, 0.0
        %v2274 = vmax.f32 %v2021, 0.0
        %v2275 = vmax.f32 %v2086, 0.0
        %v2276 = vmax.f32 %v2151, 0.0
        %v2277 = vmax.f32 %v1959, 0.0
        %v2278 = vmax.f32 %v2024, 0.0
        %v2279 = vmax.f32 %v2089, 0.0
        %v2280 = vmax.f32 %v2154, 0.0
        %v2281 = vmax.f32 %v1962, 0.0
        %v2282 = vmax.f32 %v2027, 0.0
        %v2283 = vmax.f32 %v2092, 0.0
        %v2284 = vmax.f32 %v2157, 0.0
        %v2285 = vmax.f32 %v1965, 0.0
        %v2286 = vmax.f32 %v2030, 0.0
        %v2287 = vmax.f32 %v2095, 0.0
        %v2288 = vmax.f32 %v2160, 0.0
        %v2289 = vmax.f32 %v1968, 0.0
        %v2290 = vmax.f32 %v2033, 0.0
        %v2291 = vmax.f32 %v2098, 0.0
        %v2292 = vmax.f32 %v2163, 0.0
        %v2293 = vand.u32 2147483647, %v2165
        %v2294 = vand.u32 2147483647, %v2166
        %v2295 = vand.u32 2147483647, %v2167
        %v2296 = vand.u32 2147483647, %v2168
        %v2297 = vand.u32 2147483647, %v2169
        %v2298 = vand.u32 2147483647, %v2170
        %v2299 = vand.u32 2147483647, %v2171
        %v2300 = vand.u32 2147483647, %v2172
        %v2301 = vand.u32 2147483647, %v2173
        %v2302 = vand.u32 2147483647, %v2174
        %v2303 = vand.u32 2147483647, %v2175
        %v2304 = vand.u32 2147483647, %v2176
        %v2305 = vand.u32 2147483647, %v2177
        %v2306 = vand.u32 2147483647, %v2178
        %v2307 = vand.u32 2147483647, %v2179
        %v2308 = vand.u32 2147483647, %v2180
        %v2309 = vand.u32 2147483647, %v2181
        %v2310 = vand.u32 2147483647, %v2182
        %v2311 = vand.u32 2147483647, %v2183
        %v2312 = vand.u32 2147483647, %v2184
        %v2313 = vand.u32 2147483647, %v2185
        %v2314 = vand.u32 2147483647, %v2186
        %v2315 = vand.u32 2147483647, %v2187
        %v2316 = vand.u32 2147483647, %v2188
        %v2317 = vand.u32 2147483647, %v2189
        %v2318 = vand.u32 2147483647, %v2190
        %v2319 = vand.u32 2147483647, %v2191
        %v2320 = vand.u32 2147483647, %v2192
        %v2321 = vand.u32 2147483647, %v2193
        %v2322 = vand.u32 2147483647, %v2194
        %v2323 = vand.u32 2147483647, %v2195
        %v2324 = vand.u32 2147483647, %v2196
        %v2325 = vand.u32 2147483647, %v2197
        %v2326 = vand.u32 2147483647, %v2198
        %v2327 = vand.u32 2147483647, %v2199
        %v2328 = vand.u32 2147483647, %v2200
        %v2329 = vand.u32 2147483647, %v2201
        %v2330 = vand.u32 2147483647, %v2202
        %v2331 = vand.u32 2147483647, %v2203
        %v2332 = vand.u32 2147483647, %v2204
        %v2333 = vand.u32 2147483647, %v2205
        %v2334 = vand.u32 2147483647, %v2206
        %v2335 = vand.u32 2147483647, %v2207
        %v2336 = vand.u32 2147483647, %v2208
        %v2337 = vand.u32 2147483647, %v2209
        %v2338 = vand.u32 2147483647, %v2210
        %v2339 = vand.u32 2147483647, %v2211
        %v2340 = vand.u32 2147483647, %v2212
        %v2341 = vand.u32 2147483647, %v2213
        %v2342 = vand.u32 2147483647, %v2214
        %v2343 = vand.u32 2147483647, %v2215
        %v2344 = vand.u32 2147483647, %v2216
        %v2345 = vand.u32 2147483647, %v2217
        %v2346 = vand.u32 2147483647, %v2218
        %v2347 = vand.u32 2147483647, %v2219
        %v2348 = vand.u32 2147483647, %v2220
        %v2349 = vand.u32 2147483647, %v2221
        %v2350 = vand.u32 2147483647, %v2222
        %v2351 = vand.u32 2147483647, %v2223
        %v2352 = vand.u32 2147483647, %v2224
        %v2353 = vand.u32 2147483647, %v2225
        %v2354 = vand.u32 2147483647, %v2226
        %v2355 = vand.u32 2147483647, %v2227
        %v2356 = vand.u32 2147483647, %v2228
        %v2357 = vsub.f32 0.0, %v2293
        %v2358 = vsub.f32 0.0, %v2294
        %v2359 = vsub.f32 0.0, %v2295
        %v2360 = vsub.f32 0.0, %v2296
        %v2361 = vsub.f32 0.0, %v2297
        %v2362 = vsub.f32 0.0, %v2298
        %v2363 = vsub.f32 0.0, %v2299
        %v2364 = vsub.f32 0.0, %v2300
        %v2365 = vsub.f32 0.0, %v2301
        %v2366 = vsub.f32 0.0, %v2302
        %v2367 = vsub.f32 0.0, %v2303
        %v2368 = vsub.f32 0.0, %v2304
        %v2369 = vsub.f32 0.0, %v2305
        %v2370 = vsub.f32 0.0, %v2306
        %v2371 = vsub.f32 0.0, %v2307
        %v2372 = vsub.f32 0.0, %v2308
        %v2373 = vsub.f32 0.0, %v2309
        %v2374 = vsub.f32 0.0, %v2310
        %v2375 = vsub.f32 0.0, %v2311
        %v2376 = vsub.f32 0.0, %v2312
        %v2377 = vsub.f32 0.0, %v2313
        %v2378 = vsub.f32 0.0, %v2314
        %v2379 = vsub.f32 0.0, %v2315
        %v2380 = vsub.f32 0.0, %v2316
        %v2381 = vsub.f32 0.0, %v2317
        %v2382 = vsub.f32 0.0, %v2318
        %v2383 = vsub.f32 0.0, %v2319
        %v2384 = vsub.f32 0.0, %v2320
        %v2385 = vsub.f32 0.0, %v2321
        %v2386 = vsub.f32 0.0, %v2322
        %v2387 = vsub.f32 0.0, %v2323
        %v2388 = vsub.f32 0.0, %v2324
        %v2389 = vsub.f32 0.0, %v2325
        %v2390 = vsub.f32 0.0, %v2326
        %v2391 = vsub.f32 0.0, %v2327
        %v2392 = vsub.f32 0.0, %v2328
        %v2393 = vsub.f32 0.0, %v2329
        %v2394 = vsub.f32 0.0, %v2330
        %v2395 = vsub.f32 0.0, %v2331
        %v2396 = vsub.f32 0.0, %v2332
        %v2397 = vsub.f32 0.0, %v2333
        %v2398 = vsub.f32 0.0, %v2334
        %v2399 = vsub.f32 0.0, %v2335
        %v2400 = vsub.f32 0.0, %v2336
        %v2401 = vsub.f32 0.0, %v2337
        %v2402 = vsub.f32 0.0, %v2338
        %v2403 = vsub.f32 0.0, %v2339
        %v2404 = vsub.f32 0.0, %v2340
        %v2405 = vsub.f32 0.0, %v2341
        %v2406 = vsub.f32 0.0, %v2342
        %v2407 = vsub.f32 0.0, %v2343
        %v2408 = vsub.f32 0.0, %v2344
        %v2409 = vsub.f32 0.0, %v2345
        %v2410 = vsub.f32 0.0, %v2346
        %v2411 = vsub.f32 0.0, %v2347
        %v2412 = vsub.f32 0.0, %v2348
        %v2413 = vsub.f32 0.0, %v2349
        %v2414 = vsub.f32 0.0, %v2350
        %v2415 = vsub.f32 0.0, %v2351
        %v2416 = vsub.f32 0.0, %v2352
        %v2417 = vsub.f32 0.0, %v2353
        %v2418 = vsub.f32 0.0, %v2354
        %v2419 = vsub.f32 0.0, %v2355
        %v2420 = vsub.f32 0.0, %v2356
        %v2421 = vmul.f32 %v2357, 1.442695
        %v2422 = vpow.pop %v2421
        %v2423 = vmul.f32 %v2358, 1.442695
        %v2424 = vpow.pop %v2423
        %v2425 = vmul.f32 %v2359, 1.442695
        %v2426 = vpow.pop %v2425
        %v2427 = vmul.f32 %v2360, 1.442695
        %v2428 = vpow.pop %v2427
        %v2429 = vmul.f32 %v2361, 1.442695
        %v2430 = vpow.pop %v2429
        %v2431 = vmul.f32 %v2362, 1.442695
        %v2432 = vpow.pop %v2431
        %v2433 = vmul.f32 %v2363, 1.442695
        %v2434 = vpow.pop %v2433
        %v2435 = vmul.f32 %v2364, 1.442695
        %v2436 = vpow.pop %v2435
        %v2437 = vmul.f32 %v2365, 1.442695
        %v2438 = vpow.pop %v2437
        %v2439 = vmul.f32 %v2366, 1.442695
        %v2440 = vpow.pop %v2439
        %v2441 = vmul.f32 %v2367, 1.442695
        %v2442 = vpow.pop %v2441
        %v2443 = vmul.f32 %v2368, 1.442695
        %v2444 = vpow.pop %v2443
        %v2445 = vmul.f32 %v2369, 1.442695
        %v2446 = vpow.pop %v2445
        %v2447 = vmul.f32 %v2370, 1.442695
        %v2448 = vpow.pop %v2447
        %v2449 = vmul.f32 %v2371, 1.442695
        %v2450 = vpow.pop %v2449
        %v2451 = vmul.f32 %v2372, 1.442695
        %v2452 = vpow.pop %v2451
        %v2453 = vmul.f32 %v2373, 1.442695
        %v2454 = vpow.pop %v2453
        %v2455 = vmul.f32 %v2374, 1.442695
        %v2456 = vpow.pop %v2455
        %v2457 = vmul.f32 %v2375, 1.442695
        %v2458 = vpow.pop %v2457
        %v2459 = vmul.f32 %v2376, 1.442695
        %v2460 = vpow.pop %v2459
        %v2461 = vmul.f32 %v2377, 1.442695
        %v2462 = vpow.pop %v2461
        %v2463 = vmul.f32 %v2378, 1.442695
        %v2464 = vpow.pop %v2463
        %v2465 = vmul.f32 %v2379, 1.442695
        %v2466 = vpow.pop %v2465
        %v2467 = vmul.f32 %v2380, 1.442695
        %v2468 = vpow.pop %v2467
        %v2469 = vmul.f32 %v2381, 1.442695
        %v2470 = vpow.pop %v2469
        %v2471 = vmul.f32 %v2382, 1.442695
        %v2472 = vpow.pop %v2471
        %v2473 = vmul.f32 %v2383, 1.442695
        %v2474 = vpow.pop %v2473
        %v2475 = vmul.f32 %v2384, 1.442695
        %v2476 = vpow.pop %v2475
        %v2477 = vmul.f32 %v2385, 1.442695
        %v2478 = vpow.pop %v2477
        %v2479 = vmul.f32 %v2386, 1.442695
        %v2480 = vpow.pop %v2479
        %v2481 = vmul.f32 %v2387, 1.442695
        %v2482 = vpow.pop %v2481
        %v2483 = vmul.f32 %v2388, 1.442695
        %v2484 = vpow.pop %v2483
        %v2485 = vmul.f32 %v2389, 1.442695
        %v2486 = vpow.pop %v2485
        %v2487 = vmul.f32 %v2390, 1.442695
        %v2488 = vpow.pop %v2487
        %v2489 = vmul.f32 %v2391, 1.442695
        %v2490 = vpow.pop %v2489
        %v2491 = vmul.f32 %v2392, 1.442695
        %v2492 = vpow.pop %v2491
        %v2493 = vmul.f32 %v2393, 1.442695
        %v2494 = vpow.pop %v2493
        %v2495 = vmul.f32 %v2394, 1.442695
        %v2496 = vpow.pop %v2495
        %v2497 = vmul.f32 %v2395, 1.442695
        %v2498 = vpow.pop %v2497
        %v2499 = vmul.f32 %v2396, 1.442695
        %v2500 = vpow.pop %v2499
        %v2501 = vmul.f32 %v2397, 1.442695
        %v2502 = vpow.pop %v2501
        %v2503 = vmul.f32 %v2398, 1.442695
        %v2504 = vpow.pop %v2503
        %v2505 = vmul.f32 %v2399, 1.442695
        %v2506 = vpow.pop %v2505
        %v2507 = vmul.f32 %v2400, 1.442695
        %v2508 = vpow.pop %v2507
        %v2509 = vmul.f32 %v2401, 1.442695
        %v2510 = vpow.pop %v2509
        %v2511 = vmul.f32 %v2402, 1.442695
        %v2512 = vpow.pop %v2511
        %v2513 = vmul.f32 %v2403, 1.442695
        %v2514 = vpow.pop %v2513
        %v2515 = vmul.f32 %v2404, 1.442695
        %v2516 = vpow.pop %v2515
        %v2517 = vmul.f32 %v2405, 1.442695
        %v2518 = vpow.pop %v2517
        %v2519 = vmul.f32 %v2406, 1.442695
        %v2520 = vpow.pop %v2519
        %v2521 = vmul.f32 %v2407, 1.442695
        %v2522 = vpow.pop %v2521
        %v2523 = vmul.f32 %v2408, 1.442695
        %v2524 = vpow.pop %v2523
        %v2525 = vmul.f32 %v2409, 1.442695
        %v2526 = vpow.pop %v2525
        %v2527 = vmul.f32 %v2410, 1.442695
        %v2528 = vpow.pop %v2527
        %v2529 = vmul.f32 %v2411, 1.442695
        %v2530 = vpow.pop %v2529
        %v2531 = vmul.f32 %v2412, 1.442695
        %v2532 = vpow.pop %v2531
        %v2533 = vmul.f32 %v2413, 1.442695
        %v2534 = vpow.pop %v2533
        %v2535 = vmul.f32 %v2414, 1.442695
        %v2536 = vpow.pop %v2535
        %v2537 = vmul.f32 %v2415, 1.442695
        %v2538 = vpow.pop %v2537
        %v2539 = vmul.f32 %v2416, 1.442695
        %v2540 = vpow.pop %v2539
        %v2541 = vmul.f32 %v2417, 1.442695
        %v2542 = vpow.pop %v2541
        %v2543 = vmul.f32 %v2418, 1.442695
        %v2544 = vpow.pop %v2543
        %v2545 = vmul.f32 %v2419, 1.442695
        %v2546 = vpow.pop %v2545
        %v2547 = vmul.f32 %v2420, 1.442695
        %v2548 = vpow.pop %v2547
        %v2549 = vadd.f32 %v2422, 1.0
        %v2550 = vlog2.pop %v2549
        %v2551 = vmul.f32 %v2550, 0.6931472
        %v2552 = vmul.f32 -0.5, %v2422
        %v2553 = vadd.f32 %v2552, 1.0
        %v2554 = vmul.f32 %v2553, %v2422
        %v2555 = vand.u32 2147483647, %v2422
        %vm2556 = vcmp.lt.f32.partialorder %v2555, 0.0004427343
        %v2557 = vsel %vm2556, %v2554, %v2551
        %v2558 = vadd.f32 %v2424, 1.0
        %v2559 = vlog2.pop %v2558
        %v2560 = vmul.f32 %v2559, 0.6931472
        %v2561 = vmul.f32 -0.5, %v2424
        %v2562 = vadd.f32 %v2561, 1.0
        %v2563 = vmul.f32 %v2562, %v2424
        %v2564 = vand.u32 2147483647, %v2424
        %vm2565 = vcmp.lt.f32.partialorder %v2564, 0.0004427343
        %v2566 = vsel %vm2565, %v2563, %v2560
        %v2567 = vadd.f32 %v2426, 1.0
        %v2568 = vlog2.pop %v2567
        %v2569 = vmul.f32 %v2568, 0.6931472
        %v2570 = vmul.f32 -0.5, %v2426
        %v2571 = vadd.f32 %v2570, 1.0
        %v2572 = vmul.f32 %v2571, %v2426
        %v2573 = vand.u32 2147483647, %v2426
        %vm2574 = vcmp.lt.f32.partialorder %v2573, 0.0004427343
        %v2575 = vsel %vm2574, %v2572, %v2569
        %v2576 = vadd.f32 %v2428, 1.0
        %v2577 = vlog2.pop %v2576
        %v2578 = vmul.f32 %v2577, 0.6931472
        %v2579 = vmul.f32 -0.5, %v2428
        %v2580 = vadd.f32 %v2579, 1.0
        %v2581 = vmul.f32 %v2580, %v2428
        %v2582 = vand.u32 2147483647, %v2428
        %vm2583 = vcmp.lt.f32.partialorder %v2582, 0.0004427343
        %v2584 = vsel %vm2583, %v2581, %v2578
        %v2585 = vadd.f32 %v2430, 1.0
        %v2586 = vlog2.pop %v2585
        %v2587 = vmul.f32 %v2586, 0.6931472
        %v2588 = vmul.f32 -0.5, %v2430
        %v2589 = vadd.f32 %v2588, 1.0
        %v2590 = vmul.f32 %v2589, %v2430
        %v2591 = vand.u32 2147483647, %v2430
        %vm2592 = vcmp.lt.f32.partialorder %v2591, 0.0004427343
        %v2593 = vsel %vm2592, %v2590, %v2587
        %v2594 = vadd.f32 %v2432, 1.0
        %v2595 = vlog2.pop %v2594
        %v2596 = vmul.f32 %v2595, 0.6931472
        %v2597 = vmul.f32 -0.5, %v2432
        %v2598 = vadd.f32 %v2597, 1.0
        %v2599 = vmul.f32 %v2598, %v2432
        %v2600 = vand.u32 2147483647, %v2432
        %vm2601 = vcmp.lt.f32.partialorder %v2600, 0.0004427343
        %v2602 = vsel %vm2601, %v2599, %v2596
        %v2603 = vadd.f32 %v2434, 1.0
        %v2604 = vlog2.pop %v2603
        %v2605 = vmul.f32 %v2604, 0.6931472
        %v2606 = vmul.f32 -0.5, %v2434
        %v2607 = vadd.f32 %v2606, 1.0
        %v2608 = vmul.f32 %v2607, %v2434
        %v2609 = vand.u32 2147483647, %v2434
        %vm2610 = vcmp.lt.f32.partialorder %v2609, 0.0004427343
        %v2611 = vsel %vm2610, %v2608, %v2605
        %v2612 = vadd.f32 %v2436, 1.0
        %v2613 = vlog2.pop %v2612
        %v2614 = vmul.f32 %v2613, 0.6931472
        %v2615 = vmul.f32 -0.5, %v2436
        %v2616 = vadd.f32 %v2615, 1.0
        %v2617 = vmul.f32 %v2616, %v2436
        %v2618 = vand.u32 2147483647, %v2436
        %vm2619 = vcmp.lt.f32.partialorder %v2618, 0.0004427343
        %v2620 = vsel %vm2619, %v2617, %v2614
        %v2621 = vadd.f32 %v2438, 1.0
        %v2622 = vlog2.pop %v2621
        %v2623 = vmul.f32 %v2622, 0.6931472
        %v2624 = vmul.f32 -0.5, %v2438
        %v2625 = vadd.f32 %v2624, 1.0
        %v2626 = vmul.f32 %v2625, %v2438
        %v2627 = vand.u32 2147483647, %v2438
        %vm2628 = vcmp.lt.f32.partialorder %v2627, 0.0004427343
        %v2629 = vsel %vm2628, %v2626, %v2623
        %v2630 = vadd.f32 %v2440, 1.0
        %v2631 = vlog2.pop %v2630
        %v2632 = vmul.f32 %v2631, 0.6931472
        %v2633 = vmul.f32 -0.5, %v2440
        %v2634 = vadd.f32 %v2633, 1.0
        %v2635 = vmul.f32 %v2634, %v2440
        %v2636 = vand.u32 2147483647, %v2440
        %vm2637 = vcmp.lt.f32.partialorder %v2636, 0.0004427343
        %v2638 = vsel %vm2637, %v2635, %v2632
        %v2639 = vadd.f32 %v2442, 1.0
        %v2640 = vlog2.pop %v2639
        %v2641 = vmul.f32 %v2640, 0.6931472
        %v2642 = vmul.f32 -0.5, %v2442
        %v2643 = vadd.f32 %v2642, 1.0
        %v2644 = vmul.f32 %v2643, %v2442
        %v2645 = vand.u32 2147483647, %v2442
        %vm2646 = vcmp.lt.f32.partialorder %v2645, 0.0004427343
        %v2647 = vsel %vm2646, %v2644, %v2641
        %v2648 = vadd.f32 %v2444, 1.0
        %v2649 = vlog2.pop %v2648
        %v2650 = vmul.f32 %v2649, 0.6931472
        %v2651 = vmul.f32 -0.5, %v2444
        %v2652 = vadd.f32 %v2651, 1.0
        %v2653 = vmul.f32 %v2652, %v2444
        %v2654 = vand.u32 2147483647, %v2444
        %vm2655 = vcmp.lt.f32.partialorder %v2654, 0.0004427343
        %v2656 = vsel %vm2655, %v2653, %v2650
        %v2657 = vadd.f32 %v2446, 1.0
        %v2658 = vlog2.pop %v2657
        %v2659 = vmul.f32 %v2658, 0.6931472
        %v2660 = vmul.f32 -0.5, %v2446
        %v2661 = vadd.f32 %v2660, 1.0
        %v2662 = vmul.f32 %v2661, %v2446
        %v2663 = vand.u32 2147483647, %v2446
        %vm2664 = vcmp.lt.f32.partialorder %v2663, 0.0004427343
        %v2665 = vsel %vm2664, %v2662, %v2659
        %v2666 = vadd.f32 %v2448, 1.0
        %v2667 = vlog2.pop %v2666
        %v2668 = vmul.f32 %v2667, 0.6931472
        %v2669 = vmul.f32 -0.5, %v2448
        %v2670 = vadd.f32 %v2669, 1.0
        %v2671 = vmul.f32 %v2670, %v2448
        %v2672 = vand.u32 2147483647, %v2448
        %vm2673 = vcmp.lt.f32.partialorder %v2672, 0.0004427343
        %v2674 = vsel %vm2673, %v2671, %v2668
        %v2675 = vadd.f32 %v2450, 1.0
        %v2676 = vlog2.pop %v2675
        %v2677 = vmul.f32 %v2676, 0.6931472
        %v2678 = vmul.f32 -0.5, %v2450
        %v2679 = vadd.f32 %v2678, 1.0
        %v2680 = vmul.f32 %v2679, %v2450
        %v2681 = vand.u32 2147483647, %v2450
        %vm2682 = vcmp.lt.f32.partialorder %v2681, 0.0004427343
        %v2683 = vsel %vm2682, %v2680, %v2677
        %v2684 = vadd.f32 %v2452, 1.0
        %v2685 = vlog2.pop %v2684
        %v2686 = vmul.f32 %v2685, 0.6931472
        %v2687 = vmul.f32 -0.5, %v2452
        %v2688 = vadd.f32 %v2687, 1.0
        %v2689 = vmul.f32 %v2688, %v2452
        %v2690 = vand.u32 2147483647, %v2452
        %vm2691 = vcmp.lt.f32.partialorder %v2690, 0.0004427343
        %v2692 = vsel %vm2691, %v2689, %v2686
        %v2693 = vadd.f32 %v2454, 1.0
        %v2694 = vlog2.pop %v2693
        %v2695 = vmul.f32 %v2694, 0.6931472
        %v2696 = vmul.f32 -0.5, %v2454
        %v2697 = vadd.f32 %v2696, 1.0
        %v2698 = vmul.f32 %v2697, %v2454
        %v2699 = vand.u32 2147483647, %v2454
        %vm2700 = vcmp.lt.f32.partialorder %v2699, 0.0004427343
        %v2701 = vsel %vm2700, %v2698, %v2695
        %v2702 = vadd.f32 %v2456, 1.0
        %v2703 = vlog2.pop %v2702
        %v2704 = vmul.f32 %v2703, 0.6931472
        %v2705 = vmul.f32 -0.5, %v2456
        %v2706 = vadd.f32 %v2705, 1.0
        %v2707 = vmul.f32 %v2706, %v2456
        %v2708 = vand.u32 2147483647, %v2456
        %vm2709 = vcmp.lt.f32.partialorder %v2708, 0.0004427343
        %v2710 = vsel %vm2709, %v2707, %v2704
        %v2711 = vadd.f32 %v2458, 1.0
        %v2712 = vlog2.pop %v2711
        %v2713 = vmul.f32 %v2712, 0.6931472
        %v2714 = vmul.f32 -0.5, %v2458
        %v2715 = vadd.f32 %v2714, 1.0
        %v2716 = vmul.f32 %v2715, %v2458
        %v2717 = vand.u32 2147483647, %v2458
        %vm2718 = vcmp.lt.f32.partialorder %v2717, 0.0004427343
        %v2719 = vsel %vm2718, %v2716, %v2713
        %v2720 = vadd.f32 %v2460, 1.0
        %v2721 = vlog2.pop %v2720
        %v2722 = vmul.f32 %v2721, 0.6931472
        %v2723 = vmul.f32 -0.5, %v2460
        %v2724 = vadd.f32 %v2723, 1.0
        %v2725 = vmul.f32 %v2724, %v2460
        %v2726 = vand.u32 2147483647, %v2460
        %vm2727 = vcmp.lt.f32.partialorder %v2726, 0.0004427343
        %v2728 = vsel %vm2727, %v2725, %v2722
        %v2729 = vadd.f32 %v2462, 1.0
        %v2730 = vlog2.pop %v2729
        %v2731 = vmul.f32 %v2730, 0.6931472
        %v2732 = vmul.f32 -0.5, %v2462
        %v2733 = vadd.f32 %v2732, 1.0
        %v2734 = vmul.f32 %v2733, %v2462
        %v2735 = vand.u32 2147483647, %v2462
        %vm2736 = vcmp.lt.f32.partialorder %v2735, 0.0004427343
        %v2737 = vsel %vm2736, %v2734, %v2731
        %v2738 = vadd.f32 %v2464, 1.0
        %v2739 = vlog2.pop %v2738
        %v2740 = vmul.f32 %v2739, 0.6931472
        %v2741 = vmul.f32 -0.5, %v2464
        %v2742 = vadd.f32 %v2741, 1.0
        %v2743 = vmul.f32 %v2742, %v2464
        %v2744 = vand.u32 2147483647, %v2464
        %vm2745 = vcmp.lt.f32.partialorder %v2744, 0.0004427343
        %v2746 = vsel %vm2745, %v2743, %v2740
        %v2747 = vadd.f32 %v2466, 1.0
        %v2748 = vlog2.pop %v2747
        %v2749 = vmul.f32 %v2748, 0.6931472
        %v2750 = vmul.f32 -0.5, %v2466
        %v2751 = vadd.f32 %v2750, 1.0
        %v2752 = vmul.f32 %v2751, %v2466
        %v2753 = vand.u32 2147483647, %v2466
        %vm2754 = vcmp.lt.f32.partialorder %v2753, 0.0004427343
        %v2755 = vsel %vm2754, %v2752, %v2749
        %v2756 = vadd.f32 %v2468, 1.0
        %v2757 = vlog2.pop %v2756
        %v2758 = vmul.f32 %v2757, 0.6931472
        %v2759 = vmul.f32 -0.5, %v2468
        %v2760 = vadd.f32 %v2759, 1.0
        %v2761 = vmul.f32 %v2760, %v2468
        %v2762 = vand.u32 2147483647, %v2468
        %vm2763 = vcmp.lt.f32.partialorder %v2762, 0.0004427343
        %v2764 = vsel %vm2763, %v2761, %v2758
        %v2765 = vadd.f32 %v2470, 1.0
        %v2766 = vlog2.pop %v2765
        %v2767 = vmul.f32 %v2766, 0.6931472
        %v2768 = vmul.f32 -0.5, %v2470
        %v2769 = vadd.f32 %v2768, 1.0
        %v2770 = vmul.f32 %v2769, %v2470
        %v2771 = vand.u32 2147483647, %v2470
        %vm2772 = vcmp.lt.f32.partialorder %v2771, 0.0004427343
        %v2773 = vsel %vm2772, %v2770, %v2767
        %v2774 = vadd.f32 %v2472, 1.0
        %v2775 = vlog2.pop %v2774
        %v2776 = vmul.f32 %v2775, 0.6931472
        %v2777 = vmul.f32 -0.5, %v2472
        %v2778 = vadd.f32 %v2777, 1.0
        %v2779 = vmul.f32 %v2778, %v2472
        %v2780 = vand.u32 2147483647, %v2472
        %vm2781 = vcmp.lt.f32.partialorder %v2780, 0.0004427343
        %v2782 = vsel %vm2781, %v2779, %v2776
        %v2783 = vadd.f32 %v2474, 1.0
        %v2784 = vlog2.pop %v2783
        %v2785 = vmul.f32 %v2784, 0.6931472
        %v2786 = vmul.f32 -0.5, %v2474
        %v2787 = vadd.f32 %v2786, 1.0
        %v2788 = vmul.f32 %v2787, %v2474
        %v2789 = vand.u32 2147483647, %v2474
        %vm2790 = vcmp.lt.f32.partialorder %v2789, 0.0004427343
        %v2791 = vsel %vm2790, %v2788, %v2785
        %v2792 = vadd.f32 %v2476, 1.0
        %v2793 = vlog2.pop %v2792
        %v2794 = vmul.f32 %v2793, 0.6931472
        %v2795 = vmul.f32 -0.5, %v2476
        %v2796 = vadd.f32 %v2795, 1.0
        %v2797 = vmul.f32 %v2796, %v2476
        %v2798 = vand.u32 2147483647, %v2476
        %vm2799 = vcmp.lt.f32.partialorder %v2798, 0.0004427343
        %v2800 = vsel %vm2799, %v2797, %v2794
        %v2801 = vadd.f32 %v2478, 1.0
        %v2802 = vlog2.pop %v2801
        %v2803 = vmul.f32 %v2802, 0.6931472
        %v2804 = vmul.f32 -0.5, %v2478
        %v2805 = vadd.f32 %v2804, 1.0
        %v2806 = vmul.f32 %v2805, %v2478
        %v2807 = vand.u32 2147483647, %v2478
        %vm2808 = vcmp.lt.f32.partialorder %v2807, 0.0004427343
        %v2809 = vsel %vm2808, %v2806, %v2803
        %v2810 = vadd.f32 %v2480, 1.0
        %v2811 = vlog2.pop %v2810
        %v2812 = vmul.f32 %v2811, 0.6931472
        %v2813 = vmul.f32 -0.5, %v2480
        %v2814 = vadd.f32 %v2813, 1.0
        %v2815 = vmul.f32 %v2814, %v2480
        %v2816 = vand.u32 2147483647, %v2480
        %vm2817 = vcmp.lt.f32.partialorder %v2816, 0.0004427343
        %v2818 = vsel %vm2817, %v2815, %v2812
        %v2819 = vadd.f32 %v2482, 1.0
        %v2820 = vlog2.pop %v2819
        %v2821 = vmul.f32 %v2820, 0.6931472
        %v2822 = vmul.f32 -0.5, %v2482
        %v2823 = vadd.f32 %v2822, 1.0
        %v2824 = vmul.f32 %v2823, %v2482
        %v2825 = vand.u32 2147483647, %v2482
        %vm2826 = vcmp.lt.f32.partialorder %v2825, 0.0004427343
        %v2827 = vsel %vm2826, %v2824, %v2821
        %v2828 = vadd.f32 %v2484, 1.0
        %v2829 = vlog2.pop %v2828
        %v2830 = vmul.f32 %v2829, 0.6931472
        %v2831 = vmul.f32 -0.5, %v2484
        %v2832 = vadd.f32 %v2831, 1.0
        %v2833 = vmul.f32 %v2832, %v2484
        %v2834 = vand.u32 2147483647, %v2484
        %vm2835 = vcmp.lt.f32.partialorder %v2834, 0.0004427343
        %v2836 = vsel %vm2835, %v2833, %v2830
        %v2837 = vadd.f32 %v2486, 1.0
        %v2838 = vlog2.pop %v2837
        %v2839 = vmul.f32 %v2838, 0.6931472
        %v2840 = vmul.f32 -0.5, %v2486
        %v2841 = vadd.f32 %v2840, 1.0
        %v2842 = vmul.f32 %v2841, %v2486
        %v2843 = vand.u32 2147483647, %v2486
        %vm2844 = vcmp.lt.f32.partialorder %v2843, 0.0004427343
        %v2845 = vsel %vm2844, %v2842, %v2839
        %v2846 = vadd.f32 %v2488, 1.0
        %v2847 = vlog2.pop %v2846
        %v2848 = vmul.f32 %v2847, 0.6931472
        %v2849 = vmul.f32 -0.5, %v2488
        %v2850 = vadd.f32 %v2849, 1.0
        %v2851 = vmul.f32 %v2850, %v2488
        %v2852 = vand.u32 2147483647, %v2488
        %vm2853 = vcmp.lt.f32.partialorder %v2852, 0.0004427343
        %v2854 = vsel %vm2853, %v2851, %v2848
        %v2855 = vadd.f32 %v2490, 1.0
        %v2856 = vlog2.pop %v2855
        %v2857 = vmul.f32 %v2856, 0.6931472
        %v2858 = vmul.f32 -0.5, %v2490
        %v2859 = vadd.f32 %v2858, 1.0
        %v2860 = vmul.f32 %v2859, %v2490
        %v2861 = vand.u32 2147483647, %v2490
        %vm2862 = vcmp.lt.f32.partialorder %v2861, 0.0004427343
        %v2863 = vsel %vm2862, %v2860, %v2857
        %v2864 = vadd.f32 %v2492, 1.0
        %v2865 = vlog2.pop %v2864
        %v2866 = vmul.f32 %v2865, 0.6931472
        %v2867 = vmul.f32 -0.5, %v2492
        %v2868 = vadd.f32 %v2867, 1.0
        %v2869 = vmul.f32 %v2868, %v2492
        %v2870 = vand.u32 2147483647, %v2492
        %vm2871 = vcmp.lt.f32.partialorder %v2870, 0.0004427343
        %v2872 = vsel %vm2871, %v2869, %v2866
        %v2873 = vadd.f32 %v2494, 1.0
        %v2874 = vlog2.pop %v2873
        %v2875 = vmul.f32 %v2874, 0.6931472
        %v2876 = vmul.f32 -0.5, %v2494
        %v2877 = vadd.f32 %v2876, 1.0
        %v2878 = vmul.f32 %v2877, %v2494
        %v2879 = vand.u32 2147483647, %v2494
        %vm2880 = vcmp.lt.f32.partialorder %v2879, 0.0004427343
        %v2881 = vsel %vm2880, %v2878, %v2875
        %v2882 = vadd.f32 %v2496, 1.0
        %v2883 = vlog2.pop %v2882
        %v2884 = vmul.f32 %v2883, 0.6931472
        %v2885 = vmul.f32 -0.5, %v2496
        %v2886 = vadd.f32 %v2885, 1.0
        %v2887 = vmul.f32 %v2886, %v2496
        %v2888 = vand.u32 2147483647, %v2496
        %vm2889 = vcmp.lt.f32.partialorder %v2888, 0.0004427343
        %v2890 = vsel %vm2889, %v2887, %v2884
        %v2891 = vadd.f32 %v2498, 1.0
        %v2892 = vlog2.pop %v2891
        %v2893 = vmul.f32 %v2892, 0.6931472
        %v2894 = vmul.f32 -0.5, %v2498
        %v2895 = vadd.f32 %v2894, 1.0
        %v2896 = vmul.f32 %v2895, %v2498
        %v2897 = vand.u32 2147483647, %v2498
        %vm2898 = vcmp.lt.f32.partialorder %v2897, 0.0004427343
        %v2899 = vsel %vm2898, %v2896, %v2893
        %v2900 = vadd.f32 %v2500, 1.0
        %v2901 = vlog2.pop %v2900
        %v2902 = vmul.f32 %v2901, 0.6931472
        %v2903 = vmul.f32 -0.5, %v2500
        %v2904 = vadd.f32 %v2903, 1.0
        %v2905 = vmul.f32 %v2904, %v2500
        %v2906 = vand.u32 2147483647, %v2500
        %vm2907 = vcmp.lt.f32.partialorder %v2906, 0.0004427343
        %v2908 = vsel %vm2907, %v2905, %v2902
        %v2909 = vadd.f32 %v2502, 1.0
        %v2910 = vlog2.pop %v2909
        %v2911 = vmul.f32 %v2910, 0.6931472
        %v2912 = vmul.f32 -0.5, %v2502
        %v2913 = vadd.f32 %v2912, 1.0
        %v2914 = vmul.f32 %v2913, %v2502
        %v2915 = vand.u32 2147483647, %v2502
        %vm2916 = vcmp.lt.f32.partialorder %v2915, 0.0004427343
        %v2917 = vsel %vm2916, %v2914, %v2911
        %v2918 = vadd.f32 %v2504, 1.0
        %v2919 = vlog2.pop %v2918
        %v2920 = vmul.f32 %v2919, 0.6931472
        %v2921 = vmul.f32 -0.5, %v2504
        %v2922 = vadd.f32 %v2921, 1.0
        %v2923 = vmul.f32 %v2922, %v2504
        %v2924 = vand.u32 2147483647, %v2504
        %vm2925 = vcmp.lt.f32.partialorder %v2924, 0.0004427343
        %v2926 = vsel %vm2925, %v2923, %v2920
        %v2927 = vadd.f32 %v2506, 1.0
        %v2928 = vlog2.pop %v2927
        %v2929 = vmul.f32 %v2928, 0.6931472
        %v2930 = vmul.f32 -0.5, %v2506
        %v2931 = vadd.f32 %v2930, 1.0
        %v2932 = vmul.f32 %v2931, %v2506
        %v2933 = vand.u32 2147483647, %v2506
        %vm2934 = vcmp.lt.f32.partialorder %v2933, 0.0004427343
        %v2935 = vsel %vm2934, %v2932, %v2929
        %v2936 = vadd.f32 %v2508, 1.0
        %v2937 = vlog2.pop %v2936
        %v2938 = vmul.f32 %v2937, 0.6931472
        %v2939 = vmul.f32 -0.5, %v2508
        %v2940 = vadd.f32 %v2939, 1.0
        %v2941 = vmul.f32 %v2940, %v2508
        %v2942 = vand.u32 2147483647, %v2508
        %vm2943 = vcmp.lt.f32.partialorder %v2942, 0.0004427343
        %v2944 = vsel %vm2943, %v2941, %v2938
        %v2945 = vadd.f32 %v2510, 1.0
        %v2946 = vlog2.pop %v2945
        %v2947 = vmul.f32 %v2946, 0.6931472
        %v2948 = vmul.f32 -0.5, %v2510
        %v2949 = vadd.f32 %v2948, 1.0
        %v2950 = vmul.f32 %v2949, %v2510
        %v2951 = vand.u32 2147483647, %v2510
        %vm2952 = vcmp.lt.f32.partialorder %v2951, 0.0004427343
        %v2953 = vsel %vm2952, %v2950, %v2947
        %v2954 = vadd.f32 %v2512, 1.0
        %v2955 = vlog2.pop %v2954
        %v2956 = vmul.f32 %v2955, 0.6931472
        %v2957 = vmul.f32 -0.5, %v2512
        %v2958 = vadd.f32 %v2957, 1.0
        %v2959 = vmul.f32 %v2958, %v2512
        %v2960 = vand.u32 2147483647, %v2512
        %vm2961 = vcmp.lt.f32.partialorder %v2960, 0.0004427343
        %v2962 = vsel %vm2961, %v2959, %v2956
        %v2963 = vadd.f32 %v2514, 1.0
        %v2964 = vlog2.pop %v2963
        %v2965 = vmul.f32 %v2964, 0.6931472
        %v2966 = vmul.f32 -0.5, %v2514
        %v2967 = vadd.f32 %v2966, 1.0
        %v2968 = vmul.f32 %v2967, %v2514
        %v2969 = vand.u32 2147483647, %v2514
        %vm2970 = vcmp.lt.f32.partialorder %v2969, 0.0004427343
        %v2971 = vsel %vm2970, %v2968, %v2965
        %v2972 = vadd.f32 %v2516, 1.0
        %v2973 = vlog2.pop %v2972
        %v2974 = vmul.f32 %v2973, 0.6931472
        %v2975 = vmul.f32 -0.5, %v2516
        %v2976 = vadd.f32 %v2975, 1.0
        %v2977 = vmul.f32 %v2976, %v2516
        %v2978 = vand.u32 2147483647, %v2516
        %vm2979 = vcmp.lt.f32.partialorder %v2978, 0.0004427343
        %v2980 = vsel %vm2979, %v2977, %v2974
        %v2981 = vadd.f32 %v2518, 1.0
        %v2982 = vlog2.pop %v2981
        %v2983 = vmul.f32 %v2982, 0.6931472
        %v2984 = vmul.f32 -0.5, %v2518
        %v2985 = vadd.f32 %v2984, 1.0
        %v2986 = vmul.f32 %v2985, %v2518
        %v2987 = vand.u32 2147483647, %v2518
        %vm2988 = vcmp.lt.f32.partialorder %v2987, 0.0004427343
        %v2989 = vsel %vm2988, %v2986, %v2983
        %v2990 = vadd.f32 %v2520, 1.0
        %v2991 = vlog2.pop %v2990
        %v2992 = vmul.f32 %v2991, 0.6931472
        %v2993 = vmul.f32 -0.5, %v2520
        %v2994 = vadd.f32 %v2993, 1.0
        %v2995 = vmul.f32 %v2994, %v2520
        %v2996 = vand.u32 2147483647, %v2520
        %vm2997 = vcmp.lt.f32.partialorder %v2996, 0.0004427343
        %v2998 = vsel %vm2997, %v2995, %v2992
        %v2999 = vadd.f32 %v2522, 1.0
        %v3000 = vlog2.pop %v2999
        %v3001 = vmul.f32 %v3000, 0.6931472
        %v3002 = vmul.f32 -0.5, %v2522
        %v3003 = vadd.f32 %v3002, 1.0
        %v3004 = vmul.f32 %v3003, %v2522
        %v3005 = vand.u32 2147483647, %v2522
        %vm3006 = vcmp.lt.f32.partialorder %v3005, 0.0004427343
        %v3007 = vsel %vm3006, %v3004, %v3001
        %v3008 = vadd.f32 %v2524, 1.0
        %v3009 = vlog2.pop %v3008
        %v3010 = vmul.f32 %v3009, 0.6931472
        %v3011 = vmul.f32 -0.5, %v2524
        %v3012 = vadd.f32 %v3011, 1.0
        %v3013 = vmul.f32 %v3012, %v2524
        %v3014 = vand.u32 2147483647, %v2524
        %vm3015 = vcmp.lt.f32.partialorder %v3014, 0.0004427343
        %v3016 = vsel %vm3015, %v3013, %v3010
        %v3017 = vadd.f32 %v2526, 1.0
        %v3018 = vlog2.pop %v3017
        %v3019 = vmul.f32 %v3018, 0.6931472
        %v3020 = vmul.f32 -0.5, %v2526
        %v3021 = vadd.f32 %v3020, 1.0
        %v3022 = vmul.f32 %v3021, %v2526
        %v3023 = vand.u32 2147483647, %v2526
        %vm3024 = vcmp.lt.f32.partialorder %v3023, 0.0004427343
        %v3025 = vsel %vm3024, %v3022, %v3019
        %v3026 = vadd.f32 %v2528, 1.0
        %v3027 = vlog2.pop %v3026
        %v3028 = vmul.f32 %v3027, 0.6931472
        %v3029 = vmul.f32 -0.5, %v2528
        %v3030 = vadd.f32 %v3029, 1.0
        %v3031 = vmul.f32 %v3030, %v2528
        %v3032 = vand.u32 2147483647, %v2528
        %vm3033 = vcmp.lt.f32.partialorder %v3032, 0.0004427343
        %v3034 = vsel %vm3033, %v3031, %v3028
        %v3035 = vadd.f32 %v2530, 1.0
        %v3036 = vlog2.pop %v3035
        %v3037 = vmul.f32 %v3036, 0.6931472
        %v3038 = vmul.f32 -0.5, %v2530
        %v3039 = vadd.f32 %v3038, 1.0
        %v3040 = vmul.f32 %v3039, %v2530
        %v3041 = vand.u32 2147483647, %v2530
        %vm3042 = vcmp.lt.f32.partialorder %v3041, 0.0004427343
        %v3043 = vsel %vm3042, %v3040, %v3037
        %v3044 = vadd.f32 %v2532, 1.0
        %v3045 = vlog2.pop %v3044
        %v3046 = vmul.f32 %v3045, 0.6931472
        %v3047 = vmul.f32 -0.5, %v2532
        %v3048 = vadd.f32 %v3047, 1.0
        %v3049 = vmul.f32 %v3048, %v2532
        %v3050 = vand.u32 2147483647, %v2532
        %vm3051 = vcmp.lt.f32.partialorder %v3050, 0.0004427343
        %v3052 = vsel %vm3051, %v3049, %v3046
        %v3053 = vadd.f32 %v2534, 1.0
        %v3054 = vlog2.pop %v3053
        %v3055 = vmul.f32 %v3054, 0.6931472
        %v3056 = vmul.f32 -0.5, %v2534
        %v3057 = vadd.f32 %v3056, 1.0
        %v3058 = vmul.f32 %v3057, %v2534
        %v3059 = vand.u32 2147483647, %v2534
        %vm3060 = vcmp.lt.f32.partialorder %v3059, 0.0004427343
        %v3061 = vsel %vm3060, %v3058, %v3055
        %v3062 = vadd.f32 %v2536, 1.0
        %v3063 = vlog2.pop %v3062
        %v3064 = vmul.f32 %v3063, 0.6931472
        %v3065 = vmul.f32 -0.5, %v2536
        %v3066 = vadd.f32 %v3065, 1.0
        %v3067 = vmul.f32 %v3066, %v2536
        %v3068 = vand.u32 2147483647, %v2536
        %vm3069 = vcmp.lt.f32.partialorder %v3068, 0.0004427343
        %v3070 = vsel %vm3069, %v3067, %v3064
        %v3071 = vadd.f32 %v2538, 1.0
        %v3072 = vlog2.pop %v3071
        %v3073 = vmul.f32 %v3072, 0.6931472
        %v3074 = vmul.f32 -0.5, %v2538
        %v3075 = vadd.f32 %v3074, 1.0
        %v3076 = vmul.f32 %v3075, %v2538
        %v3077 = vand.u32 2147483647, %v2538
        %vm3078 = vcmp.lt.f32.partialorder %v3077, 0.0004427343
        %v3079 = vsel %vm3078, %v3076, %v3073
        %v3080 = vadd.f32 %v2540, 1.0
        %v3081 = vlog2.pop %v3080
        %v3082 = vmul.f32 %v3081, 0.6931472
        %v3083 = vmul.f32 -0.5, %v2540
        %v3084 = vadd.f32 %v3083, 1.0
        %v3085 = vmul.f32 %v3084, %v2540
        %v3086 = vand.u32 2147483647, %v2540
        %vm3087 = vcmp.lt.f32.partialorder %v3086, 0.0004427343
        %v3088 = vsel %vm3087, %v3085, %v3082
        %v3089 = vadd.f32 %v2542, 1.0
        %v3090 = vlog2.pop %v3089
        %v3091 = vmul.f32 %v3090, 0.6931472
        %v3092 = vmul.f32 -0.5, %v2542
        %v3093 = vadd.f32 %v3092, 1.0
        %v3094 = vmul.f32 %v3093, %v2542
        %v3095 = vand.u32 2147483647, %v2542
        %vm3096 = vcmp.lt.f32.partialorder %v3095, 0.0004427343
        %v3097 = vsel %vm3096, %v3094, %v3091
        %v3098 = vadd.f32 %v2544, 1.0
        %v3099 = vlog2.pop %v3098
        %v3100 = vmul.f32 %v3099, 0.6931472
        %v3101 = vmul.f32 -0.5, %v2544
        %v3102 = vadd.f32 %v3101, 1.0
        %v3103 = vmul.f32 %v3102, %v2544
        %v3104 = vand.u32 2147483647, %v2544
        %vm3105 = vcmp.lt.f32.partialorder %v3104, 0.0004427343
        %v3106 = vsel %vm3105, %v3103, %v3100
        %v3107 = vadd.f32 %v2546, 1.0
        %v3108 = vlog2.pop %v3107
        %v3109 = vmul.f32 %v3108, 0.6931472
        %v3110 = vmul.f32 -0.5, %v2546
        %v3111 = vadd.f32 %v3110, 1.0
        %v3112 = vmul.f32 %v3111, %v2546
        %v3113 = vand.u32 2147483647, %v2546
        %vm3114 = vcmp.lt.f32.partialorder %v3113, 0.0004427343
        %v3115 = vsel %vm3114, %v3112, %v3109
        %v3116 = vadd.f32 %v2548, 1.0
        %v3117 = vlog2.pop %v3116
        %v3118 = vmul.f32 %v3117, 0.6931472
        %v3119 = vmul.f32 -0.5, %v2548
        %v3120 = vadd.f32 %v3119, 1.0
        %v3121 = vmul.f32 %v3120, %v2548
        %v3122 = vand.u32 2147483647, %v2548
        %vm3123 = vcmp.lt.f32.partialorder %v3122, 0.0004427343
        %v3124 = vsel %vm3123, %v3121, %v3118
        %v3125 = vmul.f32 %v2557, 0.01
        %v3126 = vmul.f32 %v2566, 0.01
        %v3127 = vmul.f32 %v2575, 0.01
        %v3128 = vmul.f32 %v2584, 0.01
        %v3129 = vmul.f32 %v2593, 0.01
        %v3130 = vmul.f32 %v2602, 0.01
        %v3131 = vmul.f32 %v2611, 0.01
        %v3132 = vmul.f32 %v2620, 0.01
        %v3133 = vmul.f32 %v2629, 0.01
        %v3134 = vmul.f32 %v2638, 0.01
        %v3135 = vmul.f32 %v2647, 0.01
        %v3136 = vmul.f32 %v2656, 0.01
        %v3137 = vmul.f32 %v2665, 0.01
        %v3138 = vmul.f32 %v2674, 0.01
        %v3139 = vmul.f32 %v2683, 0.01
        %v3140 = vmul.f32 %v2692, 0.01
        %v3141 = vmul.f32 %v2701, 0.01
        %v3142 = vmul.f32 %v2710, 0.01
        %v3143 = vmul.f32 %v2719, 0.01
        %v3144 = vmul.f32 %v2728, 0.01
        %v3145 = vmul.f32 %v2737, 0.01
        %v3146 = vmul.f32 %v2746, 0.01
        %v3147 = vmul.f32 %v2755, 0.01
        %v3148 = vmul.f32 %v2764, 0.01
        %v3149 = vmul.f32 %v2773, 0.01
        %v3150 = vmul.f32 %v2782, 0.01
        %v3151 = vmul.f32 %v2791, 0.01
        %v3152 = vmul.f32 %v2800, 0.01
        %v3153 = vmul.f32 %v2809, 0.01
        %v3154 = vmul.f32 %v2818, 0.01
        %v3155 = vmul.f32 %v2827, 0.01
        %v3156 = vmul.f32 %v2836, 0.01
        %v3157 = vmul.f32 %v2845, 0.01
        %v3158 = vmul.f32 %v2854, 0.01
        %v3159 = vmul.f32 %v2863, 0.01
        %v3160 = vmul.f32 %v2872, 0.01
        %v3161 = vmul.f32 %v2881, 0.01
        %v3162 = vmul.f32 %v2890, 0.01
        %v3163 = vmul.f32 %v2899, 0.01
        %v3164 = vmul.f32 %v2908, 0.01
        %v3165 = vmul.f32 %v2917, 0.01
        %v3166 = vmul.f32 %v2926, 0.01
        %v3167 = vmul.f32 %v2935, 0.01
        %v3168 = vmul.f32 %v2944, 0.01
        %v3169 = vmul.f32 %v2953, 0.01
        %v3170 = vmul.f32 %v2962, 0.01
        %v3171 = vmul.f32 %v2971, 0.01
        %v3172 = vmul.f32 %v2980, 0.01
        %v3173 = vmul.f32 %v2989, 0.01
        %v3174 = vmul.f32 %v2998, 0.01
        %v3175 = vmul.f32 %v3007, 0.01
        %v3176 = vmul.f32 %v3016, 0.01
        %v3177 = vmul.f32 %v3025, 0.01
        %v3178 = vmul.f32 %v3034, 0.01
        %v3179 = vmul.f32 %v3043, 0.01
        %v3180 = vmul.f32 %v3052, 0.01
        %v3181 = vmul.f32 %v3061, 0.01
        %v3182 = vmul.f32 %v3070, 0.01
        %v3183 = vmul.f32 %v3079, 0.01
        %v3184 = vmul.f32 %v3088, 0.01
        %v3185 = vmul.f32 %v3097, 0.01
        %v3186 = vmul.f32 %v3106, 0.01
        %v3187 = vmul.f32 %v3115, 0.01
        %v3188 = vmul.f32 %v3124, 0.01
        %v3189 = vadd.f32 %v2229, %v3125
        %v3190 = vadd.f32 %v2230, %v3126
        %v3191 = vadd.f32 %v2231, %v3127
        %v3192 = vadd.f32 %v2232, %v3128
        %v3193 = vadd.f32 %v2233, %v3129
        %v3194 = vadd.f32 %v2234, %v3130
        %v3195 = vadd.f32 %v2235, %v3131
        %v3196 = vadd.f32 %v2236, %v3132
        %v3197 = vadd.f32 %v2237, %v3133
        %v3198 = vadd.f32 %v2238, %v3134
        %v3199 = vadd.f32 %v2239, %v3135
        %v3200 = vadd.f32 %v2240, %v3136
        %v3201 = vadd.f32 %v2241, %v3137
        %v3202 = vadd.f32 %v2242, %v3138
        %v3203 = vadd.f32 %v2243, %v3139
        %v3204 = vadd.f32 %v2244, %v3140
        %v3205 = vadd.f32 %v2245, %v3141
        %v3206 = vadd.f32 %v2246, %v3142
        %v3207 = vadd.f32 %v2247, %v3143
        %v3208 = vadd.f32 %v2248, %v3144
        %v3209 = vadd.f32 %v2249, %v3145
        %v3210 = vadd.f32 %v2250, %v3146
        %v3211 = vadd.f32 %v2251, %v3147
        %v3212 = vadd.f32 %v2252, %v3148
        %v3213 = vadd.f32 %v2253, %v3149
        %v3214 = vadd.f32 %v2254, %v3150
        %v3215 = vadd.f32 %v2255, %v3151
        %v3216 = vadd.f32 %v2256, %v3152
        %v3217 = vadd.f32 %v2257, %v3153
        %v3218 = vadd.f32 %v2258, %v3154
        %v3219 = vadd.f32 %v2259, %v3155
        %v3220 = vadd.f32 %v2260, %v3156
        %v3221 = vadd.f32 %v2261, %v3157
        %v3222 = vadd.f32 %v2262, %v3158
        %v3223 = vadd.f32 %v2263, %v3159
        %v3224 = vadd.f32 %v2264, %v3160
        %v3225 = vadd.f32 %v2265, %v3161
        %v3226 = vadd.f32 %v2266, %v3162
        %v3227 = vadd.f32 %v2267, %v3163
        %v3228 = vadd.f32 %v2268, %v3164
        %v3229 = vadd.f32 %v2269, %v3165
        %v3230 = vadd.f32 %v2270, %v3166
        %v3231 = vadd.f32 %v2271, %v3167
        %v3232 = vadd.f32 %v2272, %v3168
        %v3233 = vadd.f32 %v2273, %v3169
        %v3234 = vadd.f32 %v2274, %v3170
        %v3235 = vadd.f32 %v2275, %v3171
        %v3236 = vadd.f32 %v2276, %v3172
        %v3237 = vadd.f32 %v2277, %v3173
        %v3238 = vadd.f32 %v2278, %v3174
        %v3239 = vadd.f32 %v2279, %v3175
        %v3240 = vadd.f32 %v2280, %v3176
        %v3241 = vadd.f32 %v2281, %v3177
        %v3242 = vadd.f32 %v2282, %v3178
        %v3243 = vadd.f32 %v2283, %v3179
        %v3244 = vadd.f32 %v2284, %v3180
        %v3245 = vadd.f32 %v2285, %v3181
        %v3246 = vadd.f32 %v2286, %v3182
        %v3247 = vadd.f32 %v2287, %v3183
        %v3248 = vadd.f32 %v2288, %v3184
        %v3249 = vadd.f32 %v2289, %v3185
        %v3250 = vadd.f32 %v2290, %v3186
        %v3251 = vadd.f32 %v2291, %v3187
        %v3252 = vadd.f32 %v2292, %v3188
        %v3253 = vld [vmem:[%s5] sm:$0x1]
        %s3254 = sld [smem:[#allocation2]]
        %v3255 = vstv %s3254
        %3256 = vmatpush.msra.mxu0 %v3249
        %3257 = vmatpush.msra.mxu0 %v3245
        %3258 = vmatpush.msra.mxu0 %v3241
        %3259 = vmatpush.msra.mxu0 %v3237
        %3260 = vmatpush.msra.mxu0 %v3233
        %3261 = vmatpush.msra.mxu0 %v3229
        %3262 = vmatpush.msra.mxu0 %v3225
        %3263 = vmatpush.msra.mxu0 %v3221
        %3264 = vmatpush.msra.mxu0 %v3217
        %3265 = vmatpush.msra.mxu0 %v3213
        %3266 = vmatpush.msra.mxu0 %v3209
        %3267 = vmatpush.msra.mxu0 %v3205
        %3268 = vmatpush.msra.mxu0 %v3201
        %3269 = vmatpush.msra.mxu0 %v3197
        %3270 = vmatpush.msra.mxu0 %v3193
        %3271 = vmatpush.msra.mxu0 %v3189
        %3272 = vmatmul.f32.gmra.mxu0 %v3253
        %v3273 = vpop.f32.mrf.mxu0
        %v3274 = vadd.f32 %v3255, %v3273
        %3275 = vdwg.mxu0
        %3276 = vmatpush.msra.mxu0 %v3250
        %3277 = vmatpush.msra.mxu0 %v3246
        %3278 = vmatpush.msra.mxu0 %v3242
        %3279 = vmatpush.msra.mxu0 %v3238
        %3280 = vmatpush.msra.mxu0 %v3234
        %3281 = vmatpush.msra.mxu0 %v3230
        %3282 = vmatpush.msra.mxu0 %v3226
        %3283 = vmatpush.msra.mxu0 %v3222
        %3284 = vmatpush.msra.mxu0 %v3218
        %3285 = vmatpush.msra.mxu0 %v3214
        %3286 = vmatpush.msra.mxu0 %v3210
        %3287 = vmatpush.msra.mxu0 %v3206
        %3288 = vmatpush.msra.mxu0 %v3202
        %3289 = vmatpush.msra.mxu0 %v3198
        %3290 = vmatpush.msra.mxu0 %v3194
        %3291 = vmatpush.msra.mxu0 %v3190
        %3292 = vmatmul.f32.gmra.mxu0 %v3253
        %v3293 = vpop.f32.mrf.mxu0
        %v3294 = vadd.f32 %v3255, %v3293
        %3295 = vdwg.mxu0
        %3296 = vmatpush.msra.mxu0 %v3251
        %3297 = vmatpush.msra.mxu0 %v3247
        %3298 = vmatpush.msra.mxu0 %v3243
        %3299 = vmatpush.msra.mxu0 %v3239
        %3300 = vmatpush.msra.mxu0 %v3235
        %3301 = vmatpush.msra.mxu0 %v3231
        %3302 = vmatpush.msra.mxu0 %v3227
        %3303 = vmatpush.msra.mxu0 %v3223
        %3304 = vmatpush.msra.mxu0 %v3219
        %3305 = vmatpush.msra.mxu0 %v3215
        %3306 = vmatpush.msra.mxu0 %v3211
        %3307 = vmatpush.msra.mxu0 %v3207
        %3308 = vmatpush.msra.mxu0 %v3203
        %3309 = vmatpush.msra.mxu0 %v3199
        %3310 = vmatpush.msra.mxu0 %v3195
        %3311 = vmatpush.msra.mxu0 %v3191
        %3312 = vmatmul.f32.gmra.mxu0 %v3253
        %v3313 = vpop.f32.mrf.mxu0
        %v3314 = vadd.f32 %v3255, %v3313
        %3315 = vdwg.mxu0
        %3316 = vmatpush.msra.mxu0 %v3252
        %3317 = vmatpush.msra.mxu0 %v3248
        %3318 = vmatpush.msra.mxu0 %v3244
        %3319 = vmatpush.msra.mxu0 %v3240
        %3320 = vmatpush.msra.mxu0 %v3236
        %3321 = vmatpush.msra.mxu0 %v3232
        %3322 = vmatpush.msra.mxu0 %v3228
        %3323 = vmatpush.msra.mxu0 %v3224
        %3324 = vmatpush.msra.mxu0 %v3220
        %3325 = vmatpush.msra.mxu0 %v3216
        %3326 = vmatpush.msra.mxu0 %v3212
        %3327 = vmatpush.msra.mxu0 %v3208
        %3328 = vmatpush.msra.mxu0 %v3204
        %3329 = vmatpush.msra.mxu0 %v3200
        %3330 = vmatpush.msra.mxu0 %v3196
        %3331 = vmatpush.msra.mxu0 %v3192
        %3332 = vmatmul.f32.gmra.mxu0 %v3253
        %v3333 = vpop.f32.mrf.mxu0
        %v3334 = vadd.f32 %v3255, %v3333
        %3335 = vdwg.mxu0
        %v3340 = vrot.slane %v3294, 7
        %v3341 = vrot.slane %v3314, 6
        %v3342 = vrot.slane %v3334, 5
        %vm3343 = vcmask 1040384
        %v3344 = vsel %vm3343, %v3274, %v3340
        %vm3345 = vcmask 1042434
        %v3346 = vsel %vm3345, %v3341, %v3342
        %vm3347 = vcmask 1041408
        %v3348 = vsel %vm3347, %v3344, %v3346
        %v3350 = vlaneseq
        %vm3351 = vcmp.ge.s32.totalorder %v3350, 0
        %vm3352 = vcmp.lt.s32.totalorder %v3350, 512
        %vm3353 = vmand %vm3351, %vm3352
        %3354 = vst.msk [vmem:[%s273] sm:$0xf] %vm3353, %v3348
        %s3355 = sand.u32 %s182, 1
        %s3356 = scalar_lea.sflag [#allocation4], %s3355
        %s3357 = sand.u32 %s182, 1
        %s3358 = smul.addr %s3357, 4
        %s3359 = scalar_lea.vmem [#allocation3], %s3358
        // Predicated region
        $region49: #{tpu_custom_call.1} parent=47 // pred_check
          %p3360 = pneg %p192
        $region50: #{tpu_custom_call.1} parent=47 // pred_check_branch
          %3362 = sbr.rel (%p3360) target = $region52
        $region51: #{tpu_custom_call.1} parent=47 // pred_region
          %3364 = vsyncadd %s3356, 0
          %s3365 = smul.addr %s22, 4
          %s3366 = scalar_lea.hbm %s7, %s3365
          %s3368 = sshll.u32 %s3359, 4
          %s3369 = int_to_ptr.vmem [resolvable:$true] %s3368
          %s3370 = sshll.u32 %s3366, 4
          %s3371 = int_to_ptr.hbm [resolvable:$true] %s3370
          %3373 = dma.vmem_to_hbm [thread:$0]  %s3369, 64, %s3371, %s3356
        $region52: #{tpu_custom_call.1} parent=47 // pred_fallthru
          _
      $region48: #{tpu_custom_call.1} parent=5 // pred_fallthru
        _
      %p3374 = scmp.le.s32.totalorder 2, %s17
      // Predicated region
      $region53: #{tpu_custom_call.1} parent=5 // pred_check
        %p3375 = pneg %p3374
      $region54: #{tpu_custom_call.1} parent=5 // pred_check_branch
        %3377 = sbr.rel (%p3375) target = $region56
      $region55: #{tpu_custom_call.1} parent=5 // pred_region
        %s3378 = ssub.s32 %s17, 2
        // Predicated region
        $region57: #{tpu_custom_call.1} parent=55 // pred_check
          %p3379 = pneg %p198
        $region58: #{tpu_custom_call.1} parent=55 // pred_check_branch
          %3381 = sbr.rel (%p3379) target = $region60
        $region59: #{tpu_custom_call.1} parent=55 // pred_region
          %s3382 = sand.u32 %s183, 1
          %s3383 = scalar_lea.sflag [#allocation4], %s3382
          %s3384 = sand.u32 %s183, 1
          %s3385 = smul.addr %s3384, 4
          %s3386 = scalar_lea.vmem [#allocation3], %s3385
          %3388 = dma.done %s3383, 64
        $region60: #{tpu_custom_call.1} parent=55 // pred_fallthru
          _
      $region56: #{tpu_custom_call.1} parent=5 // pred_fallthru
        _
    $region6: #{tpu_custom_call.1} parent=1 // loop_footer
      %s21 = sadd.s32 1, %s17
    $region7: #{tpu_custom_call.1} parent=1 // loop_footer_branch
      %16 = sbr.rel target = $region3
    $region8: #{tpu_custom_call.1} parent=1 // loop_exit
      _
    %3389 = vsyncpa [#allocation4], 1
    %s3390 = scalar_lea.sflag [#allocation4], 1
    %3391 = vsyncpa %s3390, 1

</llo_original>
